<compile_context>
chip_gen: v5e
topology: v5e:2x2
jax: 0.10.0
libtpu: 0.0.40
codegen_flags: <defaults>
</compile_context>

<pallas_src>
import math

import jax
import jax.numpy as jnp
from jax.experimental import pallas as pl
from jax.experimental.pallas import tpu as pltpu

# ---- small shapes consistent with the module (real: d_model=512, nhead=8, S=256, FF=2048) ----
B = 2                       # batch
HS = WS = 4                 # feature-map spatial dims -> seq_len = 16
S = HS * WS                 # seq_len
D_MODEL = 256               # scaled-down d_model, chosen so HEAD_DIM is a full 128-lane tile
NHEAD = 2                   # scaled-down nhead (multi-head structure preserved)
HEAD_DIM = D_MODEL // NHEAD # 128
D_FF = 4 * D_MODEL          # same 4x ratio as nn.TransformerEncoderLayer default
NUM_LAYERS = 3              # module default
OUT_DIM = 5                 # Linear(seq_len*d_model, 5)
OUT_PAD = 128               # padded head output width (lane-dense stores); sliced in wrapper
LN_EPS = 1e-5
CDT = jnp.bfloat16          # MXU operand dtype; accumulation + elementwise math stay f32
SCALE = 1.0 / math.sqrt(HEAD_DIM)

assert D_MODEL % NHEAD == 0 and HEAD_DIM % 128 == 0

_PARAM_ORDER = ("in_w", "in_b", "out_w", "out_b", "ln1_g", "ln1_b",
                "w1", "b1", "w2", "b2", "ln2_g", "ln2_b")


def _layer_norm(x, gamma, beta):
    mu = jnp.mean(x, axis=-1, keepdims=True)
    var = jnp.mean(jnp.square(x - mu), axis=-1, keepdims=True)
    return (x - mu) * jax.lax.rsqrt(var + LN_EPS) * gamma + beta


# --------------------------------------------------------------------------------------------
# Kernel 1: fused PositionalEncoding + NUM_LAYERS x TransformerEncoderLayer.
# grid = (B, NUM_LAYERS); activations live in a VMEM scratch across the layer axis.
# --------------------------------------------------------------------------------------------
def fused_encoder_kernel(x_ref, pe_ref, in_w_ref, in_b_ref, out_w_ref, out_b_ref,
                         ln1_g_ref, ln1_b_ref, w1_ref, b1_ref, w2_ref, b2_ref,
                         ln2_g_ref, ln2_b_ref, o_ref, x_state):
    l = pl.program_id(1)

    @pl.when(l == 0)
    def _():
        # PositionalEncoding fused into the first layer step: pe row indexed by the BATCH
        # index and broadcast over seq (faithful to the PyTorch module). Dropout == identity.
        x_state[...] = x_ref[0] + pe_ref[0]

    x = x_state[...]                                      # (S, D) f32, resident across layers

    # ---------------- multi-head self-attention (post-norm) ----------------
    # QKV in one MXU matmul; bf16 operands, f32 accumulation.
    qkv = jnp.einsum('sd,ed->se', x.astype(CDT), in_w_ref[0],
                     preferred_element_type=jnp.float32) + in_b_ref[0]      # (S, 3D) f32
    q = qkv[:, :D_MODEL]
    k = qkv[:, D_MODEL:2 * D_MODEL]
    v = qkv[:, 2 * D_MODEL:]

    def to_heads(t):                                      # (S, D) -> (H, S, HEAD_DIM)
        # 128-lane-aligned value slices stacked on a leading head axis (no masked stores,
        # no VMEM scratch); at real scale (HEAD_DIM=64) pair heads so slices stay 128-wide.
        return jnp.stack([t[:, h * HEAD_DIM:(h + 1) * HEAD_DIM] for h in range(NHEAD)],
                         axis=0).astype(CDT)

    qh, kh, vh = to_heads(q), to_heads(k), to_heads(v)

    # All heads in one batched dot_general pair (head axis leading), f32 softmax statistics.
    s = jnp.einsum('hqd,hkd->hqk', qh, kh, preferred_element_type=jnp.float32) * SCALE
    s = s - jnp.max(s, axis=-1, keepdims=True)
    p = jnp.exp(s)
    denom = jnp.sum(p, axis=-1, keepdims=True)            # (H, S, 1)
    ctx = jnp.einsum('hqk,hkd->hqd', p.astype(CDT), vh,
                     preferred_element_type=jnp.float32)  # (H, S, HEAD_DIM), unnormalized
    # Deferred softmax normalization: one approx-reciprocal multiply after the PV matmul (EUP).
    ctx = ctx * pl.reciprocal(denom, approx=True)
    attn = jnp.concatenate([ctx[h] for h in range(NHEAD)], axis=-1)         # (S, D) full-width

    mha = jnp.einsum('sd,ed->se', attn.astype(CDT), out_w_ref[0],
                     preferred_element_type=jnp.float32) + out_b_ref[0]

    # ---------------- residual + LayerNorm + FFN + residual + LayerNorm ----------------
    y1 = _layer_norm(x + mha, ln1_g_ref[0], ln1_b_ref[0])
    h1 = jnp.maximum(
        jnp.einsum('sd,fd->sf', y1.astype(CDT), w1_ref[0],
                   preferred_element_type=jnp.float32) + b1_ref[0], 0.0)
    y2 = jnp.einsum('sf,df->sd', h1.astype(CDT), w2_ref[0],
                    preferred_element_type=jnp.float32) + b2_ref[0]
    y = _layer_norm(y1 + y2, ln2_g_ref[0], ln2_b_ref[0])

    x_state[...] = y                                      # carry to the next layer step

    @pl.when(l == pl.num_programs(1) - 1)
    def _():
        o_ref[0] = y.astype(o_ref.dtype)                  # single HBM write-back per batch elem


def fused_transformer_encoder(x, pe_rows, w):
    Bn, Sn, Dn = x.shape
    L = w["in_w"].shape[0]

    def wspec(name):                                      # one layer's slab per grid step
        arr = w[name]
        return pl.BlockSpec((1,) + arr.shape[1:], lambda b, l: (l, 0, 0))

    return pl.pallas_call(
        fused_encoder_kernel,
        out_shape=jax.ShapeDtypeStruct(x.shape, x.dtype),
        grid=(Bn, L),
        in_specs=[pl.BlockSpec((1, Sn, Dn), lambda b, l: (b, 0, 0)),   # x (read at l==0 only)
                  pl.BlockSpec((1, 1, Dn), lambda b, l: (b, 0, 0))]    # pe row for this batch
                 + [wspec(name) for name in _PARAM_ORDER],
        out_specs=pl.BlockSpec((1, Sn, Dn), lambda b, l: (b, 0, 0)),
        scratch_shapes=[pltpu.VMEM((Sn, Dn), jnp.float32)],            # resident activations
        compiler_params=pltpu.CompilerParams(
            # batch is independent -> "parallel" (v7x shards it over 2 TCs);
            # layer axis carries x_state -> "arbitrary" and last (reduction-style axis).
            dimension_semantics=("parallel", "arbitrary"),
        ),
    )(x, pe_rows, *[w[name] for name in _PARAM_ORDER])


# --------------------------------------------------------------------------------------------
# Kernel 2: flatten + Linear(S*D, 5), padded to OUT_PAD=128 lanes (sliced in the wrapper).
# --------------------------------------------------------------------------------------------
def head_kernel(x_ref, w_ref, b_ref, o_ref):
    o_ref[...] = (jnp.einsum('bk,ok->bo', x_ref[...].astype(CDT), w_ref[...],
                             preferred_element_type=jnp.float32)
                  + b_ref[...]).astype(o_ref.dtype)


def linear_head(x_flat, w_pad, b_pad):
    return pl.pallas_call(
        head_kernel,
        out_shape=jax.ShapeDtypeStruct((x_flat.shape[0], OUT_PAD), x_flat.dtype),
        in_specs=[pl.BlockSpec(memory_space=pltpu.MemorySpace.VMEM)] * 3,
        out_specs=pl.BlockSpec(memory_space=pltpu.MemorySpace.VMEM),
    )(x_flat, w_pad, b_pad)


# --------------------------------------------------------------------------------------------
# Full forward (Pallas) and pure-JAX f32 reference.
# --------------------------------------------------------------------------------------------
def attention_subs_boxer_forward(feat, params):
    Bn = feat.shape[0]
    # Permute(0,2,3,1) + View(): pure layout glue -> wrapper reshape.
    x = jnp.transpose(feat, (0, 2, 3, 1)).reshape(Bn, S, D_MODEL)
    # Fused PE + all encoder layers (single pallas_call).
    x = fused_transformer_encoder(x, params["pe"][:Bn], params["stack"])
    # ViewOfShape((-1, S*D)) + padded Linear head; slice the 5 real outputs.
    out_pad = linear_head(x.reshape(Bn, S * D_MODEL), params["head_w"], params["head_b"])
    return out_pad[:, :OUT_DIM]


_HI = jax.lax.Precision.HIGHEST


def reference_forward(feat, params):
    Bn = feat.shape[0]
    x = jnp.transpose(feat, (0, 2, 3, 1)).reshape(Bn, S, D_MODEL)
    x = x + params["pe"][:Bn]
    w = params["stack"]
    for l in range(NUM_LAYERS):
        g = lambda n: w[n][l].astype(jnp.float32)
        in_w, in_b, out_w, out_b = g("in_w"), g("in_b"), g("out_w"), g("out_b")
        ln1_g, ln1_b, ln2_g, ln2_b = g("ln1_g"), g("ln1_b"), g("ln2_g"), g("ln2_b")
        w1, b1, w2, b2 = g("w1"), g("b1"), g("w2"), g("b2")

        q = jnp.einsum('bsd,ed->bse', x, in_w[:D_MODEL], precision=_HI) + in_b[:, :D_MODEL]
        k = (jnp.einsum('bsd,ed->bse', x, in_w[D_MODEL:2 * D_MODEL], precision=_HI)
             + in_b[:, D_MODEL:2 * D_MODEL])
        v = (jnp.einsum('bsd,ed->bse', x, in_w[2 * D_MODEL:], precision=_HI)
             + in_b[:, 2 * D_MODEL:])
        heads = []
        for h in range(NHEAD):
            sl = slice(h * HEAD_DIM, (h + 1) * HEAD_DIM)
            s = jnp.einsum('bqd,bkd->bqk', q[..., sl], k[..., sl], precision=_HI) * SCALE
            s = s - jnp.max(s, axis=-1, keepdims=True)
            pr = jnp.exp(s)
            pr = pr / jnp.sum(pr, axis=-1, keepdims=True)
            heads.append(jnp.einsum('bqk,bkd->bqd', pr, v[..., sl], precision=_HI))
        attn = jnp.concatenate(heads, axis=-1)
        mha = jnp.einsum('bsd,ed->bse', attn, out_w, precision=_HI) + out_b
        y1 = _layer_norm(x + mha, ln1_g, ln1_b)
        h1 = jnp.maximum(jnp.einsum('bsd,fd->bsf', y1, w1, precision=_HI) + b1, 0.0)
        y2 = jnp.einsum('bsf,df->bsd', h1, w2, precision=_HI) + b2
        x = _layer_norm(y1 + y2, ln2_g, ln2_b)
    xf = x.reshape(Bn, S * D_MODEL)
    hw = params["head_w"][:OUT_DIM].astype(jnp.float32)
    hb = params["head_b"][:, :OUT_DIM]
    return jnp.einsum('bk,ok->bo', xf, hw, precision=_HI) + hb


# --------------------------------------------------------------------------------------------
# Deterministic parameter construction (no checkpoint). Matmul weights stored in bf16 (the
# reference upcasts the same values to f32, so the check isolates kernel-side rounding).
# --------------------------------------------------------------------------------------------
def init_params(key):
    keys = iter(jax.random.split(key, 8 * NUM_LAYERS + 2))

    def w16(shape, scale=0.02):
        return (scale * jax.random.normal(next(keys), shape, jnp.float32)).astype(jnp.bfloat16)

    def b32(shape, scale=0.02):
        return scale * jax.random.normal(next(keys), shape, jnp.float32)

    stack = {n: [] for n in _PARAM_ORDER}
    for _ in range(NUM_LAYERS):
        stack["in_w"].append(w16((3 * D_MODEL, D_MODEL)))          # MHA in_proj_weight
        stack["in_b"].append(b32((1, 3 * D_MODEL)))                # MHA in_proj_bias
        stack["out_w"].append(w16((D_MODEL, D_MODEL)))             # MHA out_proj.weight
        stack["out_b"].append(b32((1, D_MODEL)))                   # MHA out_proj.bias
        stack["ln1_g"].append(jnp.ones((1, D_MODEL), jnp.float32))
        stack["ln1_b"].append(jnp.zeros((1, D_MODEL), jnp.float32))
        stack["w1"].append(w16((D_FF, D_MODEL)))                   # linear1
        stack["b1"].append(b32((1, D_FF)))
        stack["w2"].append(w16((D_MODEL, D_FF)))                   # linear2
        stack["b2"].append(b32((1, D_MODEL)))
        stack["ln2_g"].append(jnp.ones((1, D_MODEL), jnp.float32))
        stack["ln2_b"].append(jnp.zeros((1, D_MODEL), jnp.float32))
    stack = {n: jnp.stack(v, axis=0) for n, v in stack.items()}    # leading layer axis

    # Head weights padded to OUT_PAD rows (zero rows beyond the 5 real outputs).
    hw = jnp.zeros((OUT_PAD, S * D_MODEL), jnp.float32)
    hw = hw.at[:OUT_DIM].set(0.02 * jax.random.normal(next(keys), (OUT_DIM, S * D_MODEL),
                                                      jnp.float32))
    head_w = hw.astype(jnp.bfloat16)
    head_b = jnp.zeros((1, OUT_PAD), jnp.float32)
    head_b = head_b.at[:, :OUT_DIM].set(0.02 * jax.random.normal(next(keys), (1, OUT_DIM),
                                                                 jnp.float32))

    # PositionalEncoding buffer, exactly as in the module (max_len = seq_len).
    position = jnp.arange(S, dtype=jnp.float32)[:, None]
    div_term = jnp.exp(jnp.arange(0, D_MODEL, 2, dtype=jnp.float32)
                       * (-math.log(10000.0) / D_MODEL))
    pe = jnp.zeros((S, 1, D_MODEL), jnp.float32)
    pe = pe.at[:, 0, 0::2].set(jnp.sin(position * div_term))
    pe = pe.at[:, 0, 1::2].set(jnp.cos(position * div_term))

    return dict(stack=stack, head_w=head_w, head_b=head_b, pe=pe)


if __name__ == "__main__":
    key = jax.random.PRNGKey(0)
    k_feat, k_params = jax.random.split(key)
    params = init_params(k_params)

    # TODO(synk): ResNet34 feature extractor not translated -- feed the (B, C, h, w) feature map.
    feat = jax.random.normal(k_feat, (B, D_MODEL, HS, WS), dtype=jnp.float32)

    out = attention_subs_boxer_forward(feat, params)
    out = jax.block_until_ready(out)

    ref = reference_forward(feat, params)
    assert out.shape == (B, OUT_DIM), f"bad output shape {out.shape}"
    err = float(jnp.max(jnp.abs(out - ref)))
    # bf16 matmul operands + approx-reciprocal softmax vs f32-HIGHEST reference.
    assert jnp.allclose(out, ref, rtol=5e-2, atol=5e-2), f"mismatch vs reference, max err={err}"

    print("KERNEL_OK")
</pallas_src>

<mosaic_0001>
module attributes {stable_mosaic.version = 11 : i64} {
  func.func @fused_encoder_kernel(%arg0: i32, %arg1: i32, %arg2: memref<1x16x256xf32, #tpu.memory_space<vmem>>, %arg3: memref<1x1x256xf32, #tpu.memory_space<vmem>>, %arg4: memref<1x768x256xbf16, #tpu.memory_space<vmem>>, %arg5: memref<1x1x768xf32, #tpu.memory_space<vmem>>, %arg6: memref<1x256x256xbf16, #tpu.memory_space<vmem>>, %arg7: memref<1x1x256xf32, #tpu.memory_space<vmem>>, %arg8: memref<1x1x256xf32, #tpu.memory_space<vmem>>, %arg9: memref<1x1x256xf32, #tpu.memory_space<vmem>>, %arg10: memref<1x1024x256xbf16, #tpu.memory_space<vmem>>, %arg11: memref<1x1x1024xf32, #tpu.memory_space<vmem>>, %arg12: memref<1x256x1024xbf16, #tpu.memory_space<vmem>>, %arg13: memref<1x1x256xf32, #tpu.memory_space<vmem>>, %arg14: memref<1x1x256xf32, #tpu.memory_space<vmem>>, %arg15: memref<1x1x256xf32, #tpu.memory_space<vmem>>, %arg16: memref<1x16x256xf32, #tpu.memory_space<vmem>>, %arg17: memref<16x256xf32, #tpu.memory_space<vmem>>) attributes {dimension_semantics = [#tpu.dimension_semantics<parallel>, #tpu.dimension_semantics<arbitrary>], iteration_bounds = array<i64: 2, 3>, scalar_prefetch = 0 : i64, scratch_operands = 1 : i64, tpu.core_type = #tpu.core_type<tc>, window_params = [{transform_indices = @transform_0, window_bounds = array<i64: 1, 16, 256>}, {transform_indices = @transform_1, window_bounds = array<i64: 1, 1, 256>}, {transform_indices = @transform_2, window_bounds = array<i64: 1, 768, 256>}, {transform_indices = @transform_3, window_bounds = array<i64: 1, 1, 768>}, {transform_indices = @transform_4, window_bounds = array<i64: 1, 256, 256>}, {transform_indices = @transform_5, window_bounds = array<i64: 1, 1, 256>}, {transform_indices = @transform_6, window_bounds = array<i64: 1, 1, 256>}, {transform_indices = @transform_7, window_bounds = array<i64: 1, 1, 256>}, {transform_indices = @transform_8, window_bounds = array<i64: 1, 1024, 256>}, {transform_indices = @transform_9, window_bounds = array<i64: 1, 1, 1024>}, {transform_indices = @transform_10, window_bounds = array<i64: 1, 256, 1024>}, {transform_indices = @transform_11, window_bounds = array<i64: 1, 1, 256>}, {transform_indices = @transform_12, window_bounds = array<i64: 1, 1, 256>}, {transform_indices = @transform_13, window_bounds = array<i64: 1, 1, 256>}, {transform_indices = @transform_14, window_bounds = array<i64: 1, 16, 256>}]} {
    %c0_i32 = arith.constant 0 : i32
    %0 = arith.cmpi eq, %arg1, %c0_i32 : i32
    %1 = arith.extui %0 : i1 to i32
    %c0_i32_0 = arith.constant 0 : i32
    %2 = arith.cmpi ne, %1, %c0_i32_0 : i32
    scf.if %2 {
      %c0_60 = arith.constant 0 : index
      %c0_61 = arith.constant 0 : index
      %c0_62 = arith.constant 0 : index
      %137 = vector.load %arg2[%c0_60, %c0_61, %c0_62] : memref<1x16x256xf32, #tpu.memory_space<vmem>>, vector<1x16x256xf32>
      %138 = vector.shape_cast %137 : vector<1x16x256xf32> to vector<16x256xf32>
      %c0_63 = arith.constant 0 : index
      %c0_64 = arith.constant 0 : index
      %c0_65 = arith.constant 0 : index
      %139 = vector.load %arg3[%c0_63, %c0_64, %c0_65] : memref<1x1x256xf32, #tpu.memory_space<vmem>>, vector<1x1x256xf32>
      %140 = vector.shape_cast %139 : vector<1x1x256xf32> to vector<1x256xf32>
      %141 = vector.broadcast %140 : vector<1x256xf32> to vector<16x256xf32>
      %142 = arith.addf %138, %141 : vector<16x256xf32>
      %c0_66 = arith.constant 0 : index
      %c0_67 = arith.constant 0 : index
      %143 = vector.load %arg17[%c0_66, %c0_67] : memref<16x256xf32, #tpu.memory_space<vmem>>, vector<16x256xf32>
      tpu.vector_store %arg17[%c0_66, %c0_67], %142 {strides = array<i32>} : memref<16x256xf32, #tpu.memory_space<vmem>>, vector<16x256xf32>,
    } else {
    }
    %c0 = arith.constant 0 : index
    %c0_1 = arith.constant 0 : index
    %3 = vector.load %arg17[%c0, %c0_1] : memref<16x256xf32, #tpu.memory_space<vmem>>, vector<16x256xf32>
    %4 = arith.truncf %3 : vector<16x256xf32> to vector<16x256xbf16>
    %c0_2 = arith.constant 0 : index
    %c0_3 = arith.constant 0 : index
    %c0_4 = arith.constant 0 : index
    %5 = vector.load %arg4[%c0_2, %c0_3, %c0_4] : memref<1x768x256xbf16, #tpu.memory_space<vmem>>, vector<1x768x256xbf16>
    %6 = vector.shape_cast %5 : vector<1x768x256xbf16> to vector<768x256xbf16>
    "tpu.trace_start"() <{level = 10 : i32, message = "sd,ed->se"}> : () -> ()
    %cst = arith.constant dense<0.000000e+00> : vector<16x768xf32>
    %7 = tpu.matmul %4, %6, %cst {dimension_numbers = #tpu.dot_dimension_numbers<[1], [1], [0], [0], [0, 0, 1, 0], [], []>} : vector<16x256xbf16>, vector<768x256xbf16>, vector<16x768xf32> -> vector<16x768xf32>
    "tpu.trace_stop"() : () -> ()
    %c0_5 = arith.constant 0 : index
    %c0_6 = arith.constant 0 : index
    %c0_7 = arith.constant 0 : index
    %8 = vector.load %arg5[%c0_5, %c0_6, %c0_7] : memref<1x1x768xf32, #tpu.memory_space<vmem>>, vector<1x1x768xf32>
    %9 = vector.shape_cast %8 : vector<1x1x768xf32> to vector<1x768xf32>
    %10 = vector.broadcast %9 : vector<1x768xf32> to vector<16x768xf32>
    %11 = arith.addf %7, %10 : vector<16x768xf32>
    %12 = vector.extract_strided_slice %11 {offsets = [0, 0], sizes = [16, 256], strides = [1, 1]} : vector<16x768xf32> to vector<16x256xf32>
    %13 = vector.extract_strided_slice %11 {offsets = [0, 256], sizes = [16, 256], strides = [1, 1]} : vector<16x768xf32> to vector<16x256xf32>
    %14 = vector.extract_strided_slice %11 {offsets = [0, 512], sizes = [16, 256], strides = [1, 1]} : vector<16x768xf32> to vector<16x256xf32>
    %15 = vector.extract_strided_slice %12 {offsets = [0, 0], sizes = [16, 128], strides = [1, 1]} : vector<16x256xf32> to vector<16x128xf32>
    %16 = vector.extract_strided_slice %12 {offsets = [0, 128], sizes = [16, 128], strides = [1, 1]} : vector<16x256xf32> to vector<16x128xf32>
    %17 = vector.shape_cast %15 : vector<16x128xf32> to vector<1x16x128xf32>
    %18 = vector.shape_cast %16 : vector<16x128xf32> to vector<1x16x128xf32>
    %19 = tpu.concatenate %17, %18 in 0 : vector<1x16x128xf32>, vector<1x16x128xf32> -> vector<2x16x128xf32>
    %20 = arith.truncf %19 : vector<2x16x128xf32> to vector<2x16x128xbf16>
    %21 = vector.extract_strided_slice %13 {offsets = [0, 0], sizes = [16, 128], strides = [1, 1]} : vector<16x256xf32> to vector<16x128xf32>
    %22 = vector.extract_strided_slice %13 {offsets = [0, 128], sizes = [16, 128], strides = [1, 1]} : vector<16x256xf32> to vector<16x128xf32>
    %23 = vector.shape_cast %21 : vector<16x128xf32> to vector<1x16x128xf32>
    %24 = vector.shape_cast %22 : vector<16x128xf32> to vector<1x16x128xf32>
    %25 = tpu.concatenate %23, %24 in 0 : vector<1x16x128xf32>, vector<1x16x128xf32> -> vector<2x16x128xf32>
    %26 = arith.truncf %25 : vector<2x16x128xf32> to vector<2x16x128xbf16>
    %27 = vector.extract_strided_slice %14 {offsets = [0, 0], sizes = [16, 128], strides = [1, 1]} : vector<16x256xf32> to vector<16x128xf32>
    %28 = vector.extract_strided_slice %14 {offsets = [0, 128], sizes = [16, 128], strides = [1, 1]} : vector<16x256xf32> to vector<16x128xf32>
    %29 = vector.shape_cast %27 : vector<16x128xf32> to vector<1x16x128xf32>
    %30 = vector.shape_cast %28 : vector<16x128xf32> to vector<1x16x128xf32>
    %31 = tpu.concatenate %29, %30 in 0 : vector<1x16x128xf32>, vector<1x16x128xf32> -> vector<2x16x128xf32>
    %32 = arith.truncf %31 : vector<2x16x128xf32> to vector<2x16x128xbf16>
    "tpu.trace_start"() <{level = 10 : i32, message = "hqd,hkd->hqk"}> : () -> ()
    %cst_8 = arith.constant dense<0.000000e+00> : vector<2x16x16xf32>
    %33 = tpu.matmul %20, %26, %cst_8 {dimension_numbers = #tpu.dot_dimension_numbers<[2], [2], [1], [1], [0, 0, 0, 1, 1, 1], [0], [0]>} : vector<2x16x128xbf16>, vector<2x16x128xbf16>, vector<2x16x16xf32> -> vector<2x16x16xf32>
    "tpu.trace_stop"() : () -> ()
    %cst_9 = arith.constant 0.0883883461 : f32
    %34 = vector.broadcast %cst_9 : f32 to vector<2x16x16xf32>
    %35 = arith.mulf %33, %34 : vector<2x16x16xf32>
    %cst_10 = arith.constant dense<0xFF800000> : vector<2x16xf32>
    %36 = vector.multi_reduction <maximumf>, %35, %cst_10 [2] : vector<2x16x16xf32> to vector<2x16xf32>
    %37 = vector.shape_cast %36 : vector<2x16xf32> to vector<2x16x1xf32>
    %38 = vector.broadcast %37 : vector<2x16x1xf32> to vector<2x16x16xf32>
    %39 = arith.subf %35, %38 : vector<2x16x16xf32>
    %40 = math.exp %39 : vector<2x16x16xf32>
    %cst_11 = arith.constant dense<0.000000e+00> : vector<2x16xf32>
    %41 = vector.multi_reduction <add>, %40, %cst_11 [2] : vector<2x16x16xf32> to vector<2x16xf32>
    %42 = vector.shape_cast %41 : vector<2x16xf32> to vector<2x16x1xf32>
    %43 = arith.truncf %40 : vector<2x16x16xf32> to vector<2x16x16xbf16>
    "tpu.trace_start"() <{level = 10 : i32, message = "hqk,hkd->hqd"}> : () -> ()
    %cst_12 = arith.constant dense<0.000000e+00> : vector<2x16x128xf32>
    %44 = tpu.matmul %43, %32, %cst_12 {dimension_numbers = #tpu.dot_dimension_numbers<[2], [1], [1], [2], [0, 0, 0, 1, 1, 2], [0], [0]>} : vector<2x16x16xbf16>, vector<2x16x128xbf16>, vector<2x16x128xf32> -> vector<2x16x128xf32>
    "tpu.trace_stop"() : () -> ()
    %45 = tpu.reciprocal %42 {approx = true} : vector<2x16x1xf32> -> vector<2x16x1xf32>
    %46 = vector.broadcast %45 : vector<2x16x1xf32> to vector<2x16x128xf32>
    %47 = arith.mulf %44, %46 : vector<2x16x128xf32>
    %48 = vector.extract_strided_slice %47 {offsets = [0, 0, 0], sizes = [1, 16, 128], strides = [1, 1, 1]} : vector<2x16x128xf32> to vector<1x16x128xf32>
    %49 = vector.shape_cast %48 : vector<1x16x128xf32> to vector<16x128xf32>
    %50 = vector.extract_strided_slice %47 {offsets = [1, 0, 0], sizes = [1, 16, 128], strides = [1, 1, 1]} : vector<2x16x128xf32> to vector<1x16x128xf32>
    %51 = vector.shape_cast %50 : vector<1x16x128xf32> to vector<16x128xf32>
    %52 = tpu.concatenate %49, %51 in 1 : vector<16x128xf32>, vector<16x128xf32> -> vector<16x256xf32>
    %53 = arith.truncf %52 : vector<16x256xf32> to vector<16x256xbf16>
    %c0_13 = arith.constant 0 : index
    %c0_14 = arith.constant 0 : index
    %c0_15 = arith.constant 0 : index
    %54 = vector.load %arg6[%c0_13, %c0_14, %c0_15] : memref<1x256x256xbf16, #tpu.memory_space<vmem>>, vector<1x256x256xbf16>
    %55 = vector.shape_cast %54 : vector<1x256x256xbf16> to vector<256x256xbf16>
    "tpu.trace_start"() <{level = 10 : i32, message = "sd,ed->se"}> : () -> ()
    %cst_16 = arith.constant dense<0.000000e+00> : vector<16x256xf32>
    %56 = tpu.matmul %53, %55, %cst_16 {dimension_numbers = #tpu.dot_dimension_numbers<[1], [1], [0], [0], [0, 0, 1, 0], [], []>} : vector<16x256xbf16>, vector<256x256xbf16>, vector<16x256xf32> -> vector<16x256xf32>
    "tpu.trace_stop"() : () -> ()
    %c0_17 = arith.constant 0 : index
    %c0_18 = arith.constant 0 : index
    %c0_19 = arith.constant 0 : index
    %57 = vector.load %arg7[%c0_17, %c0_18, %c0_19] : memref<1x1x256xf32, #tpu.memory_space<vmem>>, vector<1x1x256xf32>
    %58 = vector.shape_cast %57 : vector<1x1x256xf32> to vector<1x256xf32>
    %59 = vector.broadcast %58 : vector<1x256xf32> to vector<16x256xf32>
    %60 = arith.addf %56, %59 : vector<16x256xf32>
    %61 = arith.addf %3, %60 : vector<16x256xf32>
    %c0_20 = arith.constant 0 : index
    %c0_21 = arith.constant 0 : index
    %c0_22 = arith.constant 0 : index
    %62 = vector.load %arg8[%c0_20, %c0_21, %c0_22] : memref<1x1x256xf32, #tpu.memory_space<vmem>>, vector<1x1x256xf32>
    %63 = vector.shape_cast %62 : vector<1x1x256xf32> to vector<1x256xf32>
    %c0_23 = arith.constant 0 : index
    %c0_24 = arith.constant 0 : index
    %c0_25 = arith.constant 0 : index
    %64 = vector.load %arg9[%c0_23, %c0_24, %c0_25] : memref<1x1x256xf32, #tpu.memory_space<vmem>>, vector<1x1x256xf32>
    %65 = vector.shape_cast %64 : vector<1x1x256xf32> to vector<1x256xf32>
    %cst_26 = arith.constant dense<0.000000e+00> : vector<16xf32>
    %66 = vector.multi_reduction <add>, %61, %cst_26 [1] : vector<16x256xf32> to vector<16xf32>
    %67 = vector.shape_cast %66 : vector<16xf32> to vector<16x1xf32>
    %cst_27 = arith.constant 2.560000e+02 : f32
    %68 = vector.broadcast %cst_27 : f32 to vector<16x1xf32>
    %69 = arith.divf %67, %68 : vector<16x1xf32>
    %70 = vector.broadcast %69 : vector<16x1xf32> to vector<16x256xf32>
    %71 = arith.subf %61, %70 : vector<16x256xf32>
    %72 = arith.mulf %71, %71 : vector<16x256xf32>
    %cst_28 = arith.constant dense<0.000000e+00> : vector<16xf32>
    %73 = vector.multi_reduction <add>, %72, %cst_28 [1] : vector<16x256xf32> to vector<16xf32>
    %74 = vector.shape_cast %73 : vector<16xf32> to vector<16x1xf32>
    %cst_29 = arith.constant 2.560000e+02 : f32
    %75 = vector.broadcast %cst_29 : f32 to vector<16x1xf32>
    %76 = arith.divf %74, %75 : vector<16x1xf32>
    %77 = vector.broadcast %69 : vector<16x1xf32> to vector<16x256xf32>
    %78 = arith.subf %61, %77 : vector<16x256xf32>
    %cst_30 = arith.constant 9.99999974E-6 : f32
    %79 = vector.broadcast %cst_30 : f32 to vector<16x1xf32>
    %80 = arith.addf %76, %79 : vector<16x1xf32>
    %81 = math.rsqrt %80 : vector<16x1xf32>
    %82 = vector.broadcast %81 : vector<16x1xf32> to vector<16x256xf32>
    %83 = arith.mulf %78, %82 : vector<16x256xf32>
    %84 = vector.broadcast %63 : vector<1x256xf32> to vector<16x256xf32>
    %85 = arith.mulf %83, %84 : vector<16x256xf32>
    %86 = vector.broadcast %65 : vector<1x256xf32> to vector<16x256xf32>
    %87 = arith.addf %85, %86 : vector<16x256xf32>
    %88 = arith.truncf %87 : vector<16x256xf32> to vector<16x256xbf16>
    %c0_31 = arith.constant 0 : index
    %c0_32 = arith.constant 0 : index
    %c0_33 = arith.constant 0 : index
    %89 = vector.load %arg10[%c0_31, %c0_32, %c0_33] : memref<1x1024x256xbf16, #tpu.memory_space<vmem>>, vector<1x1024x256xbf16>
    %90 = vector.shape_cast %89 : vector<1x1024x256xbf16> to vector<1024x256xbf16>
    "tpu.trace_start"() <{level = 10 : i32, message = "sd,fd->sf"}> : () -> ()
    %cst_34 = arith.constant dense<0.000000e+00> : vector<16x1024xf32>
    %91 = tpu.matmul %88, %90, %cst_34 {dimension_numbers = #tpu.dot_dimension_numbers<[1], [1], [0], [0], [0, 0, 1, 0], [], []>} : vector<16x256xbf16>, vector<1024x256xbf16>, vector<16x1024xf32> -> vector<16x1024xf32>
    "tpu.trace_stop"() : () -> ()
    %c0_35 = arith.constant 0 : index
    %c0_36 = arith.constant 0 : index
    %c0_37 = arith.constant 0 : index
    %92 = vector.load %arg11[%c0_35, %c0_36, %c0_37] : memref<1x1x1024xf32, #tpu.memory_space<vmem>>, vector<1x1x1024xf32>
    %93 = vector.shape_cast %92 : vector<1x1x1024xf32> to vector<1x1024xf32>
    %94 = vector.broadcast %93 : vector<1x1024xf32> to vector<16x1024xf32>
    %95 = arith.addf %91, %94 : vector<16x1024xf32>
    %cst_38 = arith.constant 0.000000e+00 : f32
    %96 = vector.broadcast %cst_38 : f32 to vector<16x1024xf32>
    %97 = arith.maximumf %95, %96 : vector<16x1024xf32>
    %98 = arith.truncf %97 : vector<16x1024xf32> to vector<16x1024xbf16>
    %c0_39 = arith.constant 0 : index
    %c0_40 = arith.constant 0 : index
    %c0_41 = arith.constant 0 : index
    %99 = vector.load %arg12[%c0_39, %c0_40, %c0_41] : memref<1x256x1024xbf16, #tpu.memory_space<vmem>>, vector<1x256x1024xbf16>
    %100 = vector.shape_cast %99 : vector<1x256x1024xbf16> to vector<256x1024xbf16>
    "tpu.trace_start"() <{level = 10 : i32, message = "sf,df->sd"}> : () -> ()
    %cst_42 = arith.constant dense<0.000000e+00> : vector<16x256xf32>
    %101 = tpu.matmul %98, %100, %cst_42 {dimension_numbers = #tpu.dot_dimension_numbers<[1], [1], [0], [0], [0, 0, 1, 0], [], []>} : vector<16x1024xbf16>, vector<256x1024xbf16>, vector<16x256xf32> -> vector<16x256xf32>
    "tpu.trace_stop"() : () -> ()
    %c0_43 = arith.constant 0 : index
    %c0_44 = arith.constant 0 : index
    %c0_45 = arith.constant 0 : index
    %102 = vector.load %arg13[%c0_43, %c0_44, %c0_45] : memref<1x1x256xf32, #tpu.memory_space<vmem>>, vector<1x1x256xf32>
    %103 = vector.shape_cast %102 : vector<1x1x256xf32> to vector<1x256xf32>
    %104 = vector.broadcast %103 : vector<1x256xf32> to vector<16x256xf32>
    %105 = arith.addf %101, %104 : vector<16x256xf32>
    %106 = arith.addf %87, %105 : vector<16x256xf32>
    %c0_46 = arith.constant 0 : index
    %c0_47 = arith.constant 0 : index
    %c0_48 = arith.constant 0 : index
    %107 = vector.load %arg14[%c0_46, %c0_47, %c0_48] : memref<1x1x256xf32, #tpu.memory_space<vmem>>, vector<1x1x256xf32>
    %108 = vector.shape_cast %107 : vector<1x1x256xf32> to vector<1x256xf32>
    %c0_49 = arith.constant 0 : index
    %c0_50 = arith.constant 0 : index
    %c0_51 = arith.constant 0 : index
    %109 = vector.load %arg15[%c0_49, %c0_50, %c0_51] : memref<1x1x256xf32, #tpu.memory_space<vmem>>, vector<1x1x256xf32>
    %110 = vector.shape_cast %109 : vector<1x1x256xf32> to vector<1x256xf32>
    %cst_52 = arith.constant dense<0.000000e+00> : vector<16xf32>
    %111 = vector.multi_reduction <add>, %106, %cst_52 [1] : vector<16x256xf32> to vector<16xf32>
    %112 = vector.shape_cast %111 : vector<16xf32> to vector<16x1xf32>
    %cst_53 = arith.constant 2.560000e+02 : f32
    %113 = vector.broadcast %cst_53 : f32 to vector<16x1xf32>
    %114 = arith.divf %112, %113 : vector<16x1xf32>
    %115 = vector.broadcast %114 : vector<16x1xf32> to vector<16x256xf32>
    %116 = arith.subf %106, %115 : vector<16x256xf32>
    %117 = arith.mulf %116, %116 : vector<16x256xf32>
    %cst_54 = arith.constant dense<0.000000e+00> : vector<16xf32>
    %118 = vector.multi_reduction <add>, %117, %cst_54 [1] : vector<16x256xf32> to vector<16xf32>
    %119 = vector.shape_cast %118 : vector<16xf32> to vector<16x1xf32>
    %cst_55 = arith.constant 2.560000e+02 : f32
    %120 = vector.broadcast %cst_55 : f32 to vector<16x1xf32>
    %121 = arith.divf %119, %120 : vector<16x1xf32>
    %122 = vector.broadcast %114 : vector<16x1xf32> to vector<16x256xf32>
    %123 = arith.subf %106, %122 : vector<16x256xf32>
    %cst_56 = arith.constant 9.99999974E-6 : f32
    %124 = vector.broadcast %cst_56 : f32 to vector<16x1xf32>
    %125 = arith.addf %121, %124 : vector<16x1xf32>
    %126 = math.rsqrt %125 : vector<16x1xf32>
    %127 = vector.broadcast %126 : vector<16x1xf32> to vector<16x256xf32>
    %128 = arith.mulf %123, %127 : vector<16x256xf32>
    %129 = vector.broadcast %108 : vector<1x256xf32> to vector<16x256xf32>
    %130 = arith.mulf %128, %129 : vector<16x256xf32>
    %131 = vector.broadcast %110 : vector<1x256xf32> to vector<16x256xf32>
    %132 = arith.addf %130, %131 : vector<16x256xf32>
    %c0_57 = arith.constant 0 : index
    %c0_58 = arith.constant 0 : index
    %133 = vector.load %arg17[%c0_57, %c0_58] : memref<16x256xf32, #tpu.memory_space<vmem>>, vector<16x256xf32>
    tpu.vector_store %arg17[%c0_57, %c0_58], %132 {strides = array<i32>} : memref<16x256xf32, #tpu.memory_space<vmem>>, vector<16x256xf32>,
    %c2_i32 = arith.constant 2 : i32
    %134 = arith.cmpi eq, %arg1, %c2_i32 : i32
    %135 = arith.extui %134 : i1 to i32
    %c0_i32_59 = arith.constant 0 : i32
    %136 = arith.cmpi ne, %135, %c0_i32_59 : i32
    scf.if %136 {
      %c0_60 = arith.constant 0 : index
      %c0_61 = arith.constant 0 : index
      %c0_62 = arith.constant 0 : index
      %137 = vector.load %arg16[%c0_60, %c0_61, %c0_62] : memref<1x16x256xf32, #tpu.memory_space<vmem>>, vector<1x16x256xf32>
      %138 = vector.shape_cast %137 : vector<1x16x256xf32> to vector<16x256xf32>
      %139 = vector.shape_cast %132 : vector<16x256xf32> to vector<1x16x256xf32>
      tpu.vector_store %arg16[%c0_60, %c0_61, %c0_62], %139 {strides = array<i32>} : memref<1x16x256xf32, #tpu.memory_space<vmem>>, vector<1x16x256xf32>,
    } else {
    }
    return
  }
  func.func @transform_0(%arg0: i32, %arg1: i32) -> (i32, i32, i32) {
    %c0_i32 = arith.constant 0 : i32
    %c0_i32_0 = arith.constant 0 : i32
    %c0_i32_1 = arith.constant 0 : i32
    return %arg0, %c0_i32, %c0_i32_0 : i32, i32, i32
  }
  func.func @transform_1(%arg0: i32, %arg1: i32) -> (i32, i32, i32) {
    %c0_i32 = arith.constant 0 : i32
    %c0_i32_0 = arith.constant 0 : i32
    %c0_i32_1 = arith.constant 0 : i32
    return %arg0, %c0_i32, %c0_i32_0 : i32, i32, i32
  }
  func.func @transform_2(%arg0: i32, %arg1: i32) -> (i32, i32, i32) {
    %c0_i32 = arith.constant 0 : i32
    %c0_i32_0 = arith.constant 0 : i32
    %c0_i32_1 = arith.constant 0 : i32
    return %arg1, %c0_i32, %c0_i32_0 : i32, i32, i32
  }
  func.func @transform_3(%arg0: i32, %arg1: i32) -> (i32, i32, i32) {
    %c0_i32 = arith.constant 0 : i32
    %c0_i32_0 = arith.constant 0 : i32
    %c0_i32_1 = arith.constant 0 : i32
    return %arg1, %c0_i32, %c0_i32_0 : i32, i32, i32
  }
  func.func @transform_4(%arg0: i32, %arg1: i32) -> (i32, i32, i32) {
    %c0_i32 = arith.constant 0 : i32
    %c0_i32_0 = arith.constant 0 : i32
    %c0_i32_1 = arith.constant 0 : i32
    return %arg1, %c0_i32, %c0_i32_0 : i32, i32, i32
  }
  func.func @transform_5(%arg0: i32, %arg1: i32) -> (i32, i32, i32) {
    %c0_i32 = arith.constant 0 : i32
    %c0_i32_0 = arith.constant 0 : i32
    %c0_i32_1 = arith.constant 0 : i32
    return %arg1, %c0_i32, %c0_i32_0 : i32, i32, i32
  }
  func.func @transform_6(%arg0: i32, %arg1: i32) -> (i32, i32, i32) {
    %c0_i32 = arith.constant 0 : i32
    %c0_i32_0 = arith.constant 0 : i32
    %c0_i32_1 = arith.constant 0 : i32
    return %arg1, %c0_i32, %c0_i32_0 : i32, i32, i32
  }
  func.func @transform_7(%arg0: i32, %arg1: i32) -> (i32, i32, i32) {
    %c0_i32 = arith.constant 0 : i32
    %c0_i32_0 = arith.constant 0 : i32
    %c0_i32_1 = arith.constant 0 : i32
    return %arg1, %c0_i32, %c0_i32_0 : i32, i32, i32
  }
  func.func @transform_8(%arg0: i32, %arg1: i32) -> (i32, i32, i32) {
    %c0_i32 = arith.constant 0 : i32
    %c0_i32_0 = arith.constant 0 : i32
    %c0_i32_1 = arith.constant 0 : i32
    return %arg1, %c0_i32, %c0_i32_0 : i32, i32, i32
  }
  func.func @transform_9(%arg0: i32, %arg1: i32) -> (i32, i32, i32) {
    %c0_i32 = arith.constant 0 : i32
    %c0_i32_0 = arith.constant 0 : i32
    %c0_i32_1 = arith.constant 0 : i32
    return %arg1, %c0_i32, %c0_i32_0 : i32, i32, i32
  }
  func.func @transform_10(%arg0: i32, %arg1: i32) -> (i32, i32, i32) {
    %c0_i32 = arith.constant 0 : i32
    %c0_i32_0 = arith.constant 0 : i32
    %c0_i32_1 = arith.constant 0 : i32
    return %arg1, %c0_i32, %c0_i32_0 : i32, i32, i32
  }
  func.func @transform_11(%arg0: i32, %arg1: i32) -> (i32, i32, i32) {
    %c0_i32 = arith.constant 0 : i32
    %c0_i32_0 = arith.constant 0 : i32
    %c0_i32_1 = arith.constant 0 : i32
    return %arg1, %c0_i32, %c0_i32_0 : i32, i32, i32
  }
  func.func @transform_12(%arg0: i32, %arg1: i32) -> (i32, i32, i32) {
    %c0_i32 = arith.constant 0 : i32
    %c0_i32_0 = arith.constant 0 : i32
    %c0_i32_1 = arith.constant 0 : i32
    return %arg1, %c0_i32, %c0_i32_0 : i32, i32, i32
  }
  func.func @transform_13(%arg0: i32, %arg1: i32) -> (i32, i32, i32) {
    %c0_i32 = arith.constant 0 : i32
    %c0_i32_0 = arith.constant 0 : i32
    %c0_i32_1 = arith.constant 0 : i32
    return %arg1, %c0_i32, %c0_i32_0 : i32, i32, i32
  }
  func.func @transform_14(%arg0: i32, %arg1: i32) -> (i32, i32, i32) {
    %c0_i32 = arith.constant 0 : i32
    %c0_i32_0 = arith.constant 0 : i32
    %c0_i32_1 = arith.constant 0 : i32
    return %arg0, %c0_i32, %c0_i32_0 : i32, i32, i32
  }
}

</mosaic_0001>

<llo_original>
// kernel: tpu_custom_call.1
$region0: #{tpu_custom_call.1}
  #allocation0 [shape = 'u32[]', space=smem, size = 0x4, offset = 0x4, fixed_abs, tag = 'smem constant byte address 0x4 - core index']
  #allocation1 [shape = 'u32[72,128]{1,0:T(1,128)}', space=vmem, size = 0x9000, scoped, tag = 'internal scratch']
  #allocation2 [shape = 'f32[16,256]{1,0:T(8,128)}', space=vmem, size = 0x4000, scoped, tag = 'scratch operand']
  %s0 = inlined_call_operand.hbm [shape: f32[2,16,256], index: 0, kind: input, shape index: {}]
  %s1 = inlined_call_operand.hbm [shape: f32[2,1,256], index: 1, kind: input, shape index: {}]
  %s2 = inlined_call_operand.hbm [shape: bf16[3,768,256], index: 2, kind: input, shape index: {}]
  %s3 = inlined_call_operand.hbm [shape: f32[3,1,768], index: 3, kind: input, shape index: {}]
  %s4 = inlined_call_operand.hbm [shape: bf16[3,256,256], index: 4, kind: input, shape index: {}]
  %s5 = inlined_call_operand.hbm [shape: f32[3,1,256], index: 5, kind: input, shape index: {}]
  %s6 = inlined_call_operand.hbm [shape: f32[3,1,256], index: 6, kind: input, shape index: {}]
  %s7 = inlined_call_operand.hbm [shape: f32[3,1,256], index: 7, kind: input, shape index: {}]
  %s8 = inlined_call_operand.hbm [shape: bf16[3,1024,256], index: 8, kind: input, shape index: {}]
  %s9 = inlined_call_operand.hbm [shape: f32[3,1,1024], index: 9, kind: input, shape index: {}]
  %s10 = inlined_call_operand.hbm [shape: bf16[3,256,1024], index: 10, kind: input, shape index: {}]
  %s11 = inlined_call_operand.hbm [shape: f32[3,1,256], index: 11, kind: input, shape index: {}]
  %s12 = inlined_call_operand.hbm [shape: f32[3,1,256], index: 12, kind: input, shape index: {}]
  %s13 = inlined_call_operand.hbm [shape: f32[3,1,256], index: 13, kind: input, shape index: {}]
  %s14 = inlined_call_operand.hbm [shape: f32[2,16,256], index: 14, kind: output, shape index: {}]
  %s15 = sld [smem:[#allocation0]]
  $region153: #{tpu_custom_call.1} parent=0
    _
  %s17 = ssub.s32 1, %s15
  %s18 = scalar_select 0, %s17, %s15
  $region1: #{tpu_custom_call.1} parent=0
    #allocation3 [shape = 'u8[32768]{0}', space=vmem, size = 0x8000, scoped, tag = 'input window, operand 0']
    #allocation4 [shape = 's32[2]{0}', space=sflag, size = 0x8, scoped, tag = 'scoped memory for tpu_custom_call.1']
    #allocation5 [shape = 's32[2]{0}', space=sflag, size = 0x8, scoped, tag = 'scoped memory for tpu_custom_call.1']
    #allocation6 [shape = 'u8[2048]{0}', space=vmem, size = 0x800, scoped, tag = 'input window, operand 1']
    #allocation7 [shape = 's32[2]{0}', space=sflag, size = 0x8, scoped, tag = 'scoped memory for tpu_custom_call.1']
    #allocation8 [shape = 'u8[786432]{0}', space=vmem, size = 0xc0000, scoped, tag = 'input window, operand 2']
    #allocation9 [shape = 'u8[6144]{0}', space=vmem, size = 0x1800, scoped, tag = 'input window, operand 3']
    #allocation10 [shape = 's32[2]{0}', space=sflag, size = 0x8, scoped, tag = 'scoped memory for tpu_custom_call.1']
    #allocation11 [shape = 'u8[262144]{0}', space=vmem, size = 0x40000, scoped, tag = 'input window, operand 4']
    #allocation12 [shape = 'u8[2048]{0}', space=vmem, size = 0x800, scoped, tag = 'input window, operand 5']
    #allocation13 [shape = 's32[2]{0}', space=sflag, size = 0x8, scoped, tag = 'scoped memory for tpu_custom_call.1']
    #allocation14 [shape = 'u8[2048]{0}', space=vmem, size = 0x800, scoped, tag = 'input window, operand 6']
    #allocation15 [shape = 'u8[2048]{0}', space=vmem, size = 0x800, scoped, tag = 'input window, operand 7']
    #allocation16 [shape = 's32[2]{0}', space=sflag, size = 0x8, scoped, tag = 'scoped memory for tpu_custom_call.1']
    #allocation17 [shape = 'u8[1048576]{0}', space=vmem, size = 0x100000, scoped, tag = 'input window, operand 8']
    #allocation18 [shape = 'u8[8192]{0}', space=vmem, size = 0x2000, scoped, tag = 'input window, operand 9']
    #allocation19 [shape = 's32[2]{0}', space=sflag, size = 0x8, scoped, tag = 'scoped memory for tpu_custom_call.1']
    #allocation20 [shape = 'u8[1048576]{0}', space=vmem, size = 0x100000, scoped, tag = 'input window, operand 10']
    #allocation21 [shape = 'u8[2048]{0}', space=vmem, size = 0x800, scoped, tag = 'input window, operand 11']
    #allocation22 [shape = 's32[2]{0}', space=sflag, size = 0x8, scoped, tag = 'scoped memory for tpu_custom_call.1']
    #allocation23 [shape = 'u8[2048]{0}', space=vmem, size = 0x800, scoped, tag = 'input window, operand 12']
    #allocation24 [shape = 'u8[2048]{0}', space=vmem, size = 0x800, scoped, tag = 'input window, operand 13']
    #allocation25 [shape = 's32[2]{0}', space=sflag, size = 0x8, scoped, tag = 'scoped memory for tpu_custom_call.1']
    #allocation26 [shape = 'u8[32768]{0}', space=vmem, size = 0x8000, scoped, tag = 'output window, operand 0']
    %19 = vsyncpa [#allocation4], 0
    %s20 = scalar_lea.sflag [#allocation4], 1
    %21 = vsyncpa %s20, 0
    %22 = vsyncpa [#allocation7], 0
    %s23 = scalar_lea.sflag [#allocation7], 1
    %24 = vsyncpa %s23, 0
    %25 = vsyncpa [#allocation10], 0
    %s26 = scalar_lea.sflag [#allocation10], 1
    %27 = vsyncpa %s26, 0
    %28 = vsyncpa [#allocation13], 0
    %s29 = scalar_lea.sflag [#allocation13], 1
    %30 = vsyncpa %s29, 0
    %31 = vsyncpa [#allocation16], 0
    %s32 = scalar_lea.sflag [#allocation16], 1
    %33 = vsyncpa %s32, 0
    %34 = vsyncpa [#allocation19], 0
    %s35 = scalar_lea.sflag [#allocation19], 1
    %36 = vsyncpa %s35, 0
    %37 = vsyncpa [#allocation22], 0
    %s38 = scalar_lea.sflag [#allocation22], 1
    %39 = vsyncpa %s38, 0
    %40 = vsyncpa [#allocation25], 0
    %s41 = scalar_lea.sflag [#allocation25], 1
    %42 = vsyncpa %s41, 0
    %43 = vsyncpa [#allocation5], 0
    %s44 = scalar_lea.sflag [#allocation5], 1
    %45 = vsyncpa %s44, 0
    loop: start=0, step=1, limit=8
    $region2: #{tpu_custom_call.1} parent=1 // loop_pre_header
      _
    $region3: #{tpu_custom_call.1} parent=1 // loop_header
      %s47 = sphi 0, %s51
      %p48 = scmp.ge.s32.totalorder %s47, 8
      %s54 = sphi 0, %s66
      %s55 = sphi 0, %s62
      %s56 = sphi 0, %s54
      %s57 = sphi 0, %s55
      %s58 = sphi 0, %s56
      %s59 = sphi 0, %s57
      %s69 = sphi 0, %s71
      %s72 = sphi 0, %s69
      %s73 = sphi 0, %s72
      %s89 = sphi 0, %s73
      %s95 = sphi 0, %s97
      %s98 = sphi 0, %s95
      %s99 = sphi 0, %s98
      %s115 = sphi 0, %s99
      %s121 = sphi 0, %s123
      %s124 = sphi 0, %s121
      %s125 = sphi 0, %s124
      %s141 = sphi 0, %s125
      %s147 = sphi 0, %s149
      %s150 = sphi 0, %s147
      %s151 = sphi 0, %s150
      %s167 = sphi 0, %s151
      %s173 = sphi 0, %s175
      %s176 = sphi 0, %s173
      %s177 = sphi 0, %s176
      %s193 = sphi 0, %s177
      %s199 = sphi 0, %s201
      %s202 = sphi 0, %s199
      %s203 = sphi 0, %s202
      %s219 = sphi 0, %s203
      %s225 = sphi 0, %s227
      %s228 = sphi 0, %s225
      %s229 = sphi 0, %s228
      %s245 = sphi 0, %s229
      %s251 = sphi 0, %s253
      %s254 = sphi 0, %s251
      %s255 = sphi 0, %s254
      %s271 = sphi 0, %s255
      %s277 = sphi 0, %s279
      %s280 = sphi 0, %s277
      %s281 = sphi 0, %s280
      %s297 = sphi 0, %s281
      %s303 = sphi 0, %s305
      %s306 = sphi 0, %s303
      %s307 = sphi 0, %s306
      %s323 = sphi 0, %s307
      %s329 = sphi 0, %s331
      %s332 = sphi 0, %s329
      %s333 = sphi 0, %s332
      %s349 = sphi 0, %s333
      %s355 = sphi 0, %s357
      %s358 = sphi 0, %s355
      %s359 = sphi 0, %s358
      %s375 = sphi 0, %s359
      %s381 = sphi 0, %s383
      %s384 = sphi 0, %s381
      %s385 = sphi 0, %s384
      %s401 = sphi 0, %s385
      %s407 = sphi 0, %s409
      %s410 = sphi 0, %s407
      %s411 = sphi 0, %s410
      %s427 = sphi 0, %s411
      %s433 = sphi 0, %s435
      %s436 = sphi 0, %s433
      %s437 = sphi 0, %s436
      %s453 = sphi 0, %s437
    $region4: #{tpu_custom_call.1} parent=1 // loop_header_branch
      %50 = sbr.rel (%p48) target = $region8
    $region5: #{tpu_custom_call.1} parent=1 // loop_body
      %s52 = ssub.s32 %s47, 1
      %s53 = ssub.s32 %s47, 2
      %s60 = sadd.s32 1, %s55
      %p61 = scmp.ge.s32.totalorder %s60, 3
      %s62 = scalar_select %p61, 0, %s60
      %s63 = sadd.s32 1, %s54
      %s64 = scalar_select %p61, %s63, %s54
      %p65 = scmp.ge.s32.totalorder %s64, 2
      %s66 = scalar_select %p65, 0, %s64
      %s67 = ssub.s32 %s54, %s66
      %p68 = scmp.eq.s32.totalorder %s67, 0
      %s70 = sadd.s32 %s69, 1
      %s71 = scalar_select %p68, %s69, %s70
      %p74 = pneg %p68
      %p75 = scmp.eq.s32.totalorder %s47, 5
      %p76 = por %p74, %p75
      %p77 = scmp.ne.s32.totalorder %s69, %s72
      %p78 = scmp.eq.s32.totalorder %s47, 0
      %p79 = por %p77, %p78
      %p80 = scmp.ne.s32.totalorder %s69, %s72
      %p81 = scmp.eq.s32.totalorder %s52, 5
      %p82 = por %p80, %p81
      %p83 = scmp.ne.s32.totalorder %s72, %s73
      %p84 = scmp.eq.s32.totalorder %s52, 0
      %p85 = por %p83, %p84
      %p86 = scmp.ne.s32.totalorder %s72, %s73
      %p87 = scmp.eq.s32.totalorder %s53, 5
      %p88 = por %p86, %p87
      %p90 = scmp.ne.s32.totalorder %s73, %s89
      %p91 = scmp.eq.s32.totalorder %s53, 0
      %p92 = por %p90, %p91
      %s93 = ssub.s32 %s54, %s66
      %p94 = scmp.eq.s32.totalorder %s93, 0
      %s96 = sadd.s32 %s95, 1
      %s97 = scalar_select %p94, %s95, %s96
      %p100 = pneg %p94
      %p101 = scmp.eq.s32.totalorder %s47, 5
      %p102 = por %p100, %p101
      %p103 = scmp.ne.s32.totalorder %s95, %s98
      %p104 = scmp.eq.s32.totalorder %s47, 0
      %p105 = por %p103, %p104
      %p106 = scmp.ne.s32.totalorder %s95, %s98
      %p107 = scmp.eq.s32.totalorder %s52, 5
      %p108 = por %p106, %p107
      %p109 = scmp.ne.s32.totalorder %s98, %s99
      %p110 = scmp.eq.s32.totalorder %s52, 0
      %p111 = por %p109, %p110
      %p112 = scmp.ne.s32.totalorder %s98, %s99
      %p113 = scmp.eq.s32.totalorder %s53, 5
      %p114 = por %p112, %p113
      %p116 = scmp.ne.s32.totalorder %s99, %s115
      %p117 = scmp.eq.s32.totalorder %s53, 0
      %p118 = por %p116, %p117
      %s119 = ssub.s32 %s55, %s62
      %p120 = scmp.eq.s32.totalorder %s119, 0
      %s122 = sadd.s32 %s121, 1
      %s123 = scalar_select %p120, %s121, %s122
      %p126 = pneg %p120
      %p127 = scmp.eq.s32.totalorder %s47, 5
      %p128 = por %p126, %p127
      %p129 = scmp.ne.s32.totalorder %s121, %s124
      %p130 = scmp.eq.s32.totalorder %s47, 0
      %p131 = por %p129, %p130
      %p132 = scmp.ne.s32.totalorder %s121, %s124
      %p133 = scmp.eq.s32.totalorder %s52, 5
      %p134 = por %p132, %p133
      %p135 = scmp.ne.s32.totalorder %s124, %s125
      %p136 = scmp.eq.s32.totalorder %s52, 0
      %p137 = por %p135, %p136
      %p138 = scmp.ne.s32.totalorder %s124, %s125
      %p139 = scmp.eq.s32.totalorder %s53, 5
      %p140 = por %p138, %p139
      %p142 = scmp.ne.s32.totalorder %s125, %s141
      %p143 = scmp.eq.s32.totalorder %s53, 0
      %p144 = por %p142, %p143
      %s145 = ssub.s32 %s55, %s62
      %p146 = scmp.eq.s32.totalorder %s145, 0
      %s148 = sadd.s32 %s147, 1
      %s149 = scalar_select %p146, %s147, %s148
      %p152 = pneg %p146
      %p153 = scmp.eq.s32.totalorder %s47, 5
      %p154 = por %p152, %p153
      %p155 = scmp.ne.s32.totalorder %s147, %s150
      %p156 = scmp.eq.s32.totalorder %s47, 0
      %p157 = por %p155, %p156
      %p158 = scmp.ne.s32.totalorder %s147, %s150
      %p159 = scmp.eq.s32.totalorder %s52, 5
      %p160 = por %p158, %p159
      %p161 = scmp.ne.s32.totalorder %s150, %s151
      %p162 = scmp.eq.s32.totalorder %s52, 0
      %p163 = por %p161, %p162
      %p164 = scmp.ne.s32.totalorder %s150, %s151
      %p165 = scmp.eq.s32.totalorder %s53, 5
      %p166 = por %p164, %p165
      %p168 = scmp.ne.s32.totalorder %s151, %s167
      %p169 = scmp.eq.s32.totalorder %s53, 0
      %p170 = por %p168, %p169
      %s171 = ssub.s32 %s55, %s62
      %p172 = scmp.eq.s32.totalorder %s171, 0
      %s174 = sadd.s32 %s173, 1
      %s175 = scalar_select %p172, %s173, %s174
      %p178 = pneg %p172
      %p179 = scmp.eq.s32.totalorder %s47, 5
      %p180 = por %p178, %p179
      %p181 = scmp.ne.s32.totalorder %s173, %s176
      %p182 = scmp.eq.s32.totalorder %s47, 0
      %p183 = por %p181, %p182
      %p184 = scmp.ne.s32.totalorder %s173, %s176
      %p185 = scmp.eq.s32.totalorder %s52, 5
      %p186 = por %p184, %p185
      %p187 = scmp.ne.s32.totalorder %s176, %s177
      %p188 = scmp.eq.s32.totalorder %s52, 0
      %p189 = por %p187, %p188
      %p190 = scmp.ne.s32.totalorder %s176, %s177
      %p191 = scmp.eq.s32.totalorder %s53, 5
      %p192 = por %p190, %p191
      %p194 = scmp.ne.s32.totalorder %s177, %s193
      %p195 = scmp.eq.s32.totalorder %s53, 0
      %p196 = por %p194, %p195
      %s197 = ssub.s32 %s55, %s62
      %p198 = scmp.eq.s32.totalorder %s197, 0
      %s200 = sadd.s32 %s199, 1
      %s201 = scalar_select %p198, %s199, %s200
      %p204 = pneg %p198
      %p205 = scmp.eq.s32.totalorder %s47, 5
      %p206 = por %p204, %p205
      %p207 = scmp.ne.s32.totalorder %s199, %s202
      %p208 = scmp.eq.s32.totalorder %s47, 0
      %p209 = por %p207, %p208
      %p210 = scmp.ne.s32.totalorder %s199, %s202
      %p211 = scmp.eq.s32.totalorder %s52, 5
      %p212 = por %p210, %p211
      %p213 = scmp.ne.s32.totalorder %s202, %s203
      %p214 = scmp.eq.s32.totalorder %s52, 0
      %p215 = por %p213, %p214
      %p216 = scmp.ne.s32.totalorder %s202, %s203
      %p217 = scmp.eq.s32.totalorder %s53, 5
      %p218 = por %p216, %p217
      %p220 = scmp.ne.s32.totalorder %s203, %s219
      %p221 = scmp.eq.s32.totalorder %s53, 0
      %p222 = por %p220, %p221
      %s223 = ssub.s32 %s55, %s62
      %p224 = scmp.eq.s32.totalorder %s223, 0
      %s226 = sadd.s32 %s225, 1
      %s227 = scalar_select %p224, %s225, %s226
      %p230 = pneg %p224
      %p231 = scmp.eq.s32.totalorder %s47, 5
      %p232 = por %p230, %p231
      %p233 = scmp.ne.s32.totalorder %s225, %s228
      %p234 = scmp.eq.s32.totalorder %s47, 0
      %p235 = por %p233, %p234
      %p236 = scmp.ne.s32.totalorder %s225, %s228
      %p237 = scmp.eq.s32.totalorder %s52, 5
      %p238 = por %p236, %p237
      %p239 = scmp.ne.s32.totalorder %s228, %s229
      %p240 = scmp.eq.s32.totalorder %s52, 0
      %p241 = por %p239, %p240
      %p242 = scmp.ne.s32.totalorder %s228, %s229
      %p243 = scmp.eq.s32.totalorder %s53, 5
      %p244 = por %p242, %p243
      %p246 = scmp.ne.s32.totalorder %s229, %s245
      %p247 = scmp.eq.s32.totalorder %s53, 0
      %p248 = por %p246, %p247
      %s249 = ssub.s32 %s55, %s62
      %p250 = scmp.eq.s32.totalorder %s249, 0
      %s252 = sadd.s32 %s251, 1
      %s253 = scalar_select %p250, %s251, %s252
      %p256 = pneg %p250
      %p257 = scmp.eq.s32.totalorder %s47, 5
      %p258 = por %p256, %p257
      %p259 = scmp.ne.s32.totalorder %s251, %s254
      %p260 = scmp.eq.s32.totalorder %s47, 0
      %p261 = por %p259, %p260
      %p262 = scmp.ne.s32.totalorder %s251, %s254
      %p263 = scmp.eq.s32.totalorder %s52, 5
      %p264 = por %p262, %p263
      %p265 = scmp.ne.s32.totalorder %s254, %s255
      %p266 = scmp.eq.s32.totalorder %s52, 0
      %p267 = por %p265, %p266
      %p268 = scmp.ne.s32.totalorder %s254, %s255
      %p269 = scmp.eq.s32.totalorder %s53, 5
      %p270 = por %p268, %p269
      %p272 = scmp.ne.s32.totalorder %s255, %s271
      %p273 = scmp.eq.s32.totalorder %s53, 0
      %p274 = por %p272, %p273
      %s275 = ssub.s32 %s55, %s62
      %p276 = scmp.eq.s32.totalorder %s275, 0
      %s278 = sadd.s32 %s277, 1
      %s279 = scalar_select %p276, %s277, %s278
      %p282 = pneg %p276
      %p283 = scmp.eq.s32.totalorder %s47, 5
      %p284 = por %p282, %p283
      %p285 = scmp.ne.s32.totalorder %s277, %s280
      %p286 = scmp.eq.s32.totalorder %s47, 0
      %p287 = por %p285, %p286
      %p288 = scmp.ne.s32.totalorder %s277, %s280
      %p289 = scmp.eq.s32.totalorder %s52, 5
      %p290 = por %p288, %p289
      %p291 = scmp.ne.s32.totalorder %s280, %s281
      %p292 = scmp.eq.s32.totalorder %s52, 0
      %p293 = por %p291, %p292
      %p294 = scmp.ne.s32.totalorder %s280, %s281
      %p295 = scmp.eq.s32.totalorder %s53, 5
      %p296 = por %p294, %p295
      %p298 = scmp.ne.s32.totalorder %s281, %s297
      %p299 = scmp.eq.s32.totalorder %s53, 0
      %p300 = por %p298, %p299
      %s301 = ssub.s32 %s55, %s62
      %p302 = scmp.eq.s32.totalorder %s301, 0
      %s304 = sadd.s32 %s303, 1
      %s305 = scalar_select %p302, %s303, %s304
      %p308 = pneg %p302
      %p309 = scmp.eq.s32.totalorder %s47, 5
      %p310 = por %p308, %p309
      %p311 = scmp.ne.s32.totalorder %s303, %s306
      %p312 = scmp.eq.s32.totalorder %s47, 0
      %p313 = por %p311, %p312
      %p314 = scmp.ne.s32.totalorder %s303, %s306
      %p315 = scmp.eq.s32.totalorder %s52, 5
      %p316 = por %p314, %p315
      %p317 = scmp.ne.s32.totalorder %s306, %s307
      %p318 = scmp.eq.s32.totalorder %s52, 0
      %p319 = por %p317, %p318
      %p320 = scmp.ne.s32.totalorder %s306, %s307
      %p321 = scmp.eq.s32.totalorder %s53, 5
      %p322 = por %p320, %p321
      %p324 = scmp.ne.s32.totalorder %s307, %s323
      %p325 = scmp.eq.s32.totalorder %s53, 0
      %p326 = por %p324, %p325
      %s327 = ssub.s32 %s55, %s62
      %p328 = scmp.eq.s32.totalorder %s327, 0
      %s330 = sadd.s32 %s329, 1
      %s331 = scalar_select %p328, %s329, %s330
      %p334 = pneg %p328
      %p335 = scmp.eq.s32.totalorder %s47, 5
      %p336 = por %p334, %p335
      %p337 = scmp.ne.s32.totalorder %s329, %s332
      %p338 = scmp.eq.s32.totalorder %s47, 0
      %p339 = por %p337, %p338
      %p340 = scmp.ne.s32.totalorder %s329, %s332
      %p341 = scmp.eq.s32.totalorder %s52, 5
      %p342 = por %p340, %p341
      %p343 = scmp.ne.s32.totalorder %s332, %s333
      %p344 = scmp.eq.s32.totalorder %s52, 0
      %p345 = por %p343, %p344
      %p346 = scmp.ne.s32.totalorder %s332, %s333
      %p347 = scmp.eq.s32.totalorder %s53, 5
      %p348 = por %p346, %p347
      %p350 = scmp.ne.s32.totalorder %s333, %s349
      %p351 = scmp.eq.s32.totalorder %s53, 0
      %p352 = por %p350, %p351
      %s353 = ssub.s32 %s55, %s62
      %p354 = scmp.eq.s32.totalorder %s353, 0
      %s356 = sadd.s32 %s355, 1
      %s357 = scalar_select %p354, %s355, %s356
      %p360 = pneg %p354
      %p361 = scmp.eq.s32.totalorder %s47, 5
      %p362 = por %p360, %p361
      %p363 = scmp.ne.s32.totalorder %s355, %s358
      %p364 = scmp.eq.s32.totalorder %s47, 0
      %p365 = por %p363, %p364
      %p366 = scmp.ne.s32.totalorder %s355, %s358
      %p367 = scmp.eq.s32.totalorder %s52, 5
      %p368 = por %p366, %p367
      %p369 = scmp.ne.s32.totalorder %s358, %s359
      %p370 = scmp.eq.s32.totalorder %s52, 0
      %p371 = por %p369, %p370
      %p372 = scmp.ne.s32.totalorder %s358, %s359
      %p373 = scmp.eq.s32.totalorder %s53, 5
      %p374 = por %p372, %p373
      %p376 = scmp.ne.s32.totalorder %s359, %s375
      %p377 = scmp.eq.s32.totalorder %s53, 0
      %p378 = por %p376, %p377
      %s379 = ssub.s32 %s55, %s62
      %p380 = scmp.eq.s32.totalorder %s379, 0
      %s382 = sadd.s32 %s381, 1
      %s383 = scalar_select %p380, %s381, %s382
      %p386 = pneg %p380
      %p387 = scmp.eq.s32.totalorder %s47, 5
      %p388 = por %p386, %p387
      %p389 = scmp.ne.s32.totalorder %s381, %s384
      %p390 = scmp.eq.s32.totalorder %s47, 0
      %p391 = por %p389, %p390
      %p392 = scmp.ne.s32.totalorder %s381, %s384
      %p393 = scmp.eq.s32.totalorder %s52, 5
      %p394 = por %p392, %p393
      %p395 = scmp.ne.s32.totalorder %s384, %s385
      %p396 = scmp.eq.s32.totalorder %s52, 0
      %p397 = por %p395, %p396
      %p398 = scmp.ne.s32.totalorder %s384, %s385
      %p399 = scmp.eq.s32.totalorder %s53, 5
      %p400 = por %p398, %p399
      %p402 = scmp.ne.s32.totalorder %s385, %s401
      %p403 = scmp.eq.s32.totalorder %s53, 0
      %p404 = por %p402, %p403
      %s405 = ssub.s32 %s55, %s62
      %p406 = scmp.eq.s32.totalorder %s405, 0
      %s408 = sadd.s32 %s407, 1
      %s409 = scalar_select %p406, %s407, %s408
      %p412 = pneg %p406
      %p413 = scmp.eq.s32.totalorder %s47, 5
      %p414 = por %p412, %p413
      %p415 = scmp.ne.s32.totalorder %s407, %s410
      %p416 = scmp.eq.s32.totalorder %s47, 0
      %p417 = por %p415, %p416
      %p418 = scmp.ne.s32.totalorder %s407, %s410
      %p419 = scmp.eq.s32.totalorder %s52, 5
      %p420 = por %p418, %p419
      %p421 = scmp.ne.s32.totalorder %s410, %s411
      %p422 = scmp.eq.s32.totalorder %s52, 0
      %p423 = por %p421, %p422
      %p424 = scmp.ne.s32.totalorder %s410, %s411
      %p425 = scmp.eq.s32.totalorder %s53, 5
      %p426 = por %p424, %p425
      %p428 = scmp.ne.s32.totalorder %s411, %s427
      %p429 = scmp.eq.s32.totalorder %s53, 0
      %p430 = por %p428, %p429
      %s431 = ssub.s32 %s54, %s66
      %p432 = scmp.eq.s32.totalorder %s431, 0
      %s434 = sadd.s32 %s433, 1
      %s435 = scalar_select %p432, %s433, %s434
      %p438 = pneg %p432
      %p439 = scmp.eq.s32.totalorder %s47, 5
      %p440 = por %p438, %p439
      %p441 = scmp.ne.s32.totalorder %s433, %s436
      %p442 = scmp.eq.s32.totalorder %s47, 0
      %p443 = por %p441, %p442
      %p444 = scmp.ne.s32.totalorder %s433, %s436
      %p445 = scmp.eq.s32.totalorder %s52, 5
      %p446 = por %p444, %p445
      %p447 = scmp.ne.s32.totalorder %s436, %s437
      %p448 = scmp.eq.s32.totalorder %s52, 0
      %p449 = por %p447, %p448
      %p450 = scmp.ne.s32.totalorder %s436, %s437
      %p451 = scmp.eq.s32.totalorder %s53, 5
      %p452 = por %p450, %p451
      %p454 = scmp.ne.s32.totalorder %s437, %s453
      %p455 = scmp.eq.s32.totalorder %s53, 0
      %p456 = por %p454, %p455
      %p457 = scmp.le.s32.totalorder 1, %s47
      %p458 = scmp.lt.s32.totalorder %s47, 7
      %p459 = pnand %p457, %p458
      %p460 = pneg %p459
      // Predicated region
      $region9: #{tpu_custom_call.1} parent=5 // pred_check
        _
      $region10: #{tpu_custom_call.1} parent=5 // pred_check_branch
        %462 = sbr.rel (%p459) target = $region12
      $region11: #{tpu_custom_call.1} parent=5 // pred_region
        %s463 = ssub.s32 %s47, 1
      $region12: #{tpu_custom_call.1} parent=5 // pred_fallthru
        _
      %p464 = scmp.lt.s32.totalorder %s47, 6
      // Predicated region
      $region13: #{tpu_custom_call.1} parent=5 // pred_check
        %p465 = pneg %p464
      $region14: #{tpu_custom_call.1} parent=5 // pred_check_branch
        %467 = sbr.rel (%p465) target = $region16
      $region15: #{tpu_custom_call.1} parent=5 // pred_region
        // Predicated region
        $region17: #{tpu_custom_call.1} parent=15 // pred_check
          %p468 = pneg %p79
        $region18: #{tpu_custom_call.1} parent=15 // pred_check_branch
          %470 = sbr.rel (%p468) target = $region20
        $region19: #{tpu_custom_call.1} parent=15 // pred_region
          %s471 = sand.u32 %s69, 1
          %s472 = scalar_lea.sflag [#allocation4], %s471
          %s473 = sand.u32 %s69, 1
          %s474 = smul.addr %s473, 32
          %s475 = scalar_lea.vmem [#allocation3], %s474
          %477 = vsyncadd %s472, 0
          %s478 = smul.addr %s54, 4
          %s479 = smul.addr %s478, 8
          %s480 = scalar_lea.hbm %s0, %s479
          %s481 = sshll.u32 %s480, 4
          %s482 = int_to_ptr.hbm [resolvable:$true] %s481
          %s483 = sshll.u32 %s475, 4
          %s484 = int_to_ptr.vmem [resolvable:$true] %s483
          %489 = dma.hbm_to_vmem [thread:$0]  %s482, 512, %s484, %s472, 256, 256, 16
        $region20: #{tpu_custom_call.1} parent=15 // pred_fallthru
          _
        // Predicated region
        $region21: #{tpu_custom_call.1} parent=15 // pred_check
          %p490 = pneg %p105
        $region22: #{tpu_custom_call.1} parent=15 // pred_check_branch
          %492 = sbr.rel (%p490) target = $region24
        $region23: #{tpu_custom_call.1} parent=15 // pred_region
          %s493 = sand.u32 %s47, 1
          %s494 = scalar_lea.sflag [#allocation7], %s493
          %s495 = sand.u32 %s95, 1
          %s496 = smul.addr %s495, 2
          %s497 = scalar_lea.vmem [#allocation6], %s496
          %499 = vsyncadd %s494, 0
          %s500 = smul.addr %s54, 2
          %s501 = scalar_lea.hbm %s1, %s500
          %s503 = sshll.u32 %s501, 4
          %s504 = int_to_ptr.hbm [resolvable:$true] %s503
          %s505 = sshll.u32 %s497, 4
          %s506 = int_to_ptr.vmem [resolvable:$true] %s505
          %508 = dma.hbm_to_vmem [thread:$0]  %s504, 32, %s506, %s494
        $region24: #{tpu_custom_call.1} parent=15 // pred_fallthru
          _
        // Predicated region
        $region25: #{tpu_custom_call.1} parent=15 // pred_check
          %p509 = pneg %p131
        $region26: #{tpu_custom_call.1} parent=15 // pred_check_branch
          %511 = sbr.rel (%p509) target = $region28
        $region27: #{tpu_custom_call.1} parent=15 // pred_region
          %s512 = sand.u32 %s47, 1
          %s513 = scalar_lea.sflag [#allocation7], %s512
          %s514 = sand.u32 %s121, 1
          %s515 = smul.addr %s514, 768
          %s516 = scalar_lea.vmem [#allocation8], %s515
          %518 = vsyncadd %s513, 0
          %s519 = smul.addr %s55, 192
          %s520 = smul.addr %s519, 4
          %s521 = scalar_lea.hbm %s2, %s520
          %s522 = sshll.u32 %s521, 4
          %s523 = int_to_ptr.hbm [resolvable:$true] %s522
          %s524 = sshll.u32 %s516, 4
          %s525 = int_to_ptr.vmem [resolvable:$true] %s524
          %530 = dma.hbm_to_vmem [thread:$0]  %s523, 12288, %s525, %s513, 128, 128, 8
        $region28: #{tpu_custom_call.1} parent=15 // pred_fallthru
          _
        // Predicated region
        $region29: #{tpu_custom_call.1} parent=15 // pred_check
          %p531 = pneg %p157
        $region30: #{tpu_custom_call.1} parent=15 // pred_check_branch
          %533 = sbr.rel (%p531) target = $region32
        $region31: #{tpu_custom_call.1} parent=15 // pred_region
          %s534 = sand.u32 %s47, 1
          %s535 = scalar_lea.sflag [#allocation10], %s534
          %s536 = sand.u32 %s147, 1
          %s537 = smul.addr %s536, 6
          %s538 = scalar_lea.vmem [#allocation9], %s537
          %540 = vsyncadd %s535, 0
          %s541 = smul.addr %s55, 6
          %s542 = scalar_lea.hbm %s3, %s541
          %s544 = sshll.u32 %s542, 4
          %s545 = int_to_ptr.hbm [resolvable:$true] %s544
          %s546 = sshll.u32 %s538, 4
          %s547 = int_to_ptr.vmem [resolvable:$true] %s546
          %549 = dma.hbm_to_vmem [thread:$0]  %s545, 96, %s547, %s535
        $region32: #{tpu_custom_call.1} parent=15 // pred_fallthru
          _
        // Predicated region
        $region33: #{tpu_custom_call.1} parent=15 // pred_check
          %p550 = pneg %p183
        $region34: #{tpu_custom_call.1} parent=15 // pred_check_branch
          %552 = sbr.rel (%p550) target = $region36
        $region35: #{tpu_custom_call.1} parent=15 // pred_region
          %s553 = sand.u32 %s47, 1
          %s554 = scalar_lea.sflag [#allocation10], %s553
          %s555 = sand.u32 %s173, 1
          %s556 = smul.addr %s555, 256
          %s557 = scalar_lea.vmem [#allocation11], %s556
          %559 = vsyncadd %s554, 0
          %s560 = smul.addr %s55, 64
          %s561 = smul.addr %s560, 4
          %s562 = scalar_lea.hbm %s4, %s561
          %s563 = sshll.u32 %s562, 4
          %s564 = int_to_ptr.hbm [resolvable:$true] %s563
          %s565 = sshll.u32 %s557, 4
          %s566 = int_to_ptr.vmem [resolvable:$true] %s565
          %571 = dma.hbm_to_vmem [thread:$0]  %s564, 4096, %s566, %s554, 128, 128, 8
        $region36: #{tpu_custom_call.1} parent=15 // pred_fallthru
          _
        // Predicated region
        $region37: #{tpu_custom_call.1} parent=15 // pred_check
          %p572 = pneg %p209
        $region38: #{tpu_custom_call.1} parent=15 // pred_check_branch
          %574 = sbr.rel (%p572) target = $region40
        $region39: #{tpu_custom_call.1} parent=15 // pred_region
          %s575 = sand.u32 %s47, 1
          %s576 = scalar_lea.sflag [#allocation13], %s575
          %s577 = sand.u32 %s199, 1
          %s578 = smul.addr %s577, 2
          %s579 = scalar_lea.vmem [#allocation12], %s578
          %581 = vsyncadd %s576, 0
          %s582 = smul.addr %s55, 2
          %s583 = scalar_lea.hbm %s5, %s582
          %s585 = sshll.u32 %s583, 4
          %s586 = int_to_ptr.hbm [resolvable:$true] %s585
          %s587 = sshll.u32 %s579, 4
          %s588 = int_to_ptr.vmem [resolvable:$true] %s587
          %590 = dma.hbm_to_vmem [thread:$0]  %s586, 32, %s588, %s576
        $region40: #{tpu_custom_call.1} parent=15 // pred_fallthru
          _
        // Predicated region
        $region41: #{tpu_custom_call.1} parent=15 // pred_check
          %p591 = pneg %p235
        $region42: #{tpu_custom_call.1} parent=15 // pred_check_branch
          %593 = sbr.rel (%p591) target = $region44
        $region43: #{tpu_custom_call.1} parent=15 // pred_region
          %s594 = sand.u32 %s47, 1
          %s595 = scalar_lea.sflag [#allocation13], %s594
          %s596 = sand.u32 %s225, 1
          %s597 = smul.addr %s596, 2
          %s598 = scalar_lea.vmem [#allocation14], %s597
          %600 = vsyncadd %s595, 0
          %s601 = smul.addr %s55, 2
          %s602 = scalar_lea.hbm %s6, %s601
          %s604 = sshll.u32 %s602, 4
          %s605 = int_to_ptr.hbm [resolvable:$true] %s604
          %s606 = sshll.u32 %s598, 4
          %s607 = int_to_ptr.vmem [resolvable:$true] %s606
          %609 = dma.hbm_to_vmem [thread:$0]  %s605, 32, %s607, %s595
        $region44: #{tpu_custom_call.1} parent=15 // pred_fallthru
          _
        // Predicated region
        $region45: #{tpu_custom_call.1} parent=15 // pred_check
          %p610 = pneg %p261
        $region46: #{tpu_custom_call.1} parent=15 // pred_check_branch
          %612 = sbr.rel (%p610) target = $region48
        $region47: #{tpu_custom_call.1} parent=15 // pred_region
          %s613 = sand.u32 %s47, 1
          %s614 = scalar_lea.sflag [#allocation16], %s613
          %s615 = sand.u32 %s251, 1
          %s616 = smul.addr %s615, 2
          %s617 = scalar_lea.vmem [#allocation15], %s616
          %619 = vsyncadd %s614, 0
          %s620 = smul.addr %s55, 2
          %s621 = scalar_lea.hbm %s7, %s620
          %s623 = sshll.u32 %s621, 4
          %s624 = int_to_ptr.hbm [resolvable:$true] %s623
          %s625 = sshll.u32 %s617, 4
          %s626 = int_to_ptr.vmem [resolvable:$true] %s625
          %628 = dma.hbm_to_vmem [thread:$0]  %s624, 32, %s626, %s614
        $region48: #{tpu_custom_call.1} parent=15 // pred_fallthru
          _
        // Predicated region
        $region49: #{tpu_custom_call.1} parent=15 // pred_check
          %p629 = pneg %p287
        $region50: #{tpu_custom_call.1} parent=15 // pred_check_branch
          %631 = sbr.rel (%p629) target = $region52
        $region51: #{tpu_custom_call.1} parent=15 // pred_region
          %s632 = sand.u32 %s47, 1
          %s633 = scalar_lea.sflag [#allocation16], %s632
          %s634 = sand.u32 %s277, 1
          %s635 = smul.addr %s634, 1024
          %s636 = scalar_lea.vmem [#allocation17], %s635
          %638 = vsyncadd %s633, 0
          %s639 = smul.addr %s55, 256
          %s640 = smul.addr %s639, 4
          %s641 = scalar_lea.hbm %s8, %s640
          %s642 = sshll.u32 %s641, 4
          %s643 = int_to_ptr.hbm [resolvable:$true] %s642
          %s644 = sshll.u32 %s636, 4
          %s645 = int_to_ptr.vmem [resolvable:$true] %s644
          %650 = dma.hbm_to_vmem [thread:$0]  %s643, 16384, %s645, %s633, 128, 128, 8
        $region52: #{tpu_custom_call.1} parent=15 // pred_fallthru
          _
        // Predicated region
        $region53: #{tpu_custom_call.1} parent=15 // pred_check
          %p651 = pneg %p313
        $region54: #{tpu_custom_call.1} parent=15 // pred_check_branch
          %653 = sbr.rel (%p651) target = $region56
        $region55: #{tpu_custom_call.1} parent=15 // pred_region
          %s654 = sand.u32 %s47, 1
          %s655 = scalar_lea.sflag [#allocation19], %s654
          %s656 = sand.u32 %s303, 1
          %s657 = smul.addr %s656, 8
          %s658 = scalar_lea.vmem [#allocation18], %s657
          %660 = vsyncadd %s655, 0
          %s661 = smul.addr %s55, 8
          %s662 = scalar_lea.hbm %s9, %s661
          %s664 = sshll.u32 %s662, 4
          %s665 = int_to_ptr.hbm [resolvable:$true] %s664
          %s666 = sshll.u32 %s658, 4
          %s667 = int_to_ptr.vmem [resolvable:$true] %s666
          %669 = dma.hbm_to_vmem [thread:$0]  %s665, 128, %s667, %s655
        $region56: #{tpu_custom_call.1} parent=15 // pred_fallthru
          _
        // Predicated region
        $region57: #{tpu_custom_call.1} parent=15 // pred_check
          %p670 = pneg %p339
        $region58: #{tpu_custom_call.1} parent=15 // pred_check_branch
          %672 = sbr.rel (%p670) target = $region60
        $region59: #{tpu_custom_call.1} parent=15 // pred_region
          %s673 = sand.u32 %s47, 1
          %s674 = scalar_lea.sflag [#allocation19], %s673
          %s675 = sand.u32 %s329, 1
          %s676 = smul.addr %s675, 1024
          %s677 = scalar_lea.vmem [#allocation20], %s676
          %679 = vsyncadd %s674, 0
          %s680 = smul.addr %s55, 256
          %s681 = smul.addr %s680, 4
          %s682 = scalar_lea.hbm %s10, %s681
          %s683 = sshll.u32 %s682, 4
          %s684 = int_to_ptr.hbm [resolvable:$true] %s683
          %s685 = sshll.u32 %s677, 4
          %s686 = int_to_ptr.vmem [resolvable:$true] %s685
          %691 = dma.hbm_to_vmem [thread:$0]  %s684, 16384, %s686, %s674, 512, 512, 32
        $region60: #{tpu_custom_call.1} parent=15 // pred_fallthru
          _
        // Predicated region
        $region61: #{tpu_custom_call.1} parent=15 // pred_check
          %p692 = pneg %p365
        $region62: #{tpu_custom_call.1} parent=15 // pred_check_branch
          %694 = sbr.rel (%p692) target = $region64
        $region63: #{tpu_custom_call.1} parent=15 // pred_region
          %s695 = sand.u32 %s47, 1
          %s696 = scalar_lea.sflag [#allocation22], %s695
          %s697 = sand.u32 %s355, 1
          %s698 = smul.addr %s697, 2
          %s699 = scalar_lea.vmem [#allocation21], %s698
          %701 = vsyncadd %s696, 0
          %s702 = smul.addr %s55, 2
          %s703 = scalar_lea.hbm %s11, %s702
          %s705 = sshll.u32 %s703, 4
          %s706 = int_to_ptr.hbm [resolvable:$true] %s705
          %s707 = sshll.u32 %s699, 4
          %s708 = int_to_ptr.vmem [resolvable:$true] %s707
          %710 = dma.hbm_to_vmem [thread:$0]  %s706, 32, %s708, %s696
        $region64: #{tpu_custom_call.1} parent=15 // pred_fallthru
          _
        // Predicated region
        $region65: #{tpu_custom_call.1} parent=15 // pred_check
          %p711 = pneg %p391
        $region66: #{tpu_custom_call.1} parent=15 // pred_check_branch
          %713 = sbr.rel (%p711) target = $region68
        $region67: #{tpu_custom_call.1} parent=15 // pred_region
          %s714 = sand.u32 %s47, 1
          %s715 = scalar_lea.sflag [#allocation22], %s714
          %s716 = sand.u32 %s381, 1
          %s717 = smul.addr %s716, 2
          %s718 = scalar_lea.vmem [#allocation23], %s717
          %720 = vsyncadd %s715, 0
          %s721 = smul.addr %s55, 2
          %s722 = scalar_lea.hbm %s12, %s721
          %s724 = sshll.u32 %s722, 4
          %s725 = int_to_ptr.hbm [resolvable:$true] %s724
          %s726 = sshll.u32 %s718, 4
          %s727 = int_to_ptr.vmem [resolvable:$true] %s726
          %729 = dma.hbm_to_vmem [thread:$0]  %s725, 32, %s727, %s715
        $region68: #{tpu_custom_call.1} parent=15 // pred_fallthru
          _
        // Predicated region
        $region69: #{tpu_custom_call.1} parent=15 // pred_check
          %p730 = pneg %p417
        $region70: #{tpu_custom_call.1} parent=15 // pred_check_branch
          %732 = sbr.rel (%p730) target = $region72
        $region71: #{tpu_custom_call.1} parent=15 // pred_region
          %s733 = sand.u32 %s407, 1
          %s734 = scalar_lea.sflag [#allocation25], %s733
          %s735 = sand.u32 %s407, 1
          %s736 = smul.addr %s735, 2
          %s737 = scalar_lea.vmem [#allocation24], %s736
          %739 = vsyncadd %s734, 0
          %s740 = smul.addr %s55, 2
          %s741 = scalar_lea.hbm %s13, %s740
          %s743 = sshll.u32 %s741, 4
          %s744 = int_to_ptr.hbm [resolvable:$true] %s743
          %s745 = sshll.u32 %s737, 4
          %s746 = int_to_ptr.vmem [resolvable:$true] %s745
          %748 = dma.hbm_to_vmem [thread:$0]  %s744, 32, %s746, %s734
        $region72: #{tpu_custom_call.1} parent=15 // pred_fallthru
          _
      $region16: #{tpu_custom_call.1} parent=5 // pred_fallthru
        _
      %p749 = scmp.le.s32.totalorder 1, %s47
      %p750 = scmp.lt.s32.totalorder %s47, 7
      %p751 = pnand %p749, %p750
      %p752 = pneg %p751
      // Predicated region
      $region73: #{tpu_custom_call.1} parent=5 // pred_check
        _
      $region74: #{tpu_custom_call.1} parent=5 // pred_check_branch
        %754 = sbr.rel (%p751) target = $region76
      $region75: #{tpu_custom_call.1} parent=5 // pred_region
        %s755 = ssub.s32 %s47, 1
        %s756 = sand.u32 %s72, 1
        %s757 = scalar_lea.sflag [#allocation4], %s756
        %s758 = sand.u32 %s72, 1
        %s759 = smul.addr %s758, 32
        %s760 = scalar_lea.vmem [#allocation3], %s759
        // Predicated region
        $region77: #{tpu_custom_call.1} parent=75 // pred_check
          %p761 = pneg %p85
        $region78: #{tpu_custom_call.1} parent=75 // pred_check_branch
          %763 = sbr.rel (%p761) target = $region80
        $region79: #{tpu_custom_call.1} parent=75 // pred_region
          %765 = dma.done %s757, 512
        $region80: #{tpu_custom_call.1} parent=75 // pred_fallthru
          _
        %s766 = sand.u32 %s52, 1
        %s767 = scalar_lea.sflag [#allocation7], %s766
        %s768 = sand.u32 %s98, 1
        %s769 = smul.addr %s768, 2
        %s770 = scalar_lea.vmem [#allocation6], %s769
        // Predicated region
        $region81: #{tpu_custom_call.1} parent=75 // pred_check
          %p771 = pneg %p111
        $region82: #{tpu_custom_call.1} parent=75 // pred_check_branch
          %773 = sbr.rel (%p771) target = $region84
        $region83: #{tpu_custom_call.1} parent=75 // pred_region
          %775 = dma.done %s767, 32
        $region84: #{tpu_custom_call.1} parent=75 // pred_fallthru
          _
        %s776 = sand.u32 %s52, 1
        %s777 = scalar_lea.sflag [#allocation7], %s776
        %s778 = sand.u32 %s124, 1
        %s779 = smul.addr %s778, 768
        %s780 = scalar_lea.vmem [#allocation8], %s779
        // Predicated region
        $region85: #{tpu_custom_call.1} parent=75 // pred_check
          %p781 = pneg %p137
        $region86: #{tpu_custom_call.1} parent=75 // pred_check_branch
          %783 = sbr.rel (%p781) target = $region88
        $region87: #{tpu_custom_call.1} parent=75 // pred_region
          %785 = dma.done %s777, 12288
        $region88: #{tpu_custom_call.1} parent=75 // pred_fallthru
          _
        %s786 = sand.u32 %s52, 1
        %s787 = scalar_lea.sflag [#allocation10], %s786
        %s788 = sand.u32 %s150, 1
        %s789 = smul.addr %s788, 6
        %s790 = scalar_lea.vmem [#allocation9], %s789
        // Predicated region
        $region89: #{tpu_custom_call.1} parent=75 // pred_check
          %p791 = pneg %p163
        $region90: #{tpu_custom_call.1} parent=75 // pred_check_branch
          %793 = sbr.rel (%p791) target = $region92
        $region91: #{tpu_custom_call.1} parent=75 // pred_region
          %795 = dma.done %s787, 96
        $region92: #{tpu_custom_call.1} parent=75 // pred_fallthru
          _
        %s796 = sand.u32 %s52, 1
        %s797 = scalar_lea.sflag [#allocation10], %s796
        %s798 = sand.u32 %s176, 1
        %s799 = smul.addr %s798, 256
        %s800 = scalar_lea.vmem [#allocation11], %s799
        // Predicated region
        $region93: #{tpu_custom_call.1} parent=75 // pred_check
          %p801 = pneg %p189
        $region94: #{tpu_custom_call.1} parent=75 // pred_check_branch
          %803 = sbr.rel (%p801) target = $region96
        $region95: #{tpu_custom_call.1} parent=75 // pred_region
          %805 = dma.done %s797, 4096
        $region96: #{tpu_custom_call.1} parent=75 // pred_fallthru
          _
        %s806 = sand.u32 %s52, 1
        %s807 = scalar_lea.sflag [#allocation13], %s806
        %s808 = sand.u32 %s202, 1
        %s809 = smul.addr %s808, 2
        %s810 = scalar_lea.vmem [#allocation12], %s809
        // Predicated region
        $region97: #{tpu_custom_call.1} parent=75 // pred_check
          %p811 = pneg %p215
        $region98: #{tpu_custom_call.1} parent=75 // pred_check_branch
          %813 = sbr.rel (%p811) target = $region100
        $region99: #{tpu_custom_call.1} parent=75 // pred_region
          %815 = dma.done %s807, 32
        $region100: #{tpu_custom_call.1} parent=75 // pred_fallthru
          _
        %s816 = sand.u32 %s52, 1
        %s817 = scalar_lea.sflag [#allocation13], %s816
        %s818 = sand.u32 %s228, 1
        %s819 = smul.addr %s818, 2
        %s820 = scalar_lea.vmem [#allocation14], %s819
        // Predicated region
        $region101: #{tpu_custom_call.1} parent=75 // pred_check
          %p821 = pneg %p241
        $region102: #{tpu_custom_call.1} parent=75 // pred_check_branch
          %823 = sbr.rel (%p821) target = $region104
        $region103: #{tpu_custom_call.1} parent=75 // pred_region
          %825 = dma.done %s817, 32
        $region104: #{tpu_custom_call.1} parent=75 // pred_fallthru
          _
        %s826 = sand.u32 %s52, 1
        %s827 = scalar_lea.sflag [#allocation16], %s826
        %s828 = sand.u32 %s254, 1
        %s829 = smul.addr %s828, 2
        %s830 = scalar_lea.vmem [#allocation15], %s829
        // Predicated region
        $region105: #{tpu_custom_call.1} parent=75 // pred_check
          %p831 = pneg %p267
        $region106: #{tpu_custom_call.1} parent=75 // pred_check_branch
          %833 = sbr.rel (%p831) target = $region108
        $region107: #{tpu_custom_call.1} parent=75 // pred_region
          %835 = dma.done %s827, 32
        $region108: #{tpu_custom_call.1} parent=75 // pred_fallthru
          _
        %s836 = sand.u32 %s52, 1
        %s837 = scalar_lea.sflag [#allocation16], %s836
        %s838 = sand.u32 %s280, 1
        %s839 = smul.addr %s838, 1024
        %s840 = scalar_lea.vmem [#allocation17], %s839
        // Predicated region
        $region109: #{tpu_custom_call.1} parent=75 // pred_check
          %p841 = pneg %p293
        $region110: #{tpu_custom_call.1} parent=75 // pred_check_branch
          %843 = sbr.rel (%p841) target = $region112
        $region111: #{tpu_custom_call.1} parent=75 // pred_region
          %845 = dma.done %s837, 16384
        $region112: #{tpu_custom_call.1} parent=75 // pred_fallthru
          _
        %s846 = sand.u32 %s52, 1
        %s847 = scalar_lea.sflag [#allocation19], %s846
        %s848 = sand.u32 %s306, 1
        %s849 = smul.addr %s848, 8
        %s850 = scalar_lea.vmem [#allocation18], %s849
        // Predicated region
        $region113: #{tpu_custom_call.1} parent=75 // pred_check
          %p851 = pneg %p319
        $region114: #{tpu_custom_call.1} parent=75 // pred_check_branch
          %853 = sbr.rel (%p851) target = $region116
        $region115: #{tpu_custom_call.1} parent=75 // pred_region
          %855 = dma.done %s847, 128
        $region116: #{tpu_custom_call.1} parent=75 // pred_fallthru
          _
        %s856 = sand.u32 %s52, 1
        %s857 = scalar_lea.sflag [#allocation19], %s856
        %s858 = sand.u32 %s332, 1
        %s859 = smul.addr %s858, 1024
        %s860 = scalar_lea.vmem [#allocation20], %s859
        // Predicated region
        $region117: #{tpu_custom_call.1} parent=75 // pred_check
          %p861 = pneg %p345
        $region118: #{tpu_custom_call.1} parent=75 // pred_check_branch
          %863 = sbr.rel (%p861) target = $region120
        $region119: #{tpu_custom_call.1} parent=75 // pred_region
          %865 = dma.done %s857, 16384
        $region120: #{tpu_custom_call.1} parent=75 // pred_fallthru
          _
        %s866 = sand.u32 %s52, 1
        %s867 = scalar_lea.sflag [#allocation22], %s866
        %s868 = sand.u32 %s358, 1
        %s869 = smul.addr %s868, 2
        %s870 = scalar_lea.vmem [#allocation21], %s869
        // Predicated region
        $region121: #{tpu_custom_call.1} parent=75 // pred_check
          %p871 = pneg %p371
        $region122: #{tpu_custom_call.1} parent=75 // pred_check_branch
          %873 = sbr.rel (%p871) target = $region124
        $region123: #{tpu_custom_call.1} parent=75 // pred_region
          %875 = dma.done %s867, 32
        $region124: #{tpu_custom_call.1} parent=75 // pred_fallthru
          _
        %s876 = sand.u32 %s52, 1
        %s877 = scalar_lea.sflag [#allocation22], %s876
        %s878 = sand.u32 %s384, 1
        %s879 = smul.addr %s878, 2
        %s880 = scalar_lea.vmem [#allocation23], %s879
        // Predicated region
        $region125: #{tpu_custom_call.1} parent=75 // pred_check
          %p881 = pneg %p397
        $region126: #{tpu_custom_call.1} parent=75 // pred_check_branch
          %883 = sbr.rel (%p881) target = $region128
        $region127: #{tpu_custom_call.1} parent=75 // pred_region
          %885 = dma.done %s877, 32
        $region128: #{tpu_custom_call.1} parent=75 // pred_fallthru
          _
        %s886 = sand.u32 %s410, 1
        %s887 = scalar_lea.sflag [#allocation25], %s886
        %s888 = sand.u32 %s410, 1
        %s889 = smul.addr %s888, 2
        %s890 = scalar_lea.vmem [#allocation24], %s889
        // Predicated region
        $region129: #{tpu_custom_call.1} parent=75 // pred_check
          %p891 = pneg %p423
        $region130: #{tpu_custom_call.1} parent=75 // pred_check_branch
          %893 = sbr.rel (%p891) target = $region132
        $region131: #{tpu_custom_call.1} parent=75 // pred_region
          %895 = dma.done %s887, 32
        $region132: #{tpu_custom_call.1} parent=75 // pred_fallthru
          _
        %s896 = sand.u32 %s72, 1
        %s897 = scalar_lea.sflag [#allocation4], %s896
        %s898 = sand.u32 %s72, 1
        %s899 = smul.addr %s898, 32
        %s900 = scalar_lea.vmem [#allocation3], %s899
        %p901 = pneg %p85
        %p902 = pneg %p82
        %s903 = sand.u32 %s52, 1
        %s904 = scalar_lea.sflag [#allocation7], %s903
        %s905 = sand.u32 %s98, 1
        %s906 = smul.addr %s905, 2
        %s907 = scalar_lea.vmem [#allocation6], %s906
        %p908 = pneg %p111
        %p909 = pneg %p108
        %s910 = sand.u32 %s52, 1
        %s911 = scalar_lea.sflag [#allocation7], %s910
        %s912 = sand.u32 %s124, 1
        %s913 = smul.addr %s912, 768
        %s914 = scalar_lea.vmem [#allocation8], %s913
        %p915 = pneg %p137
        %p916 = pneg %p134
        %s917 = sand.u32 %s52, 1
        %s918 = scalar_lea.sflag [#allocation10], %s917
        %s919 = sand.u32 %s150, 1
        %s920 = smul.addr %s919, 6
        %s921 = scalar_lea.vmem [#allocation9], %s920
        %p922 = pneg %p163
        %p923 = pneg %p160
        %s924 = sand.u32 %s52, 1
        %s925 = scalar_lea.sflag [#allocation10], %s924
        %s926 = sand.u32 %s176, 1
        %s927 = smul.addr %s926, 256
        %s928 = scalar_lea.vmem [#allocation11], %s927
        %p929 = pneg %p189
        %p930 = pneg %p186
        %s931 = sand.u32 %s52, 1
        %s932 = scalar_lea.sflag [#allocation13], %s931
        %s933 = sand.u32 %s202, 1
        %s934 = smul.addr %s933, 2
        %s935 = scalar_lea.vmem [#allocation12], %s934
        %p936 = pneg %p215
        %p937 = pneg %p212
        %s938 = sand.u32 %s52, 1
        %s939 = scalar_lea.sflag [#allocation13], %s938
        %s940 = sand.u32 %s228, 1
        %s941 = smul.addr %s940, 2
        %s942 = scalar_lea.vmem [#allocation14], %s941
        %p943 = pneg %p241
        %p944 = pneg %p238
        %s945 = sand.u32 %s52, 1
        %s946 = scalar_lea.sflag [#allocation16], %s945
        %s947 = sand.u32 %s254, 1
        %s948 = smul.addr %s947, 2
        %s949 = scalar_lea.vmem [#allocation15], %s948
        %p950 = pneg %p267
        %p951 = pneg %p264
        %s952 = sand.u32 %s52, 1
        %s953 = scalar_lea.sflag [#allocation16], %s952
        %s954 = sand.u32 %s280, 1
        %s955 = smul.addr %s954, 1024
        %s956 = scalar_lea.vmem [#allocation17], %s955
        %p957 = pneg %p293
        %p958 = pneg %p290
        %s959 = sand.u32 %s52, 1
        %s960 = scalar_lea.sflag [#allocation19], %s959
        %s961 = sand.u32 %s306, 1
        %s962 = smul.addr %s961, 8
        %s963 = scalar_lea.vmem [#allocation18], %s962
        %p964 = pneg %p319
        %p965 = pneg %p316
        %s966 = sand.u32 %s52, 1
        %s967 = scalar_lea.sflag [#allocation19], %s966
        %s968 = sand.u32 %s332, 1
        %s969 = smul.addr %s968, 1024
        %s970 = scalar_lea.vmem [#allocation20], %s969
        %p971 = pneg %p345
        %p972 = pneg %p342
        %s973 = sand.u32 %s52, 1
        %s974 = scalar_lea.sflag [#allocation22], %s973
        %s975 = sand.u32 %s358, 1
        %s976 = smul.addr %s975, 2
        %s977 = scalar_lea.vmem [#allocation21], %s976
        %p978 = pneg %p371
        %p979 = pneg %p368
        %s980 = sand.u32 %s52, 1
        %s981 = scalar_lea.sflag [#allocation22], %s980
        %s982 = sand.u32 %s384, 1
        %s983 = smul.addr %s982, 2
        %s984 = scalar_lea.vmem [#allocation23], %s983
        %p985 = pneg %p397
        %p986 = pneg %p394
        %s987 = sand.u32 %s410, 1
        %s988 = scalar_lea.sflag [#allocation25], %s987
        %s989 = sand.u32 %s410, 1
        %s990 = smul.addr %s989, 2
        %s991 = scalar_lea.vmem [#allocation24], %s990
        %p992 = pneg %p423
        %p993 = pneg %p420
        %p994 = pneg %p449
        %p995 = pneg %p446
        %s996 = sand.u32 %s436, 1
        %s997 = scalar_lea.sflag [#allocation5], %s996
        %s998 = sand.u32 %s436, 1
        %s999 = smul.addr %s998, 32
        %s1000 = scalar_lea.vmem [#allocation26], %s999
        %p1002 = scmp.eq.s32.totalorder %s57, 0
        // Predicated region
        $region133: #{tpu_custom_call.1} parent=75 // pred_check
          %p1003 = pneg %p1002
        $region134: #{tpu_custom_call.1} parent=75 // pred_check_branch
          %1005 = sbr.rel (%p1003) target = $region136
        $region135: #{tpu_custom_call.1} parent=75 // pred_region
          %v1006 = vld [vmem:[%s760] sm:$0xff]
          %v1007 = vld [vmem:[%s760 + $0x8] sm:$0xff]
          %v1008 = vld [vmem:[%s760 + $0x10] sm:$0xff]
          %v1009 = vld [vmem:[%s760 + $0x18] sm:$0xff]
          %v1010 = vld [vmem:[%s770] sm:$0x3]
          %v1012 = vperm.slane %v1010, 0
          %v1013 = vperm.slane %v1010, 1
          %v1016 = vadd.f32 %v1006, %v1012
          %v1017 = vadd.f32 %v1007, %v1013
          %v1018 = vadd.f32 %v1008, %v1012
          %v1019 = vadd.f32 %v1009, %v1013
          %1020 = vst [vmem:[#allocation2] sm:$0xff] %v1016
          %1021 = vst [vmem:[#allocation2 + $0x8] sm:$0xff] %v1017
          %1022 = vst [vmem:[#allocation2 + $0x10] sm:$0xff] %v1018
          %1023 = vst [vmem:[#allocation2 + $0x18] sm:$0xff] %v1019
        $region136: #{tpu_custom_call.1} parent=75 // pred_fallthru
          _
        %v1024 = vld [vmem:[#allocation2] sm:$0xff]
        %v1025 = vld [vmem:[#allocation2 + $0x8] sm:$0xff]
        %v1026 = vld [vmem:[#allocation2 + $0x10] sm:$0xff]
        %v1027 = vld [vmem:[#allocation2 + $0x18] sm:$0xff]
        %v1028 = vpack.c.bf16 %v1026, %v1024
        %v1029 = vpack.c.bf16 %v1027, %v1025
        %v1030 = vld [vmem:[%s780] sm:$0xff]
        %v1031 = vld [vmem:[%s780 + $0x8] sm:$0xff]
        %v1032 = vld [vmem:[%s780 + $0x10] sm:$0xff]
        %v1033 = vld [vmem:[%s780 + $0x18] sm:$0xff]
        %v1034 = vld [vmem:[%s780 + $0x20] sm:$0xff]
        %v1035 = vld [vmem:[%s780 + $0x28] sm:$0xff]
        %v1036 = vld [vmem:[%s780 + $0x30] sm:$0xff]
        %v1037 = vld [vmem:[%s780 + $0x38] sm:$0xff]
        %v1038 = vld [vmem:[%s780 + $0x40] sm:$0xff]
        %v1039 = vld [vmem:[%s780 + $0x48] sm:$0xff]
        %v1040 = vld [vmem:[%s780 + $0x50] sm:$0xff]
        %v1041 = vld [vmem:[%s780 + $0x58] sm:$0xff]
        %v1042 = vld [vmem:[%s780 + $0x60] sm:$0xff]
        %v1043 = vld [vmem:[%s780 + $0x68] sm:$0xff]
        %v1044 = vld [vmem:[%s780 + $0x70] sm:$0xff]
        %v1045 = vld [vmem:[%s780 + $0x78] sm:$0xff]
        %v1046 = vld [vmem:[%s780 + $0x80] sm:$0xff]
        %v1047 = vld [vmem:[%s780 + $0x88] sm:$0xff]
        %v1048 = vld [vmem:[%s780 + $0x90] sm:$0xff]
        %v1049 = vld [vmem:[%s780 + $0x98] sm:$0xff]
        %v1050 = vld [vmem:[%s780 + $0xa0] sm:$0xff]
        %v1051 = vld [vmem:[%s780 + $0xa8] sm:$0xff]
        %v1052 = vld [vmem:[%s780 + $0xb0] sm:$0xff]
        %v1053 = vld [vmem:[%s780 + $0xb8] sm:$0xff]
        %v1054 = vld [vmem:[%s780 + $0xc0] sm:$0xff]
        %v1055 = vld [vmem:[%s780 + $0xc8] sm:$0xff]
        %v1056 = vld [vmem:[%s780 + $0xd0] sm:$0xff]
        %v1057 = vld [vmem:[%s780 + $0xd8] sm:$0xff]
        %v1058 = vld [vmem:[%s780 + $0xe0] sm:$0xff]
        %v1059 = vld [vmem:[%s780 + $0xe8] sm:$0xff]
        %v1060 = vld [vmem:[%s780 + $0xf0] sm:$0xff]
        %v1061 = vld [vmem:[%s780 + $0xf8] sm:$0xff]
        %v1062 = vld [vmem:[%s780 + $0x100] sm:$0xff]
        %v1063 = vld [vmem:[%s780 + $0x108] sm:$0xff]
        %v1064 = vld [vmem:[%s780 + $0x110] sm:$0xff]
        %v1065 = vld [vmem:[%s780 + $0x118] sm:$0xff]
        %v1066 = vld [vmem:[%s780 + $0x120] sm:$0xff]
        %v1067 = vld [vmem:[%s780 + $0x128] sm:$0xff]
        %v1068 = vld [vmem:[%s780 + $0x130] sm:$0xff]
        %v1069 = vld [vmem:[%s780 + $0x138] sm:$0xff]
        %v1070 = vld [vmem:[%s780 + $0x140] sm:$0xff]
        %v1071 = vld [vmem:[%s780 + $0x148] sm:$0xff]
        %v1072 = vld [vmem:[%s780 + $0x150] sm:$0xff]
        %v1073 = vld [vmem:[%s780 + $0x158] sm:$0xff]
        %v1074 = vld [vmem:[%s780 + $0x160] sm:$0xff]
        %v1075 = vld [vmem:[%s780 + $0x168] sm:$0xff]
        %v1076 = vld [vmem:[%s780 + $0x170] sm:$0xff]
        %v1077 = vld [vmem:[%s780 + $0x178] sm:$0xff]
        %v1078 = vld [vmem:[%s780 + $0x180] sm:$0xff]
        %v1079 = vld [vmem:[%s780 + $0x188] sm:$0xff]
        %v1080 = vld [vmem:[%s780 + $0x190] sm:$0xff]
        %v1081 = vld [vmem:[%s780 + $0x198] sm:$0xff]
        %v1082 = vld [vmem:[%s780 + $0x1a0] sm:$0xff]
        %v1083 = vld [vmem:[%s780 + $0x1a8] sm:$0xff]
        %v1084 = vld [vmem:[%s780 + $0x1b0] sm:$0xff]
        %v1085 = vld [vmem:[%s780 + $0x1b8] sm:$0xff]
        %v1086 = vld [vmem:[%s780 + $0x1c0] sm:$0xff]
        %v1087 = vld [vmem:[%s780 + $0x1c8] sm:$0xff]
        %v1088 = vld [vmem:[%s780 + $0x1d0] sm:$0xff]
        %v1089 = vld [vmem:[%s780 + $0x1d8] sm:$0xff]
        %v1090 = vld [vmem:[%s780 + $0x1e0] sm:$0xff]
        %v1091 = vld [vmem:[%s780 + $0x1e8] sm:$0xff]
        %v1092 = vld [vmem:[%s780 + $0x1f0] sm:$0xff]
        %v1093 = vld [vmem:[%s780 + $0x1f8] sm:$0xff]
        %v1094 = vld [vmem:[%s780 + $0x200] sm:$0xff]
        %v1095 = vld [vmem:[%s780 + $0x208] sm:$0xff]
        %v1096 = vld [vmem:[%s780 + $0x210] sm:$0xff]
        %v1097 = vld [vmem:[%s780 + $0x218] sm:$0xff]
        %v1098 = vld [vmem:[%s780 + $0x220] sm:$0xff]
        %v1099 = vld [vmem:[%s780 + $0x228] sm:$0xff]
        %v1100 = vld [vmem:[%s780 + $0x230] sm:$0xff]
        %v1101 = vld [vmem:[%s780 + $0x238] sm:$0xff]
        %v1102 = vld [vmem:[%s780 + $0x240] sm:$0xff]
        %v1103 = vld [vmem:[%s780 + $0x248] sm:$0xff]
        %v1104 = vld [vmem:[%s780 + $0x250] sm:$0xff]
        %v1105 = vld [vmem:[%s780 + $0x258] sm:$0xff]
        %v1106 = vld [vmem:[%s780 + $0x260] sm:$0xff]
        %v1107 = vld [vmem:[%s780 + $0x268] sm:$0xff]
        %v1108 = vld [vmem:[%s780 + $0x270] sm:$0xff]
        %v1109 = vld [vmem:[%s780 + $0x278] sm:$0xff]
        %v1110 = vld [vmem:[%s780 + $0x280] sm:$0xff]
        %v1111 = vld [vmem:[%s780 + $0x288] sm:$0xff]
        %v1112 = vld [vmem:[%s780 + $0x290] sm:$0xff]
        %v1113 = vld [vmem:[%s780 + $0x298] sm:$0xff]
        %v1114 = vld [vmem:[%s780 + $0x2a0] sm:$0xff]
        %v1115 = vld [vmem:[%s780 + $0x2a8] sm:$0xff]
        %v1116 = vld [vmem:[%s780 + $0x2b0] sm:$0xff]
        %v1117 = vld [vmem:[%s780 + $0x2b8] sm:$0xff]
        %v1118 = vld [vmem:[%s780 + $0x2c0] sm:$0xff]
        %v1119 = vld [vmem:[%s780 + $0x2c8] sm:$0xff]
        %v1120 = vld [vmem:[%s780 + $0x2d0] sm:$0xff]
        %v1121 = vld [vmem:[%s780 + $0x2d8] sm:$0xff]
        %v1122 = vld [vmem:[%s780 + $0x2e0] sm:$0xff]
        %v1123 = vld [vmem:[%s780 + $0x2e8] sm:$0xff]
        %v1124 = vld [vmem:[%s780 + $0x2f0] sm:$0xff]
        %v1125 = vld [vmem:[%s780 + $0x2f8] sm:$0xff]
        %v1126 = vld [vmem:[%s790] sm:$0x3f]
        %v1128 = vperm.slane %v1126, 0
        %v1129 = vperm.slane %v1126, 1
        %v1130 = vperm.slane %v1126, 2
        %v1131 = vperm.slane %v1126, 3
        %v1132 = vperm.slane %v1126, 4
        %v1133 = vperm.slane %v1126, 5
        %v1236 = vunpack.c.l.b16 %v1030
        %v1237 = vunpack.c.h.b16 %v1030
        %v1238 = vunpack.c.l.b16 %v1031
        %v1239 = vunpack.c.h.b16 %v1031
        %v1240 = vunpack.c.l.b16 %v1032
        %v1241 = vunpack.c.h.b16 %v1032
        %v1242 = vunpack.c.l.b16 %v1033
        %v1243 = vunpack.c.h.b16 %v1033
        %v1244 = vunpack.c.l.b16 %v1034
        %v1245 = vunpack.c.h.b16 %v1034
        %v1246 = vunpack.c.l.b16 %v1035
        %v1247 = vunpack.c.h.b16 %v1035
        %v1248 = vunpack.c.l.b16 %v1036
        %v1249 = vunpack.c.h.b16 %v1036
        %v1250 = vunpack.c.l.b16 %v1037
        %v1251 = vunpack.c.h.b16 %v1037
        %v1252 = vunpack.c.l.b16 %v1038
        %v1253 = vunpack.c.h.b16 %v1038
        %v1254 = vunpack.c.l.b16 %v1039
        %v1255 = vunpack.c.h.b16 %v1039
        %v1256 = vunpack.c.l.b16 %v1040
        %v1257 = vunpack.c.h.b16 %v1040
        %v1258 = vunpack.c.l.b16 %v1041
        %v1259 = vunpack.c.h.b16 %v1041
        %v1260 = vunpack.c.l.b16 %v1042
        %v1261 = vunpack.c.h.b16 %v1042
        %v1262 = vunpack.c.l.b16 %v1043
        %v1263 = vunpack.c.h.b16 %v1043
        %v1264 = vunpack.c.l.b16 %v1044
        %v1265 = vunpack.c.h.b16 %v1044
        %v1266 = vunpack.c.l.b16 %v1045
        %v1267 = vunpack.c.h.b16 %v1045
        %v1268 = vunpack.c.l.b16 %v1046
        %v1269 = vunpack.c.h.b16 %v1046
        %v1270 = vunpack.c.l.b16 %v1047
        %v1271 = vunpack.c.h.b16 %v1047
        %v1272 = vunpack.c.l.b16 %v1048
        %v1273 = vunpack.c.h.b16 %v1048
        %v1274 = vunpack.c.l.b16 %v1049
        %v1275 = vunpack.c.h.b16 %v1049
        %v1276 = vunpack.c.l.b16 %v1050
        %v1277 = vunpack.c.h.b16 %v1050
        %v1278 = vunpack.c.l.b16 %v1051
        %v1279 = vunpack.c.h.b16 %v1051
        %v1280 = vunpack.c.l.b16 %v1052
        %v1281 = vunpack.c.h.b16 %v1052
        %v1282 = vunpack.c.l.b16 %v1053
        %v1283 = vunpack.c.h.b16 %v1053
        %v1284 = vunpack.c.l.b16 %v1054
        %v1285 = vunpack.c.h.b16 %v1054
        %v1286 = vunpack.c.l.b16 %v1055
        %v1287 = vunpack.c.h.b16 %v1055
        %v1288 = vunpack.c.l.b16 %v1056
        %v1289 = vunpack.c.h.b16 %v1056
        %v1290 = vunpack.c.l.b16 %v1057
        %v1291 = vunpack.c.h.b16 %v1057
        %v1292 = vunpack.c.l.b16 %v1058
        %v1293 = vunpack.c.h.b16 %v1058
        %v1294 = vunpack.c.l.b16 %v1059
        %v1295 = vunpack.c.h.b16 %v1059
        %v1296 = vunpack.c.l.b16 %v1060
        %v1297 = vunpack.c.h.b16 %v1060
        %v1298 = vunpack.c.l.b16 %v1061
        %v1299 = vunpack.c.h.b16 %v1061
        %v1300 = vunpack.c.l.b16 %v1062
        %v1301 = vunpack.c.h.b16 %v1062
        %v1302 = vunpack.c.l.b16 %v1063
        %v1303 = vunpack.c.h.b16 %v1063
        %v1304 = vunpack.c.l.b16 %v1064
        %v1305 = vunpack.c.h.b16 %v1064
        %v1306 = vunpack.c.l.b16 %v1065
        %v1307 = vunpack.c.h.b16 %v1065
        %v1308 = vunpack.c.l.b16 %v1066
        %v1309 = vunpack.c.h.b16 %v1066
        %v1310 = vunpack.c.l.b16 %v1067
        %v1311 = vunpack.c.h.b16 %v1067
        %v1312 = vunpack.c.l.b16 %v1068
        %v1313 = vunpack.c.h.b16 %v1068
        %v1314 = vunpack.c.l.b16 %v1069
        %v1315 = vunpack.c.h.b16 %v1069
        %v1316 = vunpack.c.l.b16 %v1070
        %v1317 = vunpack.c.h.b16 %v1070
        %v1318 = vunpack.c.l.b16 %v1071
        %v1319 = vunpack.c.h.b16 %v1071
        %v1320 = vunpack.c.l.b16 %v1072
        %v1321 = vunpack.c.h.b16 %v1072
        %v1322 = vunpack.c.l.b16 %v1073
        %v1323 = vunpack.c.h.b16 %v1073
        %v1324 = vunpack.c.l.b16 %v1074
        %v1325 = vunpack.c.h.b16 %v1074
        %v1326 = vunpack.c.l.b16 %v1075
        %v1327 = vunpack.c.h.b16 %v1075
        %v1328 = vunpack.c.l.b16 %v1076
        %v1329 = vunpack.c.h.b16 %v1076
        %v1330 = vunpack.c.l.b16 %v1077
        %v1331 = vunpack.c.h.b16 %v1077
        %v1332 = vunpack.c.l.b16 %v1078
        %v1333 = vunpack.c.h.b16 %v1078
        %v1334 = vunpack.c.l.b16 %v1079
        %v1335 = vunpack.c.h.b16 %v1079
        %v1336 = vunpack.c.l.b16 %v1080
        %v1337 = vunpack.c.h.b16 %v1080
        %v1338 = vunpack.c.l.b16 %v1081
        %v1339 = vunpack.c.h.b16 %v1081
        %v1340 = vunpack.c.l.b16 %v1082
        %v1341 = vunpack.c.h.b16 %v1082
        %v1342 = vunpack.c.l.b16 %v1083
        %v1343 = vunpack.c.h.b16 %v1083
        %v1344 = vunpack.c.l.b16 %v1084
        %v1345 = vunpack.c.h.b16 %v1084
        %v1346 = vunpack.c.l.b16 %v1085
        %v1347 = vunpack.c.h.b16 %v1085
        %v1348 = vunpack.c.l.b16 %v1086
        %v1349 = vunpack.c.h.b16 %v1086
        %v1350 = vunpack.c.l.b16 %v1087
        %v1351 = vunpack.c.h.b16 %v1087
        %v1352 = vunpack.c.l.b16 %v1088
        %v1353 = vunpack.c.h.b16 %v1088
        %v1354 = vunpack.c.l.b16 %v1089
        %v1355 = vunpack.c.h.b16 %v1089
        %v1356 = vunpack.c.l.b16 %v1090
        %v1357 = vunpack.c.h.b16 %v1090
        %v1358 = vunpack.c.l.b16 %v1091
        %v1359 = vunpack.c.h.b16 %v1091
        %v1360 = vunpack.c.l.b16 %v1092
        %v1361 = vunpack.c.h.b16 %v1092
        %v1362 = vunpack.c.l.b16 %v1093
        %v1363 = vunpack.c.h.b16 %v1093
        %v1364 = vunpack.c.l.b16 %v1094
        %v1365 = vunpack.c.h.b16 %v1094
        %v1366 = vunpack.c.l.b16 %v1095
        %v1367 = vunpack.c.h.b16 %v1095
        %v1368 = vunpack.c.l.b16 %v1096
        %v1369 = vunpack.c.h.b16 %v1096
        %v1370 = vunpack.c.l.b16 %v1097
        %v1371 = vunpack.c.h.b16 %v1097
        %v1372 = vunpack.c.l.b16 %v1098
        %v1373 = vunpack.c.h.b16 %v1098
        %v1374 = vunpack.c.l.b16 %v1099
        %v1375 = vunpack.c.h.b16 %v1099
        %v1376 = vunpack.c.l.b16 %v1100
        %v1377 = vunpack.c.h.b16 %v1100
        %v1378 = vunpack.c.l.b16 %v1101
        %v1379 = vunpack.c.h.b16 %v1101
        %v1380 = vunpack.c.l.b16 %v1102
        %v1381 = vunpack.c.h.b16 %v1102
        %v1382 = vunpack.c.l.b16 %v1103
        %v1383 = vunpack.c.h.b16 %v1103
        %v1384 = vunpack.c.l.b16 %v1104
        %v1385 = vunpack.c.h.b16 %v1104
        %v1386 = vunpack.c.l.b16 %v1105
        %v1387 = vunpack.c.h.b16 %v1105
        %v1388 = vunpack.c.l.b16 %v1106
        %v1389 = vunpack.c.h.b16 %v1106
        %v1390 = vunpack.c.l.b16 %v1107
        %v1391 = vunpack.c.h.b16 %v1107
        %v1392 = vunpack.c.l.b16 %v1108
        %v1393 = vunpack.c.h.b16 %v1108
        %v1394 = vunpack.c.l.b16 %v1109
        %v1395 = vunpack.c.h.b16 %v1109
        %v1396 = vunpack.c.l.b16 %v1110
        %v1397 = vunpack.c.h.b16 %v1110
        %v1398 = vunpack.c.l.b16 %v1111
        %v1399 = vunpack.c.h.b16 %v1111
        %v1400 = vunpack.c.l.b16 %v1112
        %v1401 = vunpack.c.h.b16 %v1112
        %v1402 = vunpack.c.l.b16 %v1113
        %v1403 = vunpack.c.h.b16 %v1113
        %v1404 = vunpack.c.l.b16 %v1114
        %v1405 = vunpack.c.h.b16 %v1114
        %v1406 = vunpack.c.l.b16 %v1115
        %v1407 = vunpack.c.h.b16 %v1115
        %v1408 = vunpack.c.l.b16 %v1116
        %v1409 = vunpack.c.h.b16 %v1116
        %v1410 = vunpack.c.l.b16 %v1117
        %v1411 = vunpack.c.h.b16 %v1117
        %v1412 = vunpack.c.l.b16 %v1118
        %v1413 = vunpack.c.h.b16 %v1118
        %v1414 = vunpack.c.l.b16 %v1119
        %v1415 = vunpack.c.h.b16 %v1119
        %v1416 = vunpack.c.l.b16 %v1120
        %v1417 = vunpack.c.h.b16 %v1120
        %v1418 = vunpack.c.l.b16 %v1121
        %v1419 = vunpack.c.h.b16 %v1121
        %v1420 = vunpack.c.l.b16 %v1122
        %v1421 = vunpack.c.h.b16 %v1122
        %v1422 = vunpack.c.l.b16 %v1123
        %v1423 = vunpack.c.h.b16 %v1123
        %v1424 = vunpack.c.l.b16 %v1124
        %v1425 = vunpack.c.h.b16 %v1124
        %v1426 = vunpack.c.l.b16 %v1125
        %v1427 = vunpack.c.h.b16 %v1125
        %v1428 = vpack.c.b16 %v1238, %v1236
        %v1429 = vpack.c.b16 %v1239, %v1237
        %v1430 = vpack.c.b16 %v1242, %v1240
        %v1431 = vpack.c.b16 %v1243, %v1241
        %v1432 = vpack.c.b16 %v1246, %v1244
        %v1433 = vpack.c.b16 %v1247, %v1245
        %v1434 = vpack.c.b16 %v1250, %v1248
        %v1435 = vpack.c.b16 %v1251, %v1249
        %v1436 = vpack.c.b16 %v1254, %v1252
        %v1437 = vpack.c.b16 %v1255, %v1253
        %v1438 = vpack.c.b16 %v1258, %v1256
        %v1439 = vpack.c.b16 %v1259, %v1257
        %v1440 = vpack.c.b16 %v1262, %v1260
        %v1441 = vpack.c.b16 %v1263, %v1261
        %v1442 = vpack.c.b16 %v1266, %v1264
        %v1443 = vpack.c.b16 %v1267, %v1265
        %v1444 = vpack.c.b16 %v1270, %v1268
        %v1445 = vpack.c.b16 %v1271, %v1269
        %v1446 = vpack.c.b16 %v1274, %v1272
        %v1447 = vpack.c.b16 %v1275, %v1273
        %v1448 = vpack.c.b16 %v1278, %v1276
        %v1449 = vpack.c.b16 %v1279, %v1277
        %v1450 = vpack.c.b16 %v1282, %v1280
        %v1451 = vpack.c.b16 %v1283, %v1281
        %v1452 = vpack.c.b16 %v1286, %v1284
        %v1453 = vpack.c.b16 %v1287, %v1285
        %v1454 = vpack.c.b16 %v1290, %v1288
        %v1455 = vpack.c.b16 %v1291, %v1289
        %v1456 = vpack.c.b16 %v1294, %v1292
        %v1457 = vpack.c.b16 %v1295, %v1293
        %v1458 = vpack.c.b16 %v1298, %v1296
        %v1459 = vpack.c.b16 %v1299, %v1297
        %v1460 = vpack.c.b16 %v1302, %v1300
        %v1461 = vpack.c.b16 %v1303, %v1301
        %v1462 = vpack.c.b16 %v1306, %v1304
        %v1463 = vpack.c.b16 %v1307, %v1305
        %v1464 = vpack.c.b16 %v1310, %v1308
        %v1465 = vpack.c.b16 %v1311, %v1309
        %v1466 = vpack.c.b16 %v1314, %v1312
        %v1467 = vpack.c.b16 %v1315, %v1313
        %v1468 = vpack.c.b16 %v1318, %v1316
        %v1469 = vpack.c.b16 %v1319, %v1317
        %v1470 = vpack.c.b16 %v1322, %v1320
        %v1471 = vpack.c.b16 %v1323, %v1321
        %v1472 = vpack.c.b16 %v1326, %v1324
        %v1473 = vpack.c.b16 %v1327, %v1325
        %v1474 = vpack.c.b16 %v1330, %v1328
        %v1475 = vpack.c.b16 %v1331, %v1329
        %v1476 = vpack.c.b16 %v1334, %v1332
        %v1477 = vpack.c.b16 %v1335, %v1333
        %v1478 = vpack.c.b16 %v1338, %v1336
        %v1479 = vpack.c.b16 %v1339, %v1337
        %v1480 = vpack.c.b16 %v1342, %v1340
        %v1481 = vpack.c.b16 %v1343, %v1341
        %v1482 = vpack.c.b16 %v1346, %v1344
        %v1483 = vpack.c.b16 %v1347, %v1345
        %v1484 = vpack.c.b16 %v1350, %v1348
        %v1485 = vpack.c.b16 %v1351, %v1349
        %v1486 = vpack.c.b16 %v1354, %v1352
        %v1487 = vpack.c.b16 %v1355, %v1353
        %v1488 = vpack.c.b16 %v1358, %v1356
        %v1489 = vpack.c.b16 %v1359, %v1357
        %v1490 = vpack.c.b16 %v1362, %v1360
        %v1491 = vpack.c.b16 %v1363, %v1361
        %v1492 = vpack.c.b16 %v1366, %v1364
        %v1493 = vpack.c.b16 %v1367, %v1365
        %v1494 = vpack.c.b16 %v1370, %v1368
        %v1495 = vpack.c.b16 %v1371, %v1369
        %v1496 = vpack.c.b16 %v1374, %v1372
        %v1497 = vpack.c.b16 %v1375, %v1373
        %v1498 = vpack.c.b16 %v1378, %v1376
        %v1499 = vpack.c.b16 %v1379, %v1377
        %v1500 = vpack.c.b16 %v1382, %v1380
        %v1501 = vpack.c.b16 %v1383, %v1381
        %v1502 = vpack.c.b16 %v1386, %v1384
        %v1503 = vpack.c.b16 %v1387, %v1385
        %v1504 = vpack.c.b16 %v1390, %v1388
        %v1505 = vpack.c.b16 %v1391, %v1389
        %v1506 = vpack.c.b16 %v1394, %v1392
        %v1507 = vpack.c.b16 %v1395, %v1393
        %v1508 = vpack.c.b16 %v1398, %v1396
        %v1509 = vpack.c.b16 %v1399, %v1397
        %v1510 = vpack.c.b16 %v1402, %v1400
        %v1511 = vpack.c.b16 %v1403, %v1401
        %v1512 = vpack.c.b16 %v1406, %v1404
        %v1513 = vpack.c.b16 %v1407, %v1405
        %v1514 = vpack.c.b16 %v1410, %v1408
        %v1515 = vpack.c.b16 %v1411, %v1409
        %v1516 = vpack.c.b16 %v1414, %v1412
        %v1517 = vpack.c.b16 %v1415, %v1413
        %v1518 = vpack.c.b16 %v1418, %v1416
        %v1519 = vpack.c.b16 %v1419, %v1417
        %v1520 = vpack.c.b16 %v1422, %v1420
        %v1521 = vpack.c.b16 %v1423, %v1421
        %v1522 = vpack.c.b16 %v1426, %v1424
        %v1523 = vpack.c.b16 %v1427, %v1425
        %1620 = vmatpush.bf16.xpose.msra.mxu0 %v1442
        %1621 = vmatpush.bf16.xpose.msra.mxu0 %v1440
        %1622 = vmatpush.bf16.xpose.msra.mxu0 %v1438
        %1623 = vmatpush.bf16.xpose.msra.mxu0 %v1436
        %1624 = vmatpush.bf16.xpose.msra.mxu0 %v1434
        %1625 = vmatpush.bf16.xpose.msra.mxu0 %v1432
        %1626 = vmatpush.bf16.xpose.msra.mxu0 %v1430
        %1627 = vmatpush.bf16.xpose.msra.mxu0 %v1428
        %1628 = vmatmul.bf16.gmra.mxu0 %v1028
        %v1629 = vpop.f32.mrf.mxu0
        %v1630 = vadd.f32 %v1128, %v1629
        %v1631 = vpop.f32.mrf.mxu0
        %v1632 = vadd.f32 %v1128, %v1631
        %1633 = vdwg.mxu0
        %1634 = vmatpush.bf16.xpose.msra.mxu0 %v1443
        %1635 = vmatpush.bf16.xpose.msra.mxu0 %v1441
        %1636 = vmatpush.bf16.xpose.msra.mxu0 %v1439
        %1637 = vmatpush.bf16.xpose.msra.mxu0 %v1437
        %1638 = vmatpush.bf16.xpose.msra.mxu0 %v1435
        %1639 = vmatpush.bf16.xpose.msra.mxu0 %v1433
        %1640 = vmatpush.bf16.xpose.msra.mxu0 %v1431
        %1641 = vmatpush.bf16.xpose.msra.mxu0 %v1429
        %1642 = vmatmul.bf16.gmra.mxu0 %v1029
        %v1643 = vpop.f32.mrf.mxu0
        %v1644 = vadd.f32 %v1630, %v1643
        %v1645 = vpop.f32.mrf.mxu0
        %v1646 = vadd.f32 %v1632, %v1645
        %1647 = vdwg.mxu0
        %1648 = vmatpush.bf16.xpose.msra.mxu0 %v1458
        %1649 = vmatpush.bf16.xpose.msra.mxu0 %v1456
        %1650 = vmatpush.bf16.xpose.msra.mxu0 %v1454
        %1651 = vmatpush.bf16.xpose.msra.mxu0 %v1452
        %1652 = vmatpush.bf16.xpose.msra.mxu0 %v1450
        %1653 = vmatpush.bf16.xpose.msra.mxu0 %v1448
        %1654 = vmatpush.bf16.xpose.msra.mxu0 %v1446
        %1655 = vmatpush.bf16.xpose.msra.mxu0 %v1444
        %1656 = vmatmul.bf16.gmra.mxu0 %v1028
        %v1657 = vpop.f32.mrf.mxu0
        %v1658 = vadd.f32 %v1129, %v1657
        %v1659 = vpop.f32.mrf.mxu0
        %v1660 = vadd.f32 %v1129, %v1659
        %1661 = vdwg.mxu0
        %1662 = vmatpush.bf16.xpose.msra.mxu0 %v1459
        %1663 = vmatpush.bf16.xpose.msra.mxu0 %v1457
        %1664 = vmatpush.bf16.xpose.msra.mxu0 %v1455
        %1665 = vmatpush.bf16.xpose.msra.mxu0 %v1453
        %1666 = vmatpush.bf16.xpose.msra.mxu0 %v1451
        %1667 = vmatpush.bf16.xpose.msra.mxu0 %v1449
        %1668 = vmatpush.bf16.xpose.msra.mxu0 %v1447
        %1669 = vmatpush.bf16.xpose.msra.mxu0 %v1445
        %1670 = vmatmul.bf16.gmra.mxu0 %v1029
        %v1671 = vpop.f32.mrf.mxu0
        %v1672 = vadd.f32 %v1658, %v1671
        %v1673 = vpop.f32.mrf.mxu0
        %v1674 = vadd.f32 %v1660, %v1673
        %1675 = vdwg.mxu0
        %1676 = vmatpush.bf16.xpose.msra.mxu0 %v1474
        %1677 = vmatpush.bf16.xpose.msra.mxu0 %v1472
        %1678 = vmatpush.bf16.xpose.msra.mxu0 %v1470
        %1679 = vmatpush.bf16.xpose.msra.mxu0 %v1468
        %1680 = vmatpush.bf16.xpose.msra.mxu0 %v1466
        %1681 = vmatpush.bf16.xpose.msra.mxu0 %v1464
        %1682 = vmatpush.bf16.xpose.msra.mxu0 %v1462
        %1683 = vmatpush.bf16.xpose.msra.mxu0 %v1460
        %1684 = vmatmul.bf16.gmra.mxu0 %v1028
        %v1685 = vpop.f32.mrf.mxu0
        %v1686 = vadd.f32 %v1130, %v1685
        %v1687 = vpop.f32.mrf.mxu0
        %v1688 = vadd.f32 %v1130, %v1687
        %1689 = vdwg.mxu0
        %1690 = vmatpush.bf16.xpose.msra.mxu0 %v1475
        %1691 = vmatpush.bf16.xpose.msra.mxu0 %v1473
        %1692 = vmatpush.bf16.xpose.msra.mxu0 %v1471
        %1693 = vmatpush.bf16.xpose.msra.mxu0 %v1469
        %1694 = vmatpush.bf16.xpose.msra.mxu0 %v1467
        %1695 = vmatpush.bf16.xpose.msra.mxu0 %v1465
        %1696 = vmatpush.bf16.xpose.msra.mxu0 %v1463
        %1697 = vmatpush.bf16.xpose.msra.mxu0 %v1461
        %1698 = vmatmul.bf16.gmra.mxu0 %v1029
        %v1699 = vpop.f32.mrf.mxu0
        %v1700 = vadd.f32 %v1686, %v1699
        %v1701 = vpop.f32.mrf.mxu0
        %v1702 = vadd.f32 %v1688, %v1701
        %1703 = vdwg.mxu0
        %1704 = vmatpush.bf16.xpose.msra.mxu0 %v1490
        %1705 = vmatpush.bf16.xpose.msra.mxu0 %v1488
        %1706 = vmatpush.bf16.xpose.msra.mxu0 %v1486
        %1707 = vmatpush.bf16.xpose.msra.mxu0 %v1484
        %1708 = vmatpush.bf16.xpose.msra.mxu0 %v1482
        %1709 = vmatpush.bf16.xpose.msra.mxu0 %v1480
        %1710 = vmatpush.bf16.xpose.msra.mxu0 %v1478
        %1711 = vmatpush.bf16.xpose.msra.mxu0 %v1476
        %1712 = vmatmul.bf16.gmra.mxu0 %v1028
        %v1713 = vpop.f32.mrf.mxu0
        %v1714 = vadd.f32 %v1131, %v1713
        %v1715 = vpop.f32.mrf.mxu0
        %v1716 = vadd.f32 %v1131, %v1715
        %1717 = vdwg.mxu0
        %1718 = vmatpush.bf16.xpose.msra.mxu0 %v1491
        %1719 = vmatpush.bf16.xpose.msra.mxu0 %v1489
        %1720 = vmatpush.bf16.xpose.msra.mxu0 %v1487
        %1721 = vmatpush.bf16.xpose.msra.mxu0 %v1485
        %1722 = vmatpush.bf16.xpose.msra.mxu0 %v1483
        %1723 = vmatpush.bf16.xpose.msra.mxu0 %v1481
        %1724 = vmatpush.bf16.xpose.msra.mxu0 %v1479
        %1725 = vmatpush.bf16.xpose.msra.mxu0 %v1477
        %1726 = vmatmul.bf16.gmra.mxu0 %v1029
        %v1727 = vpop.f32.mrf.mxu0
        %v1728 = vadd.f32 %v1714, %v1727
        %v1729 = vpop.f32.mrf.mxu0
        %v1730 = vadd.f32 %v1716, %v1729
        %1731 = vdwg.mxu0
        %1732 = vmatpush.bf16.xpose.msra.mxu0 %v1506
        %1733 = vmatpush.bf16.xpose.msra.mxu0 %v1504
        %1734 = vmatpush.bf16.xpose.msra.mxu0 %v1502
        %1735 = vmatpush.bf16.xpose.msra.mxu0 %v1500
        %1736 = vmatpush.bf16.xpose.msra.mxu0 %v1498
        %1737 = vmatpush.bf16.xpose.msra.mxu0 %v1496
        %1738 = vmatpush.bf16.xpose.msra.mxu0 %v1494
        %1739 = vmatpush.bf16.xpose.msra.mxu0 %v1492
        %1740 = vmatmul.bf16.gmra.mxu0 %v1028
        %v1741 = vpop.f32.mrf.mxu0
        %v1742 = vadd.f32 %v1132, %v1741
        %v1743 = vpop.f32.mrf.mxu0
        %v1744 = vadd.f32 %v1132, %v1743
        %1745 = vdwg.mxu0
        %1746 = vmatpush.bf16.xpose.msra.mxu0 %v1507
        %1747 = vmatpush.bf16.xpose.msra.mxu0 %v1505
        %1748 = vmatpush.bf16.xpose.msra.mxu0 %v1503
        %1749 = vmatpush.bf16.xpose.msra.mxu0 %v1501
        %1750 = vmatpush.bf16.xpose.msra.mxu0 %v1499
        %1751 = vmatpush.bf16.xpose.msra.mxu0 %v1497
        %1752 = vmatpush.bf16.xpose.msra.mxu0 %v1495
        %1753 = vmatpush.bf16.xpose.msra.mxu0 %v1493
        %1754 = vmatmul.bf16.gmra.mxu0 %v1029
        %v1755 = vpop.f32.mrf.mxu0
        %v1756 = vadd.f32 %v1742, %v1755
        %v1757 = vpop.f32.mrf.mxu0
        %v1758 = vadd.f32 %v1744, %v1757
        %1759 = vdwg.mxu0
        %1760 = vmatpush.bf16.xpose.msra.mxu0 %v1522
        %1761 = vmatpush.bf16.xpose.msra.mxu0 %v1520
        %1762 = vmatpush.bf16.xpose.msra.mxu0 %v1518
        %1763 = vmatpush.bf16.xpose.msra.mxu0 %v1516
        %1764 = vmatpush.bf16.xpose.msra.mxu0 %v1514
        %1765 = vmatpush.bf16.xpose.msra.mxu0 %v1512
        %1766 = vmatpush.bf16.xpose.msra.mxu0 %v1510
        %1767 = vmatpush.bf16.xpose.msra.mxu0 %v1508
        %1768 = vmatmul.bf16.gmra.mxu0 %v1028
        %v1769 = vpop.f32.mrf.mxu0
        %v1770 = vadd.f32 %v1133, %v1769
        %v1771 = vpop.f32.mrf.mxu0
        %v1772 = vadd.f32 %v1133, %v1771
        %1773 = vdwg.mxu0
        %1774 = vmatpush.bf16.xpose.msra.mxu0 %v1523
        %1775 = vmatpush.bf16.xpose.msra.mxu0 %v1521
        %1776 = vmatpush.bf16.xpose.msra.mxu0 %v1519
        %1777 = vmatpush.bf16.xpose.msra.mxu0 %v1517
        %1778 = vmatpush.bf16.xpose.msra.mxu0 %v1515
        %1779 = vmatpush.bf16.xpose.msra.mxu0 %v1513
        %1780 = vmatpush.bf16.xpose.msra.mxu0 %v1511
        %1781 = vmatpush.bf16.xpose.msra.mxu0 %v1509
        %1782 = vmatmul.bf16.gmra.mxu0 %v1029
        %v1783 = vpop.f32.mrf.mxu0
        %v1784 = vadd.f32 %v1770, %v1783
        %v1785 = vpop.f32.mrf.mxu0
        %v1786 = vadd.f32 %v1772, %v1785
        %1787 = vdwg.mxu0
        %v1788 = vpack.c.bf16 %v1644, %v1644
        %v1789 = vpack.c.bf16 %v1646, %v1646
        %v1790 = vpack.c.bf16 %v1672, %v1672
        %v1791 = vpack.c.bf16 %v1674, %v1674
        %v1792 = vpack.c.bf16 %v1700, %v1700
        %v1793 = vpack.c.bf16 %v1702, %v1702
        %v1794 = vpack.c.bf16 %v1728, %v1728
        %v1795 = vpack.c.bf16 %v1730, %v1730
        %v1796 = vpack.c.bf16 %v1756, %v1756
        %v1797 = vpack.c.bf16 %v1758, %v1758
        %v1798 = vpack.c.bf16 %v1784, %v1784
        %v1799 = vpack.c.bf16 %v1786, %v1786
        %v1802 = vunpack.c.l.b16 %v1788
        %v1803 = vunpack.c.l.b16 %v1789
        %v1804 = vpack.c.b16 %v1803, %v1802
        %v1808 = vunpack.c.l.b16 %v1792
        %v1809 = vunpack.c.l.b16 %v1793
        %v1810 = vpack.c.b16 %v1809, %v1808
        %1812 = vmatpush.bf16.xpose.msra.mxu0 0
        %1813 = vmatpush.bf16.xpose.msra.mxu0 0
        %1814 = vmatpush.bf16.xpose.msra.mxu0 0
        %1815 = vmatpush.bf16.xpose.msra.mxu0 0
        %1816 = vmatpush.bf16.xpose.msra.mxu0 0
        %1817 = vmatpush.bf16.xpose.msra.mxu0 0
        %1818 = vmatpush.bf16.xpose.msra.mxu0 0
        %1819 = vmatpush.bf16.xpose.msra.mxu0 %v1810
        %1820 = vmatmul.bf16.gmra.mxu0 %v1804
        %v1821 = vpop.f32.mrf.mxu0
        %v1822 = vadd.f32 0.0, %v1821
        %v1823 = vpop.f32.mrf.mxu0
        %v1824 = vadd.f32 0.0, %v1823
        %1825 = vdwg.mxu0
        %v1828 = vunpack.c.l.b16 %v1790
        %v1829 = vunpack.c.l.b16 %v1791
        %v1830 = vpack.c.b16 %v1829, %v1828
        %v1834 = vunpack.c.l.b16 %v1794
        %v1835 = vunpack.c.l.b16 %v1795
        %v1836 = vpack.c.b16 %v1835, %v1834
        %1838 = vmatpush.bf16.xpose.msra.mxu0 0
        %1839 = vmatpush.bf16.xpose.msra.mxu0 0
        %1840 = vmatpush.bf16.xpose.msra.mxu0 0
        %1841 = vmatpush.bf16.xpose.msra.mxu0 0
        %1842 = vmatpush.bf16.xpose.msra.mxu0 0
        %1843 = vmatpush.bf16.xpose.msra.mxu0 0
        %1844 = vmatpush.bf16.xpose.msra.mxu0 0
        %1845 = vmatpush.bf16.xpose.msra.mxu0 %v1836
        %1846 = vmatmul.bf16.gmra.mxu0 %v1830
        %v1847 = vpop.f32.mrf.mxu0
        %v1848 = vadd.f32 0.0, %v1847
        %v1849 = vpop.f32.mrf.mxu0
        %v1850 = vadd.f32 0.0, %v1849
        %1851 = vdwg.mxu0
        %v1852 = vmul.f32 %v1822, 0.088388346
        %v1853 = vmul.f32 %v1824, 0.088388346
        %v1854 = vmul.f32 %v1848, 0.088388346
        %v1855 = vmul.f32 %v1850, 0.088388346
        %vm1856 = vcmask 130048
        %v1857 = vsel %vm1856, %v1852, -inf
        %1858 = vmax.xlane.f32.xlu0 %v1857
        %v1859 = vpop.xlane.xlu0 %1858
        %v1860 = vsel %vm1856, %v1853, -inf
        %1861 = vmax.xlane.f32.xlu0 %v1860
        %v1862 = vpop.xlane.xlu0 %1861
        %v1863 = vsel %vm1856, %v1854, -inf
        %1864 = vmax.xlane.f32.xlu0 %v1863
        %v1865 = vpop.xlane.xlu0 %1864
        %v1866 = vsel %vm1856, %v1855, -inf
        %1867 = vmax.xlane.f32.xlu0 %v1866
        %v1868 = vpop.xlane.xlu0 %1867
        %v1869 = vsub.f32 %v1852, %v1859
        %v1870 = vsub.f32 %v1853, %v1862
        %v1871 = vsub.f32 %v1854, %v1865
        %v1872 = vsub.f32 %v1855, %v1868
        %v1873 = vmul.f32 %v1869, 1.442695
        %v1874 = vpow.pop %v1873
        %v1875 = vmul.f32 %v1870, 1.442695
        %v1876 = vpow.pop %v1875
        %v1877 = vmul.f32 %v1871, 1.442695
        %v1878 = vpow.pop %v1877
        %v1879 = vmul.f32 %v1872, 1.442695
        %v1880 = vpow.pop %v1879
        %v1881 = vsel %vm1856, %v1874, 0.0
        %1882 = vadd.xlane.f32.xlu0 %v1881
        %v1883 = vpop.xlane.xlu0 %1882
        %v1884 = vsel %vm1856, %v1876, 0.0
        %1885 = vadd.xlane.f32.xlu0 %v1884
        %v1886 = vpop.xlane.xlu0 %1885
        %v1887 = vsel %vm1856, %v1878, 0.0
        %1888 = vadd.xlane.f32.xlu0 %v1887
        %v1889 = vpop.xlane.xlu0 %1888
        %v1890 = vsel %vm1856, %v1880, 0.0
        %1891 = vadd.xlane.f32.xlu0 %v1890
        %v1892 = vpop.xlane.xlu0 %1891
        %v1893 = vpack.c.bf16 %v1874, %v1874
        %v1894 = vpack.c.bf16 %v1876, %v1876
        %v1895 = vpack.c.bf16 %v1878, %v1878
        %v1896 = vpack.c.bf16 %v1880, %v1880
        %v1899 = vunpack.c.l.b16 %v1893
        %v1900 = vunpack.c.l.b16 %v1894
        %v1901 = vpack.c.b16 %v1900, %v1899
        %v1904 = vunpack.c.l.b16 %v1796
        %v1905 = vunpack.c.l.b16 %v1797
        %v1906 = vpack.c.b16 %v1905, %v1904
        %v1909 = vsel %vm1856, %v1901, 0
        %1911 = vmatpush.bf16.msra.mxu0 0
        %1912 = vmatpush.bf16.msra.mxu0 0
        %1913 = vmatpush.bf16.msra.mxu0 0
        %1914 = vmatpush.bf16.msra.mxu0 0
        %1915 = vmatpush.bf16.msra.mxu0 0
        %1916 = vmatpush.bf16.msra.mxu0 0
        %1917 = vmatpush.bf16.msra.mxu0 0
        %1918 = vmatpush.bf16.msra.mxu0 %v1906
        %1919 = vmatmul.bf16.gmra.mxu0 %v1909
        %v1920 = vpop.f32.mrf.mxu0
        %v1921 = vadd.f32 0.0, %v1920
        %v1922 = vpop.f32.mrf.mxu0
        %v1923 = vadd.f32 0.0, %v1922
        %1924 = vdwg.mxu0
        %v1927 = vunpack.c.l.b16 %v1895
        %v1928 = vunpack.c.l.b16 %v1896
        %v1929 = vpack.c.b16 %v1928, %v1927
        %v1932 = vunpack.c.l.b16 %v1798
        %v1933 = vunpack.c.l.b16 %v1799
        %v1934 = vpack.c.b16 %v1933, %v1932
        %v1937 = vsel %vm1856, %v1929, 0
        %1939 = vmatpush.bf16.msra.mxu0 0
        %1940 = vmatpush.bf16.msra.mxu0 0
        %1941 = vmatpush.bf16.msra.mxu0 0
        %1942 = vmatpush.bf16.msra.mxu0 0
        %1943 = vmatpush.bf16.msra.mxu0 0
        %1944 = vmatpush.bf16.msra.mxu0 0
        %1945 = vmatpush.bf16.msra.mxu0 0
        %1946 = vmatpush.bf16.msra.mxu0 %v1934
        %1947 = vmatmul.bf16.gmra.mxu0 %v1937
        %v1948 = vpop.f32.mrf.mxu0
        %v1949 = vadd.f32 0.0, %v1948
        %v1950 = vpop.f32.mrf.mxu0
        %v1951 = vadd.f32 0.0, %v1950
        %1952 = vdwg.mxu0
        %v1953 = vrcp.pop %v1883
        %v1954 = vrcp.pop %v1886
        %v1955 = vrcp.pop %v1889
        %v1956 = vrcp.pop %v1892
        %v1957 = vmul.f32 %v1921, %v1953
        %v1958 = vmul.f32 %v1923, %v1954
        %v1959 = vmul.f32 %v1949, %v1955
        %v1960 = vmul.f32 %v1951, %v1956
        %v1961 = vpack.c.bf16 %v1958, %v1957
        %v1962 = vpack.c.bf16 %v1960, %v1959
        %v1963 = vld [vmem:[%s800] sm:$0xff]
        %v1964 = vld [vmem:[%s800 + $0x8] sm:$0xff]
        %v1965 = vld [vmem:[%s800 + $0x10] sm:$0xff]
        %v1966 = vld [vmem:[%s800 + $0x18] sm:$0xff]
        %v1967 = vld [vmem:[%s800 + $0x20] sm:$0xff]
        %v1968 = vld [vmem:[%s800 + $0x28] sm:$0xff]
        %v1969 = vld [vmem:[%s800 + $0x30] sm:$0xff]
        %v1970 = vld [vmem:[%s800 + $0x38] sm:$0xff]
        %v1971 = vld [vmem:[%s800 + $0x40] sm:$0xff]
        %v1972 = vld [vmem:[%s800 + $0x48] sm:$0xff]
        %v1973 = vld [vmem:[%s800 + $0x50] sm:$0xff]
        %v1974 = vld [vmem:[%s800 + $0x58] sm:$0xff]
        %v1975 = vld [vmem:[%s800 + $0x60] sm:$0xff]
        %v1976 = vld [vmem:[%s800 + $0x68] sm:$0xff]
        %v1977 = vld [vmem:[%s800 + $0x70] sm:$0xff]
        %v1978 = vld [vmem:[%s800 + $0x78] sm:$0xff]
        %v1979 = vld [vmem:[%s800 + $0x80] sm:$0xff]
        %v1980 = vld [vmem:[%s800 + $0x88] sm:$0xff]
        %v1981 = vld [vmem:[%s800 + $0x90] sm:$0xff]
        %v1982 = vld [vmem:[%s800 + $0x98] sm:$0xff]
        %v1983 = vld [vmem:[%s800 + $0xa0] sm:$0xff]
        %v1984 = vld [vmem:[%s800 + $0xa8] sm:$0xff]
        %v1985 = vld [vmem:[%s800 + $0xb0] sm:$0xff]
        %v1986 = vld [vmem:[%s800 + $0xb8] sm:$0xff]
        %v1987 = vld [vmem:[%s800 + $0xc0] sm:$0xff]
        %v1988 = vld [vmem:[%s800 + $0xc8] sm:$0xff]
        %v1989 = vld [vmem:[%s800 + $0xd0] sm:$0xff]
        %v1990 = vld [vmem:[%s800 + $0xd8] sm:$0xff]
        %v1991 = vld [vmem:[%s800 + $0xe0] sm:$0xff]
        %v1992 = vld [vmem:[%s800 + $0xe8] sm:$0xff]
        %v1993 = vld [vmem:[%s800 + $0xf0] sm:$0xff]
        %v1994 = vld [vmem:[%s800 + $0xf8] sm:$0xff]
        %v1995 = vld [vmem:[%s810] sm:$0x3]
        %v1997 = vperm.slane %v1995, 0
        %v1998 = vperm.slane %v1995, 1
        %v2033 = vunpack.c.l.b16 %v1963
        %v2034 = vunpack.c.h.b16 %v1963
        %v2035 = vunpack.c.l.b16 %v1964
        %v2036 = vunpack.c.h.b16 %v1964
        %v2037 = vunpack.c.l.b16 %v1965
        %v2038 = vunpack.c.h.b16 %v1965
        %v2039 = vunpack.c.l.b16 %v1966
        %v2040 = vunpack.c.h.b16 %v1966
        %v2041 = vunpack.c.l.b16 %v1967
        %v2042 = vunpack.c.h.b16 %v1967
        %v2043 = vunpack.c.l.b16 %v1968
        %v2044 = vunpack.c.h.b16 %v1968
        %v2045 = vunpack.c.l.b16 %v1969
        %v2046 = vunpack.c.h.b16 %v1969
        %v2047 = vunpack.c.l.b16 %v1970
        %v2048 = vunpack.c.h.b16 %v1970
        %v2049 = vunpack.c.l.b16 %v1971
        %v2050 = vunpack.c.h.b16 %v1971
        %v2051 = vunpack.c.l.b16 %v1972
        %v2052 = vunpack.c.h.b16 %v1972
        %v2053 = vunpack.c.l.b16 %v1973
        %v2054 = vunpack.c.h.b16 %v1973
        %v2055 = vunpack.c.l.b16 %v1974
        %v2056 = vunpack.c.h.b16 %v1974
        %v2057 = vunpack.c.l.b16 %v1975
        %v2058 = vunpack.c.h.b16 %v1975
        %v2059 = vunpack.c.l.b16 %v1976
        %v2060 = vunpack.c.h.b16 %v1976
        %v2061 = vunpack.c.l.b16 %v1977
        %v2062 = vunpack.c.h.b16 %v1977
        %v2063 = vunpack.c.l.b16 %v1978
        %v2064 = vunpack.c.h.b16 %v1978
        %v2065 = vunpack.c.l.b16 %v1979
        %v2066 = vunpack.c.h.b16 %v1979
        %v2067 = vunpack.c.l.b16 %v1980
        %v2068 = vunpack.c.h.b16 %v1980
        %v2069 = vunpack.c.l.b16 %v1981
        %v2070 = vunpack.c.h.b16 %v1981
        %v2071 = vunpack.c.l.b16 %v1982
        %v2072 = vunpack.c.h.b16 %v1982
        %v2073 = vunpack.c.l.b16 %v1983
        %v2074 = vunpack.c.h.b16 %v1983
        %v2075 = vunpack.c.l.b16 %v1984
        %v2076 = vunpack.c.h.b16 %v1984
        %v2077 = vunpack.c.l.b16 %v1985
        %v2078 = vunpack.c.h.b16 %v1985
        %v2079 = vunpack.c.l.b16 %v1986
        %v2080 = vunpack.c.h.b16 %v1986
        %v2081 = vunpack.c.l.b16 %v1987
        %v2082 = vunpack.c.h.b16 %v1987
        %v2083 = vunpack.c.l.b16 %v1988
        %v2084 = vunpack.c.h.b16 %v1988
        %v2085 = vunpack.c.l.b16 %v1989
        %v2086 = vunpack.c.h.b16 %v1989
        %v2087 = vunpack.c.l.b16 %v1990
        %v2088 = vunpack.c.h.b16 %v1990
        %v2089 = vunpack.c.l.b16 %v1991
        %v2090 = vunpack.c.h.b16 %v1991
        %v2091 = vunpack.c.l.b16 %v1992
        %v2092 = vunpack.c.h.b16 %v1992
        %v2093 = vunpack.c.l.b16 %v1993
        %v2094 = vunpack.c.h.b16 %v1993
        %v2095 = vunpack.c.l.b16 %v1994
        %v2096 = vunpack.c.h.b16 %v1994
        %v2097 = vpack.c.b16 %v2035, %v2033
        %v2098 = vpack.c.b16 %v2036, %v2034
        %v2099 = vpack.c.b16 %v2039, %v2037
        %v2100 = vpack.c.b16 %v2040, %v2038
        %v2101 = vpack.c.b16 %v2043, %v2041
        %v2102 = vpack.c.b16 %v2044, %v2042
        %v2103 = vpack.c.b16 %v2047, %v2045
        %v2104 = vpack.c.b16 %v2048, %v2046
        %v2105 = vpack.c.b16 %v2051, %v2049
        %v2106 = vpack.c.b16 %v2052, %v2050
        %v2107 = vpack.c.b16 %v2055, %v2053
        %v2108 = vpack.c.b16 %v2056, %v2054
        %v2109 = vpack.c.b16 %v2059, %v2057
        %v2110 = vpack.c.b16 %v2060, %v2058
        %v2111 = vpack.c.b16 %v2063, %v2061
        %v2112 = vpack.c.b16 %v2064, %v2062
        %v2113 = vpack.c.b16 %v2067, %v2065
        %v2114 = vpack.c.b16 %v2068, %v2066
        %v2115 = vpack.c.b16 %v2071, %v2069
        %v2116 = vpack.c.b16 %v2072, %v2070
        %v2117 = vpack.c.b16 %v2075, %v2073
        %v2118 = vpack.c.b16 %v2076, %v2074
        %v2119 = vpack.c.b16 %v2079, %v2077
        %v2120 = vpack.c.b16 %v2080, %v2078
        %v2121 = vpack.c.b16 %v2083, %v2081
        %v2122 = vpack.c.b16 %v2084, %v2082
        %v2123 = vpack.c.b16 %v2087, %v2085
        %v2124 = vpack.c.b16 %v2088, %v2086
        %v2125 = vpack.c.b16 %v2091, %v2089
        %v2126 = vpack.c.b16 %v2092, %v2090
        %v2127 = vpack.c.b16 %v2095, %v2093
        %v2128 = vpack.c.b16 %v2096, %v2094
        %2161 = vmatpush.bf16.xpose.msra.mxu0 %v2111
        %2162 = vmatpush.bf16.xpose.msra.mxu0 %v2109
        %2163 = vmatpush.bf16.xpose.msra.mxu0 %v2107
        %2164 = vmatpush.bf16.xpose.msra.mxu0 %v2105
        %2165 = vmatpush.bf16.xpose.msra.mxu0 %v2103
        %2166 = vmatpush.bf16.xpose.msra.mxu0 %v2101
        %2167 = vmatpush.bf16.xpose.msra.mxu0 %v2099
        %2168 = vmatpush.bf16.xpose.msra.mxu0 %v2097
        %2169 = vmatmul.bf16.gmra.mxu0 %v1961
        %v2170 = vpop.f32.mrf.mxu0
        %v2171 = vadd.f32 %v1997, %v2170
        %v2172 = vpop.f32.mrf.mxu0
        %v2173 = vadd.f32 %v1997, %v2172
        %2174 = vdwg.mxu0
        %2175 = vmatpush.bf16.xpose.msra.mxu0 %v2112
        %2176 = vmatpush.bf16.xpose.msra.mxu0 %v2110
        %2177 = vmatpush.bf16.xpose.msra.mxu0 %v2108
        %2178 = vmatpush.bf16.xpose.msra.mxu0 %v2106
        %2179 = vmatpush.bf16.xpose.msra.mxu0 %v2104
        %2180 = vmatpush.bf16.xpose.msra.mxu0 %v2102
        %2181 = vmatpush.bf16.xpose.msra.mxu0 %v2100
        %2182 = vmatpush.bf16.xpose.msra.mxu0 %v2098
        %2183 = vmatmul.bf16.gmra.mxu0 %v1962
        %v2184 = vpop.f32.mrf.mxu0
        %v2185 = vadd.f32 %v2171, %v2184
        %v2186 = vpop.f32.mrf.mxu0
        %v2187 = vadd.f32 %v2173, %v2186
        %2188 = vdwg.mxu0
        %2189 = vmatpush.bf16.xpose.msra.mxu0 %v2127
        %2190 = vmatpush.bf16.xpose.msra.mxu0 %v2125
        %2191 = vmatpush.bf16.xpose.msra.mxu0 %v2123
        %2192 = vmatpush.bf16.xpose.msra.mxu0 %v2121
        %2193 = vmatpush.bf16.xpose.msra.mxu0 %v2119
        %2194 = vmatpush.bf16.xpose.msra.mxu0 %v2117
        %2195 = vmatpush.bf16.xpose.msra.mxu0 %v2115
        %2196 = vmatpush.bf16.xpose.msra.mxu0 %v2113
        %2197 = vmatmul.bf16.gmra.mxu0 %v1961
        %v2198 = vpop.f32.mrf.mxu0
        %v2199 = vadd.f32 %v1998, %v2198
        %v2200 = vpop.f32.mrf.mxu0
        %v2201 = vadd.f32 %v1998, %v2200
        %2202 = vdwg.mxu0
        %2203 = vmatpush.bf16.xpose.msra.mxu0 %v2128
        %2204 = vmatpush.bf16.xpose.msra.mxu0 %v2126
        %2205 = vmatpush.bf16.xpose.msra.mxu0 %v2124
        %2206 = vmatpush.bf16.xpose.msra.mxu0 %v2122
        %2207 = vmatpush.bf16.xpose.msra.mxu0 %v2120
        %2208 = vmatpush.bf16.xpose.msra.mxu0 %v2118
        %2209 = vmatpush.bf16.xpose.msra.mxu0 %v2116
        %2210 = vmatpush.bf16.xpose.msra.mxu0 %v2114
        %2211 = vmatmul.bf16.gmra.mxu0 %v1962
        %v2212 = vpop.f32.mrf.mxu0
        %v2213 = vadd.f32 %v2199, %v2212
        %v2214 = vpop.f32.mrf.mxu0
        %v2215 = vadd.f32 %v2201, %v2214
        %2216 = vdwg.mxu0
        %v2217 = vadd.f32 %v1024, %v2185
        %v2218 = vadd.f32 %v1025, %v2213
        %v2219 = vadd.f32 %v1026, %v2187
        %v2220 = vadd.f32 %v1027, %v2215
        %v2221 = vld [vmem:[%s820] sm:$0x3]
        %v2222 = vld [vmem:[%s830] sm:$0x3]
        %v2223 = vadd.f32 %v2217, %v2218
        %2224 = vadd.xlane.f32.xlu0 %v2223
        %v2225 = vpop.xlane.xlu0 %2224
        %v2226 = vadd.f32 %v2219, %v2220
        %2227 = vadd.xlane.f32.xlu0 %v2226
        %v2228 = vpop.xlane.xlu0 %2227
        %v2229 = vrcp.pop 256.0
        %v2230 = vmul.f32 256.0, %v2229
        %v2231 = vsub.f32 1.0, %v2230
        %v2232 = vmul.f32 %v2229, %v2231
        %v2233 = vadd.f32 %v2229, %v2232
        %vm2234 = vweird.f32 %v2229
        %v2235 = vsel %vm2234, %v2229, %v2233
        %v2236 = vmul.f32 %v2225, %v2235
        %v2237 = vmul.f32 %v2228, %v2235
        %v2238 = vsub.f32 %v2217, %v2236
        %v2239 = vsub.f32 %v2218, %v2236
        %v2240 = vsub.f32 %v2219, %v2237
        %v2241 = vsub.f32 %v2220, %v2237
        %v2242 = vmul.f32 %v2238, %v2238
        %v2243 = vmul.f32 %v2239, %v2239
        %v2244 = vmul.f32 %v2240, %v2240
        %v2245 = vmul.f32 %v2241, %v2241
        %v2246 = vadd.f32 %v2242, %v2243
        %2247 = vadd.xlane.f32.xlu0 %v2246
        %v2248 = vpop.xlane.xlu0 %2247
        %v2249 = vadd.f32 %v2244, %v2245
        %2250 = vadd.xlane.f32.xlu0 %v2249
        %v2251 = vpop.xlane.xlu0 %2250
        %v2252 = vmul.f32 %v2248, %v2235
        %v2253 = vmul.f32 %v2251, %v2235
        %v2254 = vadd.f32 %v2252, 1e-05
        %v2255 = vadd.f32 %v2253, 1e-05
        %v2256 = vrsqrt.pop %v2254
        %v2257 = vmul.f32 %v2256, %v2254
        %v2258 = vmul.f32 %v2257, %v2256
        %v2259 = vmul.f32 0.5, %v2258
        %v2260 = vsub.f32 1.5, %v2259
        %v2261 = vmul.f32 %v2256, %v2260
        %vm2262 = vweird.f32 %v2254
        %vm2263 = vweird.f32 %v2256
        %vm2264 = vmor %vm2262, %vm2263
        %v2265 = vsel %vm2264, %v2256, %v2261
        %v2266 = vrsqrt.pop %v2255
        %v2267 = vmul.f32 %v2266, %v2255
        %v2268 = vmul.f32 %v2267, %v2266
        %v2269 = vmul.f32 0.5, %v2268
        %v2270 = vsub.f32 1.5, %v2269
        %v2271 = vmul.f32 %v2266, %v2270
        %vm2272 = vweird.f32 %v2255
        %vm2273 = vweird.f32 %v2266
        %vm2274 = vmor %vm2272, %vm2273
        %v2275 = vsel %vm2274, %v2266, %v2271
        %v2276 = vmul.f32 %v2238, %v2265
        %v2277 = vmul.f32 %v2239, %v2265
        %v2278 = vmul.f32 %v2240, %v2275
        %v2279 = vmul.f32 %v2241, %v2275
        %v2281 = vperm.slane %v2221, 0
        %v2282 = vperm.slane %v2221, 1
        %v2285 = vmul.f32 %v2276, %v2281
        %v2286 = vmul.f32 %v2277, %v2282
        %v2287 = vmul.f32 %v2278, %v2281
        %v2288 = vmul.f32 %v2279, %v2282
        %v2290 = vperm.slane %v2222, 0
        %v2291 = vperm.slane %v2222, 1
        %v2294 = vadd.f32 %v2285, %v2290
        %v2295 = vadd.f32 %v2286, %v2291
        %v2296 = vadd.f32 %v2287, %v2290
        %v2297 = vadd.f32 %v2288, %v2291
        %v2298 = vpack.c.bf16 %v2296, %v2294
        %v2299 = vpack.c.bf16 %v2297, %v2295
        %v2300 = vld [vmem:[%s840] sm:$0xff]
        %v2301 = vld [vmem:[%s840 + $0x8] sm:$0xff]
        %v2302 = vld [vmem:[%s840 + $0x10] sm:$0xff]
        %v2303 = vld [vmem:[%s840 + $0x18] sm:$0xff]
        %v2304 = vld [vmem:[%s840 + $0x20] sm:$0xff]
        %v2305 = vld [vmem:[%s840 + $0x28] sm:$0xff]
        %v2306 = vld [vmem:[%s840 + $0x30] sm:$0xff]
        %v2307 = vld [vmem:[%s840 + $0x38] sm:$0xff]
        %v2308 = vld [vmem:[%s840 + $0x40] sm:$0xff]
        %v2309 = vld [vmem:[%s840 + $0x48] sm:$0xff]
        %v2310 = vld [vmem:[%s840 + $0x50] sm:$0xff]
        %v2311 = vld [vmem:[%s840 + $0x58] sm:$0xff]
        %v2312 = vld [vmem:[%s840 + $0x60] sm:$0xff]
        %v2313 = vld [vmem:[%s840 + $0x68] sm:$0xff]
        %v2314 = vld [vmem:[%s840 + $0x70] sm:$0xff]
        %v2315 = vld [vmem:[%s840 + $0x78] sm:$0xff]
        %v2316 = vld [vmem:[%s840 + $0x80] sm:$0xff]
        %v2317 = vld [vmem:[%s840 + $0x88] sm:$0xff]
        %v2318 = vld [vmem:[%s840 + $0x90] sm:$0xff]
        %v2319 = vld [vmem:[%s840 + $0x98] sm:$0xff]
        %v2320 = vld [vmem:[%s840 + $0xa0] sm:$0xff]
        %v2321 = vld [vmem:[%s840 + $0xa8] sm:$0xff]
        %v2322 = vld [vmem:[%s840 + $0xb0] sm:$0xff]
        %v2323 = vld [vmem:[%s840 + $0xb8] sm:$0xff]
        %v2324 = vld [vmem:[%s840 + $0xc0] sm:$0xff]
        %v2325 = vld [vmem:[%s840 + $0xc8] sm:$0xff]
        %v2326 = vld [vmem:[%s840 + $0xd0] sm:$0xff]
        %v2327 = vld [vmem:[%s840 + $0xd8] sm:$0xff]
        %v2328 = vld [vmem:[%s840 + $0xe0] sm:$0xff]
        %v2329 = vld [vmem:[%s840 + $0xe8] sm:$0xff]
        %v2330 = vld [vmem:[%s840 + $0xf0] sm:$0xff]
        %v2331 = vld [vmem:[%s840 + $0xf8] sm:$0xff]
        %v2332 = vld [vmem:[%s840 + $0x100] sm:$0xff]
        %v2333 = vld [vmem:[%s840 + $0x108] sm:$0xff]
        %v2334 = vld [vmem:[%s840 + $0x110] sm:$0xff]
        %v2335 = vld [vmem:[%s840 + $0x118] sm:$0xff]
        %v2336 = vld [vmem:[%s840 + $0x120] sm:$0xff]
        %v2337 = vld [vmem:[%s840 + $0x128] sm:$0xff]
        %v2338 = vld [vmem:[%s840 + $0x130] sm:$0xff]
        %v2339 = vld [vmem:[%s840 + $0x138] sm:$0xff]
        %v2340 = vld [vmem:[%s840 + $0x140] sm:$0xff]
        %v2341 = vld [vmem:[%s840 + $0x148] sm:$0xff]
        %v2342 = vld [vmem:[%s840 + $0x150] sm:$0xff]
        %v2343 = vld [vmem:[%s840 + $0x158] sm:$0xff]
        %v2344 = vld [vmem:[%s840 + $0x160] sm:$0xff]
        %v2345 = vld [vmem:[%s840 + $0x168] sm:$0xff]
        %v2346 = vld [vmem:[%s840 + $0x170] sm:$0xff]
        %v2347 = vld [vmem:[%s840 + $0x178] sm:$0xff]
        %v2348 = vld [vmem:[%s840 + $0x180] sm:$0xff]
        %v2349 = vld [vmem:[%s840 + $0x188] sm:$0xff]
        %v2350 = vld [vmem:[%s840 + $0x190] sm:$0xff]
        %v2351 = vld [vmem:[%s840 + $0x198] sm:$0xff]
        %v2352 = vld [vmem:[%s840 + $0x1a0] sm:$0xff]
        %v2353 = vld [vmem:[%s840 + $0x1a8] sm:$0xff]
        %v2354 = vld [vmem:[%s840 + $0x1b0] sm:$0xff]
        %v2355 = vld [vmem:[%s840 + $0x1b8] sm:$0xff]
        %v2356 = vld [vmem:[%s840 + $0x1c0] sm:$0xff]
        %v2357 = vld [vmem:[%s840 + $0x1c8] sm:$0xff]
        %v2358 = vld [vmem:[%s840 + $0x1d0] sm:$0xff]
        %v2359 = vld [vmem:[%s840 + $0x1d8] sm:$0xff]
        %v2360 = vld [vmem:[%s840 + $0x1e0] sm:$0xff]
        %v2361 = vld [vmem:[%s840 + $0x1e8] sm:$0xff]
        %v2362 = vld [vmem:[%s840 + $0x1f0] sm:$0xff]
        %v2363 = vld [vmem:[%s840 + $0x1f8] sm:$0xff]
        %v2364 = vld [vmem:[%s840 + $0x200] sm:$0xff]
        %v2365 = vld [vmem:[%s840 + $0x208] sm:$0xff]
        %v2366 = vld [vmem:[%s840 + $0x210] sm:$0xff]
        %v2367 = vld [vmem:[%s840 + $0x218] sm:$0xff]
        %v2368 = vld [vmem:[%s840 + $0x220] sm:$0xff]
        %v2369 = vld [vmem:[%s840 + $0x228] sm:$0xff]
        %v2370 = vld [vmem:[%s840 + $0x230] sm:$0xff]
        %v2371 = vld [vmem:[%s840 + $0x238] sm:$0xff]
        %v2372 = vld [vmem:[%s840 + $0x240] sm:$0xff]
        %v2373 = vld [vmem:[%s840 + $0x248] sm:$0xff]
        %v2374 = vld [vmem:[%s840 + $0x250] sm:$0xff]
        %v2375 = vld [vmem:[%s840 + $0x258] sm:$0xff]
        %v2376 = vld [vmem:[%s840 + $0x260] sm:$0xff]
        %v2377 = vld [vmem:[%s840 + $0x268] sm:$0xff]
        %v2378 = vld [vmem:[%s840 + $0x270] sm:$0xff]
        %v2379 = vld [vmem:[%s840 + $0x278] sm:$0xff]
        %v2380 = vld [vmem:[%s840 + $0x280] sm:$0xff]
        %v2381 = vld [vmem:[%s840 + $0x288] sm:$0xff]
        %v2382 = vld [vmem:[%s840 + $0x290] sm:$0xff]
        %v2383 = vld [vmem:[%s840 + $0x298] sm:$0xff]
        %v2384 = vld [vmem:[%s840 + $0x2a0] sm:$0xff]
        %v2385 = vld [vmem:[%s840 + $0x2a8] sm:$0xff]
        %v2386 = vld [vmem:[%s840 + $0x2b0] sm:$0xff]
        %v2387 = vld [vmem:[%s840 + $0x2b8] sm:$0xff]
        %v2388 = vld [vmem:[%s840 + $0x2c0] sm:$0xff]
        %v2389 = vld [vmem:[%s840 + $0x2c8] sm:$0xff]
        %v2390 = vld [vmem:[%s840 + $0x2d0] sm:$0xff]
        %v2391 = vld [vmem:[%s840 + $0x2d8] sm:$0xff]
        %v2392 = vld [vmem:[%s840 + $0x2e0] sm:$0xff]
        %v2393 = vld [vmem:[%s840 + $0x2e8] sm:$0xff]
        %v2394 = vld [vmem:[%s840 + $0x2f0] sm:$0xff]
        %v2395 = vld [vmem:[%s840 + $0x2f8] sm:$0xff]
        %v2396 = vld [vmem:[%s840 + $0x300] sm:$0xff]
        %v2397 = vld [vmem:[%s840 + $0x308] sm:$0xff]
        %v2398 = vld [vmem:[%s840 + $0x310] sm:$0xff]
        %v2399 = vld [vmem:[%s840 + $0x318] sm:$0xff]
        %v2400 = vld [vmem:[%s840 + $0x320] sm:$0xff]
        %v2401 = vld [vmem:[%s840 + $0x328] sm:$0xff]
        %v2402 = vld [vmem:[%s840 + $0x330] sm:$0xff]
        %v2403 = vld [vmem:[%s840 + $0x338] sm:$0xff]
        %v2404 = vld [vmem:[%s840 + $0x340] sm:$0xff]
        %v2405 = vld [vmem:[%s840 + $0x348] sm:$0xff]
        %v2406 = vld [vmem:[%s840 + $0x350] sm:$0xff]
        %v2407 = vld [vmem:[%s840 + $0x358] sm:$0xff]
        %v2408 = vld [vmem:[%s840 + $0x360] sm:$0xff]
        %v2409 = vld [vmem:[%s840 + $0x368] sm:$0xff]
        %v2410 = vld [vmem:[%s840 + $0x370] sm:$0xff]
        %v2411 = vld [vmem:[%s840 + $0x378] sm:$0xff]
        %v2412 = vld [vmem:[%s840 + $0x380] sm:$0xff]
        %v2413 = vld [vmem:[%s840 + $0x388] sm:$0xff]
        %v2414 = vld [vmem:[%s840 + $0x390] sm:$0xff]
        %v2415 = vld [vmem:[%s840 + $0x398] sm:$0xff]
        %v2416 = vld [vmem:[%s840 + $0x3a0] sm:$0xff]
        %v2417 = vld [vmem:[%s840 + $0x3a8] sm:$0xff]
        %v2418 = vld [vmem:[%s840 + $0x3b0] sm:$0xff]
        %v2419 = vld [vmem:[%s840 + $0x3b8] sm:$0xff]
        %v2420 = vld [vmem:[%s840 + $0x3c0] sm:$0xff]
        %v2421 = vld [vmem:[%s840 + $0x3c8] sm:$0xff]
        %v2422 = vld [vmem:[%s840 + $0x3d0] sm:$0xff]
        %v2423 = vld [vmem:[%s840 + $0x3d8] sm:$0xff]
        %v2424 = vld [vmem:[%s840 + $0x3e0] sm:$0xff]
        %v2425 = vld [vmem:[%s840 + $0x3e8] sm:$0xff]
        %v2426 = vld [vmem:[%s840 + $0x3f0] sm:$0xff]
        %v2427 = vld [vmem:[%s840 + $0x3f8] sm:$0xff]
        %v2428 = vld [vmem:[%s850] sm:$0xff]
        %v2430 = vperm.slane %v2428, 0
        %v2431 = vperm.slane %v2428, 1
        %v2432 = vperm.slane %v2428, 2
        %v2433 = vperm.slane %v2428, 3
        %v2434 = vperm.slane %v2428, 4
        %v2435 = vperm.slane %v2428, 5
        %v2436 = vperm.slane %v2428, 6
        %v2437 = vperm.slane %v2428, 7
        %v2574 = vunpack.c.l.b16 %v2300
        %v2575 = vunpack.c.h.b16 %v2300
        %v2576 = vunpack.c.l.b16 %v2301
        %v2577 = vunpack.c.h.b16 %v2301
        %v2578 = vunpack.c.l.b16 %v2302
        %v2579 = vunpack.c.h.b16 %v2302
        %v2580 = vunpack.c.l.b16 %v2303
        %v2581 = vunpack.c.h.b16 %v2303
        %v2582 = vunpack.c.l.b16 %v2304
        %v2583 = vunpack.c.h.b16 %v2304
        %v2584 = vunpack.c.l.b16 %v2305
        %v2585 = vunpack.c.h.b16 %v2305
        %v2586 = vunpack.c.l.b16 %v2306
        %v2587 = vunpack.c.h.b16 %v2306
        %v2588 = vunpack.c.l.b16 %v2307
        %v2589 = vunpack.c.h.b16 %v2307
        %v2590 = vunpack.c.l.b16 %v2308
        %v2591 = vunpack.c.h.b16 %v2308
        %v2592 = vunpack.c.l.b16 %v2309
        %v2593 = vunpack.c.h.b16 %v2309
        %v2594 = vunpack.c.l.b16 %v2310
        %v2595 = vunpack.c.h.b16 %v2310
        %v2596 = vunpack.c.l.b16 %v2311
        %v2597 = vunpack.c.h.b16 %v2311
        %v2598 = vunpack.c.l.b16 %v2312
        %v2599 = vunpack.c.h.b16 %v2312
        %v2600 = vunpack.c.l.b16 %v2313
        %v2601 = vunpack.c.h.b16 %v2313
        %v2602 = vunpack.c.l.b16 %v2314
        %v2603 = vunpack.c.h.b16 %v2314
        %v2604 = vunpack.c.l.b16 %v2315
        %v2605 = vunpack.c.h.b16 %v2315
        %v2606 = vunpack.c.l.b16 %v2316
        %v2607 = vunpack.c.h.b16 %v2316
        %v2608 = vunpack.c.l.b16 %v2317
        %v2609 = vunpack.c.h.b16 %v2317
        %v2610 = vunpack.c.l.b16 %v2318
        %v2611 = vunpack.c.h.b16 %v2318
        %v2612 = vunpack.c.l.b16 %v2319
        %v2613 = vunpack.c.h.b16 %v2319
        %v2614 = vunpack.c.l.b16 %v2320
        %v2615 = vunpack.c.h.b16 %v2320
        %v2616 = vunpack.c.l.b16 %v2321
        %v2617 = vunpack.c.h.b16 %v2321
        %v2618 = vunpack.c.l.b16 %v2322
        %v2619 = vunpack.c.h.b16 %v2322
        %v2620 = vunpack.c.l.b16 %v2323
        %v2621 = vunpack.c.h.b16 %v2323
        %v2622 = vunpack.c.l.b16 %v2324
        %v2623 = vunpack.c.h.b16 %v2324
        %v2624 = vunpack.c.l.b16 %v2325
        %v2625 = vunpack.c.h.b16 %v2325
        %v2626 = vunpack.c.l.b16 %v2326
        %v2627 = vunpack.c.h.b16 %v2326
        %v2628 = vunpack.c.l.b16 %v2327
        %v2629 = vunpack.c.h.b16 %v2327
        %v2630 = vunpack.c.l.b16 %v2328
        %v2631 = vunpack.c.h.b16 %v2328
        %v2632 = vunpack.c.l.b16 %v2329
        %v2633 = vunpack.c.h.b16 %v2329
        %v2634 = vunpack.c.l.b16 %v2330
        %v2635 = vunpack.c.h.b16 %v2330
        %v2636 = vunpack.c.l.b16 %v2331
        %v2637 = vunpack.c.h.b16 %v2331
        %v2638 = vunpack.c.l.b16 %v2332
        %v2639 = vunpack.c.h.b16 %v2332
        %v2640 = vunpack.c.l.b16 %v2333
        %v2641 = vunpack.c.h.b16 %v2333
        %v2642 = vunpack.c.l.b16 %v2334
        %v2643 = vunpack.c.h.b16 %v2334
        %v2644 = vunpack.c.l.b16 %v2335
        %v2645 = vunpack.c.h.b16 %v2335
        %v2646 = vunpack.c.l.b16 %v2336
        %v2647 = vunpack.c.h.b16 %v2336
        %v2648 = vunpack.c.l.b16 %v2337
        %v2649 = vunpack.c.h.b16 %v2337
        %v2650 = vunpack.c.l.b16 %v2338
        %v2651 = vunpack.c.h.b16 %v2338
        %v2652 = vunpack.c.l.b16 %v2339
        %v2653 = vunpack.c.h.b16 %v2339
        %v2654 = vunpack.c.l.b16 %v2340
        %v2655 = vunpack.c.h.b16 %v2340
        %v2656 = vunpack.c.l.b16 %v2341
        %v2657 = vunpack.c.h.b16 %v2341
        %v2658 = vunpack.c.l.b16 %v2342
        %v2659 = vunpack.c.h.b16 %v2342
        %v2660 = vunpack.c.l.b16 %v2343
        %v2661 = vunpack.c.h.b16 %v2343
        %v2662 = vunpack.c.l.b16 %v2344
        %v2663 = vunpack.c.h.b16 %v2344
        %v2664 = vunpack.c.l.b16 %v2345
        %v2665 = vunpack.c.h.b16 %v2345
        %v2666 = vunpack.c.l.b16 %v2346
        %v2667 = vunpack.c.h.b16 %v2346
        %v2668 = vunpack.c.l.b16 %v2347
        %v2669 = vunpack.c.h.b16 %v2347
        %v2670 = vunpack.c.l.b16 %v2348
        %v2671 = vunpack.c.h.b16 %v2348
        %v2672 = vunpack.c.l.b16 %v2349
        %v2673 = vunpack.c.h.b16 %v2349
        %v2674 = vunpack.c.l.b16 %v2350
        %v2675 = vunpack.c.h.b16 %v2350
        %v2676 = vunpack.c.l.b16 %v2351
        %v2677 = vunpack.c.h.b16 %v2351
        %v2678 = vunpack.c.l.b16 %v2352
        %v2679 = vunpack.c.h.b16 %v2352
        %v2680 = vunpack.c.l.b16 %v2353
        %v2681 = vunpack.c.h.b16 %v2353
        %v2682 = vunpack.c.l.b16 %v2354
        %v2683 = vunpack.c.h.b16 %v2354
        %v2684 = vunpack.c.l.b16 %v2355
        %v2685 = vunpack.c.h.b16 %v2355
        %v2686 = vunpack.c.l.b16 %v2356
        %v2687 = vunpack.c.h.b16 %v2356
        %v2688 = vunpack.c.l.b16 %v2357
        %v2689 = vunpack.c.h.b16 %v2357
        %v2690 = vunpack.c.l.b16 %v2358
        %v2691 = vunpack.c.h.b16 %v2358
        %v2692 = vunpack.c.l.b16 %v2359
        %v2693 = vunpack.c.h.b16 %v2359
        %v2694 = vunpack.c.l.b16 %v2360
        %v2695 = vunpack.c.h.b16 %v2360
        %v2696 = vunpack.c.l.b16 %v2361
        %v2697 = vunpack.c.h.b16 %v2361
        %v2698 = vunpack.c.l.b16 %v2362
        %v2699 = vunpack.c.h.b16 %v2362
        %v2700 = vunpack.c.l.b16 %v2363
        %v2701 = vunpack.c.h.b16 %v2363
        %v2702 = vunpack.c.l.b16 %v2364
        %v2703 = vunpack.c.h.b16 %v2364
        %v2704 = vunpack.c.l.b16 %v2365
        %v2705 = vunpack.c.h.b16 %v2365
        %v2706 = vunpack.c.l.b16 %v2366
        %v2707 = vunpack.c.h.b16 %v2366
        %v2708 = vunpack.c.l.b16 %v2367
        %v2709 = vunpack.c.h.b16 %v2367
        %v2710 = vunpack.c.l.b16 %v2368
        %v2711 = vunpack.c.h.b16 %v2368
        %v2712 = vunpack.c.l.b16 %v2369
        %v2713 = vunpack.c.h.b16 %v2369
        %v2714 = vunpack.c.l.b16 %v2370
        %v2715 = vunpack.c.h.b16 %v2370
        %v2716 = vunpack.c.l.b16 %v2371
        %v2717 = vunpack.c.h.b16 %v2371
        %v2718 = vunpack.c.l.b16 %v2372
        %v2719 = vunpack.c.h.b16 %v2372
        %v2720 = vunpack.c.l.b16 %v2373
        %v2721 = vunpack.c.h.b16 %v2373
        %v2722 = vunpack.c.l.b16 %v2374
        %v2723 = vunpack.c.h.b16 %v2374
        %v2724 = vunpack.c.l.b16 %v2375
        %v2725 = vunpack.c.h.b16 %v2375
        %v2726 = vunpack.c.l.b16 %v2376
        %v2727 = vunpack.c.h.b16 %v2376
        %v2728 = vunpack.c.l.b16 %v2377
        %v2729 = vunpack.c.h.b16 %v2377
        %v2730 = vunpack.c.l.b16 %v2378
        %v2731 = vunpack.c.h.b16 %v2378
        %v2732 = vunpack.c.l.b16 %v2379
        %v2733 = vunpack.c.h.b16 %v2379
        %v2734 = vunpack.c.l.b16 %v2380
        %v2735 = vunpack.c.h.b16 %v2380
        %v2736 = vunpack.c.l.b16 %v2381
        %v2737 = vunpack.c.h.b16 %v2381
        %v2738 = vunpack.c.l.b16 %v2382
        %v2739 = vunpack.c.h.b16 %v2382
        %v2740 = vunpack.c.l.b16 %v2383
        %v2741 = vunpack.c.h.b16 %v2383
        %v2742 = vunpack.c.l.b16 %v2384
        %v2743 = vunpack.c.h.b16 %v2384
        %v2744 = vunpack.c.l.b16 %v2385
        %v2745 = vunpack.c.h.b16 %v2385
        %v2746 = vunpack.c.l.b16 %v2386
        %v2747 = vunpack.c.h.b16 %v2386
        %v2748 = vunpack.c.l.b16 %v2387
        %v2749 = vunpack.c.h.b16 %v2387
        %v2750 = vunpack.c.l.b16 %v2388
        %v2751 = vunpack.c.h.b16 %v2388
        %v2752 = vunpack.c.l.b16 %v2389
        %v2753 = vunpack.c.h.b16 %v2389
        %v2754 = vunpack.c.l.b16 %v2390
        %v2755 = vunpack.c.h.b16 %v2390
        %v2756 = vunpack.c.l.b16 %v2391
        %v2757 = vunpack.c.h.b16 %v2391
        %v2758 = vunpack.c.l.b16 %v2392
        %v2759 = vunpack.c.h.b16 %v2392
        %v2760 = vunpack.c.l.b16 %v2393
        %v2761 = vunpack.c.h.b16 %v2393
        %v2762 = vunpack.c.l.b16 %v2394
        %v2763 = vunpack.c.h.b16 %v2394
        %v2764 = vunpack.c.l.b16 %v2395
        %v2765 = vunpack.c.h.b16 %v2395
        %v2766 = vunpack.c.l.b16 %v2396
        %v2767 = vunpack.c.h.b16 %v2396
        %v2768 = vunpack.c.l.b16 %v2397
        %v2769 = vunpack.c.h.b16 %v2397
        %v2770 = vunpack.c.l.b16 %v2398
        %v2771 = vunpack.c.h.b16 %v2398
        %v2772 = vunpack.c.l.b16 %v2399
        %v2773 = vunpack.c.h.b16 %v2399
        %v2774 = vunpack.c.l.b16 %v2400
        %v2775 = vunpack.c.h.b16 %v2400
        %v2776 = vunpack.c.l.b16 %v2401
        %v2777 = vunpack.c.h.b16 %v2401
        %v2778 = vunpack.c.l.b16 %v2402
        %v2779 = vunpack.c.h.b16 %v2402
        %v2780 = vunpack.c.l.b16 %v2403
        %v2781 = vunpack.c.h.b16 %v2403
        %v2782 = vunpack.c.l.b16 %v2404
        %v2783 = vunpack.c.h.b16 %v2404
        %v2784 = vunpack.c.l.b16 %v2405
        %v2785 = vunpack.c.h.b16 %v2405
        %v2786 = vunpack.c.l.b16 %v2406
        %v2787 = vunpack.c.h.b16 %v2406
        %v2788 = vunpack.c.l.b16 %v2407
        %v2789 = vunpack.c.h.b16 %v2407
        %v2790 = vunpack.c.l.b16 %v2408
        %v2791 = vunpack.c.h.b16 %v2408
        %v2792 = vunpack.c.l.b16 %v2409
        %v2793 = vunpack.c.h.b16 %v2409
        %v2794 = vunpack.c.l.b16 %v2410
        %v2795 = vunpack.c.h.b16 %v2410
        %v2796 = vunpack.c.l.b16 %v2411
        %v2797 = vunpack.c.h.b16 %v2411
        %v2798 = vunpack.c.l.b16 %v2412
        %v2799 = vunpack.c.h.b16 %v2412
        %v2800 = vunpack.c.l.b16 %v2413
        %v2801 = vunpack.c.h.b16 %v2413
        %v2802 = vunpack.c.l.b16 %v2414
        %v2803 = vunpack.c.h.b16 %v2414
        %v2804 = vunpack.c.l.b16 %v2415
        %v2805 = vunpack.c.h.b16 %v2415
        %v2806 = vunpack.c.l.b16 %v2416
        %v2807 = vunpack.c.h.b16 %v2416
        %v2808 = vunpack.c.l.b16 %v2417
        %v2809 = vunpack.c.h.b16 %v2417
        %v2810 = vunpack.c.l.b16 %v2418
        %v2811 = vunpack.c.h.b16 %v2418
        %v2812 = vunpack.c.l.b16 %v2419
        %v2813 = vunpack.c.h.b16 %v2419
        %v2814 = vunpack.c.l.b16 %v2420
        %v2815 = vunpack.c.h.b16 %v2420
        %v2816 = vunpack.c.l.b16 %v2421
        %v2817 = vunpack.c.h.b16 %v2421
        %v2818 = vunpack.c.l.b16 %v2422
        %v2819 = vunpack.c.h.b16 %v2422
        %v2820 = vunpack.c.l.b16 %v2423
        %v2821 = vunpack.c.h.b16 %v2423
        %v2822 = vunpack.c.l.b16 %v2424
        %v2823 = vunpack.c.h.b16 %v2424
        %v2824 = vunpack.c.l.b16 %v2425
        %v2825 = vunpack.c.h.b16 %v2425
        %v2826 = vunpack.c.l.b16 %v2426
        %v2827 = vunpack.c.h.b16 %v2426
        %v2828 = vunpack.c.l.b16 %v2427
        %v2829 = vunpack.c.h.b16 %v2427
        %v2830 = vpack.c.b16 %v2576, %v2574
        %v2831 = vpack.c.b16 %v2577, %v2575
        %v2832 = vpack.c.b16 %v2580, %v2578
        %v2833 = vpack.c.b16 %v2581, %v2579
        %v2834 = vpack.c.b16 %v2584, %v2582
        %v2835 = vpack.c.b16 %v2585, %v2583
        %v2836 = vpack.c.b16 %v2588, %v2586
        %v2837 = vpack.c.b16 %v2589, %v2587
        %v2838 = vpack.c.b16 %v2592, %v2590
        %v2839 = vpack.c.b16 %v2593, %v2591
        %v2840 = vpack.c.b16 %v2596, %v2594
        %v2841 = vpack.c.b16 %v2597, %v2595
        %v2842 = vpack.c.b16 %v2600, %v2598
        %v2843 = vpack.c.b16 %v2601, %v2599
        %v2844 = vpack.c.b16 %v2604, %v2602
        %v2845 = vpack.c.b16 %v2605, %v2603
        %v2846 = vpack.c.b16 %v2608, %v2606
        %v2847 = vpack.c.b16 %v2609, %v2607
        %v2848 = vpack.c.b16 %v2612, %v2610
        %v2849 = vpack.c.b16 %v2613, %v2611
        %v2850 = vpack.c.b16 %v2616, %v2614
        %v2851 = vpack.c.b16 %v2617, %v2615
        %v2852 = vpack.c.b16 %v2620, %v2618
        %v2853 = vpack.c.b16 %v2621, %v2619
        %v2854 = vpack.c.b16 %v2624, %v2622
        %v2855 = vpack.c.b16 %v2625, %v2623
        %v2856 = vpack.c.b16 %v2628, %v2626
        %v2857 = vpack.c.b16 %v2629, %v2627
        %v2858 = vpack.c.b16 %v2632, %v2630
        %v2859 = vpack.c.b16 %v2633, %v2631
        %v2860 = vpack.c.b16 %v2636, %v2634
        %v2861 = vpack.c.b16 %v2637, %v2635
        %v2862 = vpack.c.b16 %v2640, %v2638
        %v2863 = vpack.c.b16 %v2641, %v2639
        %v2864 = vpack.c.b16 %v2644, %v2642
        %v2865 = vpack.c.b16 %v2645, %v2643
        %v2866 = vpack.c.b16 %v2648, %v2646
        %v2867 = vpack.c.b16 %v2649, %v2647
        %v2868 = vpack.c.b16 %v2652, %v2650
        %v2869 = vpack.c.b16 %v2653, %v2651
        %v2870 = vpack.c.b16 %v2656, %v2654
        %v2871 = vpack.c.b16 %v2657, %v2655
        %v2872 = vpack.c.b16 %v2660, %v2658
        %v2873 = vpack.c.b16 %v2661, %v2659
        %v2874 = vpack.c.b16 %v2664, %v2662
        %v2875 = vpack.c.b16 %v2665, %v2663
        %v2876 = vpack.c.b16 %v2668, %v2666
        %v2877 = vpack.c.b16 %v2669, %v2667
        %v2878 = vpack.c.b16 %v2672, %v2670
        %v2879 = vpack.c.b16 %v2673, %v2671
        %v2880 = vpack.c.b16 %v2676, %v2674
        %v2881 = vpack.c.b16 %v2677, %v2675
        %v2882 = vpack.c.b16 %v2680, %v2678
        %v2883 = vpack.c.b16 %v2681, %v2679
        %v2884 = vpack.c.b16 %v2684, %v2682
        %v2885 = vpack.c.b16 %v2685, %v2683
        %v2886 = vpack.c.b16 %v2688, %v2686
        %v2887 = vpack.c.b16 %v2689, %v2687
        %v2888 = vpack.c.b16 %v2692, %v2690
        %v2889 = vpack.c.b16 %v2693, %v2691
        %v2890 = vpack.c.b16 %v2696, %v2694
        %v2891 = vpack.c.b16 %v2697, %v2695
        %v2892 = vpack.c.b16 %v2700, %v2698
        %v2893 = vpack.c.b16 %v2701, %v2699
        %v2894 = vpack.c.b16 %v2704, %v2702
        %v2895 = vpack.c.b16 %v2705, %v2703
        %v2896 = vpack.c.b16 %v2708, %v2706
        %v2897 = vpack.c.b16 %v2709, %v2707
        %v2898 = vpack.c.b16 %v2712, %v2710
        %v2899 = vpack.c.b16 %v2713, %v2711
        %v2900 = vpack.c.b16 %v2716, %v2714
        %v2901 = vpack.c.b16 %v2717, %v2715
        %v2902 = vpack.c.b16 %v2720, %v2718
        %v2903 = vpack.c.b16 %v2721, %v2719
        %v2904 = vpack.c.b16 %v2724, %v2722
        %v2905 = vpack.c.b16 %v2725, %v2723
        %v2906 = vpack.c.b16 %v2728, %v2726
        %v2907 = vpack.c.b16 %v2729, %v2727
        %v2908 = vpack.c.b16 %v2732, %v2730
        %v2909 = vpack.c.b16 %v2733, %v2731
        %v2910 = vpack.c.b16 %v2736, %v2734
        %v2911 = vpack.c.b16 %v2737, %v2735
        %v2912 = vpack.c.b16 %v2740, %v2738
        %v2913 = vpack.c.b16 %v2741, %v2739
        %v2914 = vpack.c.b16 %v2744, %v2742
        %v2915 = vpack.c.b16 %v2745, %v2743
        %v2916 = vpack.c.b16 %v2748, %v2746
        %v2917 = vpack.c.b16 %v2749, %v2747
        %v2918 = vpack.c.b16 %v2752, %v2750
        %v2919 = vpack.c.b16 %v2753, %v2751
        %v2920 = vpack.c.b16 %v2756, %v2754
        %v2921 = vpack.c.b16 %v2757, %v2755
        %v2922 = vpack.c.b16 %v2760, %v2758
        %v2923 = vpack.c.b16 %v2761, %v2759
        %v2924 = vpack.c.b16 %v2764, %v2762
        %v2925 = vpack.c.b16 %v2765, %v2763
        %v2926 = vpack.c.b16 %v2768, %v2766
        %v2927 = vpack.c.b16 %v2769, %v2767
        %v2928 = vpack.c.b16 %v2772, %v2770
        %v2929 = vpack.c.b16 %v2773, %v2771
        %v2930 = vpack.c.b16 %v2776, %v2774
        %v2931 = vpack.c.b16 %v2777, %v2775
        %v2932 = vpack.c.b16 %v2780, %v2778
        %v2933 = vpack.c.b16 %v2781, %v2779
        %v2934 = vpack.c.b16 %v2784, %v2782
        %v2935 = vpack.c.b16 %v2785, %v2783
        %v2936 = vpack.c.b16 %v2788, %v2786
        %v2937 = vpack.c.b16 %v2789, %v2787
        %v2938 = vpack.c.b16 %v2792, %v2790
        %v2939 = vpack.c.b16 %v2793, %v2791
        %v2940 = vpack.c.b16 %v2796, %v2794
        %v2941 = vpack.c.b16 %v2797, %v2795
        %v2942 = vpack.c.b16 %v2800, %v2798
        %v2943 = vpack.c.b16 %v2801, %v2799
        %v2944 = vpack.c.b16 %v2804, %v2802
        %v2945 = vpack.c.b16 %v2805, %v2803
        %v2946 = vpack.c.b16 %v2808, %v2806
        %v2947 = vpack.c.b16 %v2809, %v2807
        %v2948 = vpack.c.b16 %v2812, %v2810
        %v2949 = vpack.c.b16 %v2813, %v2811
        %v2950 = vpack.c.b16 %v2816, %v2814
        %v2951 = vpack.c.b16 %v2817, %v2815
        %v2952 = vpack.c.b16 %v2820, %v2818
        %v2953 = vpack.c.b16 %v2821, %v2819
        %v2954 = vpack.c.b16 %v2824, %v2822
        %v2955 = vpack.c.b16 %v2825, %v2823
        %v2956 = vpack.c.b16 %v2828, %v2826
        %v2957 = vpack.c.b16 %v2829, %v2827
        %3086 = vmatpush.bf16.xpose.msra.mxu0 %v2844
        %3087 = vmatpush.bf16.xpose.msra.mxu0 %v2842
        %3088 = vmatpush.bf16.xpose.msra.mxu0 %v2840
        %3089 = vmatpush.bf16.xpose.msra.mxu0 %v2838
        %3090 = vmatpush.bf16.xpose.msra.mxu0 %v2836
        %3091 = vmatpush.bf16.xpose.msra.mxu0 %v2834
        %3092 = vmatpush.bf16.xpose.msra.mxu0 %v2832
        %3093 = vmatpush.bf16.xpose.msra.mxu0 %v2830
        %3094 = vmatmul.bf16.gmra.mxu0 %v2298
        %v3095 = vpop.f32.mrf.mxu0
        %v3096 = vadd.f32 %v2430, %v3095
        %v3097 = vpop.f32.mrf.mxu0
        %v3098 = vadd.f32 %v2430, %v3097
        %3099 = vdwg.mxu0
        %3100 = vmatpush.bf16.xpose.msra.mxu0 %v2845
        %3101 = vmatpush.bf16.xpose.msra.mxu0 %v2843
        %3102 = vmatpush.bf16.xpose.msra.mxu0 %v2841
        %3103 = vmatpush.bf16.xpose.msra.mxu0 %v2839
        %3104 = vmatpush.bf16.xpose.msra.mxu0 %v2837
        %3105 = vmatpush.bf16.xpose.msra.mxu0 %v2835
        %3106 = vmatpush.bf16.xpose.msra.mxu0 %v2833
        %3107 = vmatpush.bf16.xpose.msra.mxu0 %v2831
        %3108 = vmatmul.bf16.gmra.mxu0 %v2299
        %v3109 = vpop.f32.mrf.mxu0
        %v3110 = vadd.f32 %v3096, %v3109
        %v3111 = vpop.f32.mrf.mxu0
        %v3112 = vadd.f32 %v3098, %v3111
        %3113 = vdwg.mxu0
        %3114 = vmatpush.bf16.xpose.msra.mxu0 %v2860
        %3115 = vmatpush.bf16.xpose.msra.mxu0 %v2858
        %3116 = vmatpush.bf16.xpose.msra.mxu0 %v2856
        %3117 = vmatpush.bf16.xpose.msra.mxu0 %v2854
        %3118 = vmatpush.bf16.xpose.msra.mxu0 %v2852
        %3119 = vmatpush.bf16.xpose.msra.mxu0 %v2850
        %3120 = vmatpush.bf16.xpose.msra.mxu0 %v2848
        %3121 = vmatpush.bf16.xpose.msra.mxu0 %v2846
        %3122 = vmatmul.bf16.gmra.mxu0 %v2298
        %v3123 = vpop.f32.mrf.mxu0
        %v3124 = vadd.f32 %v2431, %v3123
        %v3125 = vpop.f32.mrf.mxu0
        %v3126 = vadd.f32 %v2431, %v3125
        %3127 = vdwg.mxu0
        %3128 = vmatpush.bf16.xpose.msra.mxu0 %v2861
        %3129 = vmatpush.bf16.xpose.msra.mxu0 %v2859
        %3130 = vmatpush.bf16.xpose.msra.mxu0 %v2857
        %3131 = vmatpush.bf16.xpose.msra.mxu0 %v2855
        %3132 = vmatpush.bf16.xpose.msra.mxu0 %v2853
        %3133 = vmatpush.bf16.xpose.msra.mxu0 %v2851
        %3134 = vmatpush.bf16.xpose.msra.mxu0 %v2849
        %3135 = vmatpush.bf16.xpose.msra.mxu0 %v2847
        %3136 = vmatmul.bf16.gmra.mxu0 %v2299
        %v3137 = vpop.f32.mrf.mxu0
        %v3138 = vadd.f32 %v3124, %v3137
        %v3139 = vpop.f32.mrf.mxu0
        %v3140 = vadd.f32 %v3126, %v3139
        %3141 = vdwg.mxu0
        %3142 = vmatpush.bf16.xpose.msra.mxu0 %v2876
        %3143 = vmatpush.bf16.xpose.msra.mxu0 %v2874
        %3144 = vmatpush.bf16.xpose.msra.mxu0 %v2872
        %3145 = vmatpush.bf16.xpose.msra.mxu0 %v2870
        %3146 = vmatpush.bf16.xpose.msra.mxu0 %v2868
        %3147 = vmatpush.bf16.xpose.msra.mxu0 %v2866
        %3148 = vmatpush.bf16.xpose.msra.mxu0 %v2864
        %3149 = vmatpush.bf16.xpose.msra.mxu0 %v2862
        %3150 = vmatmul.bf16.gmra.mxu0 %v2298
        %v3151 = vpop.f32.mrf.mxu0
        %v3152 = vadd.f32 %v2432, %v3151
        %v3153 = vpop.f32.mrf.mxu0
        %v3154 = vadd.f32 %v2432, %v3153
        %3155 = vdwg.mxu0
        %3156 = vmatpush.bf16.xpose.msra.mxu0 %v2877
        %3157 = vmatpush.bf16.xpose.msra.mxu0 %v2875
        %3158 = vmatpush.bf16.xpose.msra.mxu0 %v2873
        %3159 = vmatpush.bf16.xpose.msra.mxu0 %v2871
        %3160 = vmatpush.bf16.xpose.msra.mxu0 %v2869
        %3161 = vmatpush.bf16.xpose.msra.mxu0 %v2867
        %3162 = vmatpush.bf16.xpose.msra.mxu0 %v2865
        %3163 = vmatpush.bf16.xpose.msra.mxu0 %v2863
        %3164 = vmatmul.bf16.gmra.mxu0 %v2299
        %v3165 = vpop.f32.mrf.mxu0
        %v3166 = vadd.f32 %v3152, %v3165
        %v3167 = vpop.f32.mrf.mxu0
        %v3168 = vadd.f32 %v3154, %v3167
        %3169 = vdwg.mxu0
        %3170 = vmatpush.bf16.xpose.msra.mxu0 %v2892
        %3171 = vmatpush.bf16.xpose.msra.mxu0 %v2890
        %3172 = vmatpush.bf16.xpose.msra.mxu0 %v2888
        %3173 = vmatpush.bf16.xpose.msra.mxu0 %v2886
        %3174 = vmatpush.bf16.xpose.msra.mxu0 %v2884
        %3175 = vmatpush.bf16.xpose.msra.mxu0 %v2882
        %3176 = vmatpush.bf16.xpose.msra.mxu0 %v2880
        %3177 = vmatpush.bf16.xpose.msra.mxu0 %v2878
        %3178 = vmatmul.bf16.gmra.mxu0 %v2298
        %v3179 = vpop.f32.mrf.mxu0
        %v3180 = vadd.f32 %v2433, %v3179
        %v3181 = vpop.f32.mrf.mxu0
        %v3182 = vadd.f32 %v2433, %v3181
        %3183 = vdwg.mxu0
        %3184 = vmatpush.bf16.xpose.msra.mxu0 %v2893
        %3185 = vmatpush.bf16.xpose.msra.mxu0 %v2891
        %3186 = vmatpush.bf16.xpose.msra.mxu0 %v2889
        %3187 = vmatpush.bf16.xpose.msra.mxu0 %v2887
        %3188 = vmatpush.bf16.xpose.msra.mxu0 %v2885
        %3189 = vmatpush.bf16.xpose.msra.mxu0 %v2883
        %3190 = vmatpush.bf16.xpose.msra.mxu0 %v2881
        %3191 = vmatpush.bf16.xpose.msra.mxu0 %v2879
        %3192 = vmatmul.bf16.gmra.mxu0 %v2299
        %v3193 = vpop.f32.mrf.mxu0
        %v3194 = vadd.f32 %v3180, %v3193
        %v3195 = vpop.f32.mrf.mxu0
        %v3196 = vadd.f32 %v3182, %v3195
        %3197 = vdwg.mxu0
        %3198 = vmatpush.bf16.xpose.msra.mxu0 %v2908
        %3199 = vmatpush.bf16.xpose.msra.mxu0 %v2906
        %3200 = vmatpush.bf16.xpose.msra.mxu0 %v2904
        %3201 = vmatpush.bf16.xpose.msra.mxu0 %v2902
        %3202 = vmatpush.bf16.xpose.msra.mxu0 %v2900
        %3203 = vmatpush.bf16.xpose.msra.mxu0 %v2898
        %3204 = vmatpush.bf16.xpose.msra.mxu0 %v2896
        %3205 = vmatpush.bf16.xpose.msra.mxu0 %v2894
        %3206 = vmatmul.bf16.gmra.mxu0 %v2298
        %v3207 = vpop.f32.mrf.mxu0
        %v3208 = vadd.f32 %v2434, %v3207
        %v3209 = vpop.f32.mrf.mxu0
        %v3210 = vadd.f32 %v2434, %v3209
        %3211 = vdwg.mxu0
        %3212 = vmatpush.bf16.xpose.msra.mxu0 %v2909
        %3213 = vmatpush.bf16.xpose.msra.mxu0 %v2907
        %3214 = vmatpush.bf16.xpose.msra.mxu0 %v2905
        %3215 = vmatpush.bf16.xpose.msra.mxu0 %v2903
        %3216 = vmatpush.bf16.xpose.msra.mxu0 %v2901
        %3217 = vmatpush.bf16.xpose.msra.mxu0 %v2899
        %3218 = vmatpush.bf16.xpose.msra.mxu0 %v2897
        %3219 = vmatpush.bf16.xpose.msra.mxu0 %v2895
        %3220 = vmatmul.bf16.gmra.mxu0 %v2299
        %v3221 = vpop.f32.mrf.mxu0
        %v3222 = vadd.f32 %v3208, %v3221
        %v3223 = vpop.f32.mrf.mxu0
        %v3224 = vadd.f32 %v3210, %v3223
        %3225 = vdwg.mxu0
        %3226 = vmatpush.bf16.xpose.msra.mxu0 %v2924
        %3227 = vmatpush.bf16.xpose.msra.mxu0 %v2922
        %3228 = vmatpush.bf16.xpose.msra.mxu0 %v2920
        %3229 = vmatpush.bf16.xpose.msra.mxu0 %v2918
        %3230 = vmatpush.bf16.xpose.msra.mxu0 %v2916
        %3231 = vmatpush.bf16.xpose.msra.mxu0 %v2914
        %3232 = vmatpush.bf16.xpose.msra.mxu0 %v2912
        %3233 = vmatpush.bf16.xpose.msra.mxu0 %v2910
        %3234 = vmatmul.bf16.gmra.mxu0 %v2298
        %v3235 = vpop.f32.mrf.mxu0
        %v3236 = vadd.f32 %v2435, %v3235
        %v3237 = vpop.f32.mrf.mxu0
        %v3238 = vadd.f32 %v2435, %v3237
        %3239 = vdwg.mxu0
        %3240 = vmatpush.bf16.xpose.msra.mxu0 %v2925
        %3241 = vmatpush.bf16.xpose.msra.mxu0 %v2923
        %3242 = vmatpush.bf16.xpose.msra.mxu0 %v2921
        %3243 = vmatpush.bf16.xpose.msra.mxu0 %v2919
        %3244 = vmatpush.bf16.xpose.msra.mxu0 %v2917
        %3245 = vmatpush.bf16.xpose.msra.mxu0 %v2915
        %3246 = vmatpush.bf16.xpose.msra.mxu0 %v2913
        %3247 = vmatpush.bf16.xpose.msra.mxu0 %v2911
        %3248 = vmatmul.bf16.gmra.mxu0 %v2299
        %v3249 = vpop.f32.mrf.mxu0
        %v3250 = vadd.f32 %v3236, %v3249
        %v3251 = vpop.f32.mrf.mxu0
        %v3252 = vadd.f32 %v3238, %v3251
        %3253 = vdwg.mxu0
        %3254 = vmatpush.bf16.xpose.msra.mxu0 %v2940
        %3255 = vmatpush.bf16.xpose.msra.mxu0 %v2938
        %3256 = vmatpush.bf16.xpose.msra.mxu0 %v2936
        %3257 = vmatpush.bf16.xpose.msra.mxu0 %v2934
        %3258 = vmatpush.bf16.xpose.msra.mxu0 %v2932
        %3259 = vmatpush.bf16.xpose.msra.mxu0 %v2930
        %3260 = vmatpush.bf16.xpose.msra.mxu0 %v2928
        %3261 = vmatpush.bf16.xpose.msra.mxu0 %v2926
        %3262 = vmatmul.bf16.gmra.mxu0 %v2298
        %v3263 = vpop.f32.mrf.mxu0
        %v3264 = vadd.f32 %v2436, %v3263
        %v3265 = vpop.f32.mrf.mxu0
        %v3266 = vadd.f32 %v2436, %v3265
        %3267 = vdwg.mxu0
        %3268 = vmatpush.bf16.xpose.msra.mxu0 %v2941
        %3269 = vmatpush.bf16.xpose.msra.mxu0 %v2939
        %3270 = vmatpush.bf16.xpose.msra.mxu0 %v2937
        %3271 = vmatpush.bf16.xpose.msra.mxu0 %v2935
        %3272 = vmatpush.bf16.xpose.msra.mxu0 %v2933
        %3273 = vmatpush.bf16.xpose.msra.mxu0 %v2931
        %3274 = vmatpush.bf16.xpose.msra.mxu0 %v2929
        %3275 = vmatpush.bf16.xpose.msra.mxu0 %v2927
        %3276 = vmatmul.bf16.gmra.mxu0 %v2299
        %v3277 = vpop.f32.mrf.mxu0
        %v3278 = vadd.f32 %v3264, %v3277
        %v3279 = vpop.f32.mrf.mxu0
        %v3280 = vadd.f32 %v3266, %v3279
        %3281 = vdwg.mxu0
        %3282 = vmatpush.bf16.xpose.msra.mxu0 %v2956
        %3283 = vmatpush.bf16.xpose.msra.mxu0 %v2954
        %3284 = vmatpush.bf16.xpose.msra.mxu0 %v2952
        %3285 = vmatpush.bf16.xpose.msra.mxu0 %v2950
        %3286 = vmatpush.bf16.xpose.msra.mxu0 %v2948
        %3287 = vmatpush.bf16.xpose.msra.mxu0 %v2946
        %3288 = vmatpush.bf16.xpose.msra.mxu0 %v2944
        %3289 = vmatpush.bf16.xpose.msra.mxu0 %v2942
        %3290 = vmatmul.bf16.gmra.mxu0 %v2298
        %v3291 = vpop.f32.mrf.mxu0
        %v3292 = vadd.f32 %v2437, %v3291
        %v3293 = vpop.f32.mrf.mxu0
        %v3294 = vadd.f32 %v2437, %v3293
        %3295 = vdwg.mxu0
        %3296 = vmatpush.bf16.xpose.msra.mxu0 %v2957
        %3297 = vmatpush.bf16.xpose.msra.mxu0 %v2955
        %3298 = vmatpush.bf16.xpose.msra.mxu0 %v2953
        %3299 = vmatpush.bf16.xpose.msra.mxu0 %v2951
        %3300 = vmatpush.bf16.xpose.msra.mxu0 %v2949
        %3301 = vmatpush.bf16.xpose.msra.mxu0 %v2947
        %3302 = vmatpush.bf16.xpose.msra.mxu0 %v2945
        %3303 = vmatpush.bf16.xpose.msra.mxu0 %v2943
        %3304 = vmatmul.bf16.gmra.mxu0 %v2299
        %v3305 = vpop.f32.mrf.mxu0
        %v3306 = vadd.f32 %v3292, %v3305
        %v3307 = vpop.f32.mrf.mxu0
        %v3308 = vadd.f32 %v3294, %v3307
        %3309 = vdwg.mxu0
        %v3310 = vmax.f32 %v3110, 0.0
        %v3311 = vmax.f32 %v3138, 0.0
        %v3312 = vmax.f32 %v3166, 0.0
        %v3313 = vmax.f32 %v3194, 0.0
        %v3314 = vmax.f32 %v3222, 0.0
        %v3315 = vmax.f32 %v3250, 0.0
        %v3316 = vmax.f32 %v3278, 0.0
        %v3317 = vmax.f32 %v3306, 0.0
        %v3318 = vmax.f32 %v3112, 0.0
        %v3319 = vmax.f32 %v3140, 0.0
        %v3320 = vmax.f32 %v3168, 0.0
        %v3321 = vmax.f32 %v3196, 0.0
        %v3322 = vmax.f32 %v3224, 0.0
        %v3323 = vmax.f32 %v3252, 0.0
        %v3324 = vmax.f32 %v3280, 0.0
        %v3325 = vmax.f32 %v3308, 0.0
        %v3326 = vpack.c.bf16 %v3318, %v3310
        %v3327 = vpack.c.bf16 %v3319, %v3311
        %v3328 = vpack.c.bf16 %v3320, %v3312
        %v3329 = vpack.c.bf16 %v3321, %v3313
        %v3330 = vpack.c.bf16 %v3322, %v3314
        %v3331 = vpack.c.bf16 %v3323, %v3315
        %v3332 = vpack.c.bf16 %v3324, %v3316
        %v3333 = vpack.c.bf16 %v3325, %v3317
        %v3334 = vld [vmem:[%s860] sm:$0xff]
        %v3335 = vld [vmem:[%s860 + $0x8] sm:$0xff]
        %v3336 = vld [vmem:[%s860 + $0x10] sm:$0xff]
        %v3337 = vld [vmem:[%s860 + $0x18] sm:$0xff]
        %v3338 = vld [vmem:[%s860 + $0x20] sm:$0xff]
        %v3339 = vld [vmem:[%s860 + $0x28] sm:$0xff]
        %v3340 = vld [vmem:[%s860 + $0x30] sm:$0xff]
        %v3341 = vld [vmem:[%s860 + $0x38] sm:$0xff]
        %v3342 = vld [vmem:[%s860 + $0x40] sm:$0xff]
        %v3343 = vld [vmem:[%s860 + $0x48] sm:$0xff]
        %v3344 = vld [vmem:[%s860 + $0x50] sm:$0xff]
        %v3345 = vld [vmem:[%s860 + $0x58] sm:$0xff]
        %v3346 = vld [vmem:[%s860 + $0x60] sm:$0xff]
        %v3347 = vld [vmem:[%s860 + $0x68] sm:$0xff]
        %v3348 = vld [vmem:[%s860 + $0x70] sm:$0xff]
        %v3349 = vld [vmem:[%s860 + $0x78] sm:$0xff]
        %v3350 = vld [vmem:[%s860 + $0x80] sm:$0xff]
        %v3351 = vld [vmem:[%s860 + $0x88] sm:$0xff]
        %v3352 = vld [vmem:[%s860 + $0x90] sm:$0xff]
        %v3353 = vld [vmem:[%s860 + $0x98] sm:$0xff]
        %v3354 = vld [vmem:[%s860 + $0xa0] sm:$0xff]
        %v3355 = vld [vmem:[%s860 + $0xa8] sm:$0xff]
        %v3356 = vld [vmem:[%s860 + $0xb0] sm:$0xff]
        %v3357 = vld [vmem:[%s860 + $0xb8] sm:$0xff]
        %v3358 = vld [vmem:[%s860 + $0xc0] sm:$0xff]
        %v3359 = vld [vmem:[%s860 + $0xc8] sm:$0xff]
        %v3360 = vld [vmem:[%s860 + $0xd0] sm:$0xff]
        %v3361 = vld [vmem:[%s860 + $0xd8] sm:$0xff]
        %v3362 = vld [vmem:[%s860 + $0xe0] sm:$0xff]
        %v3363 = vld [vmem:[%s860 + $0xe8] sm:$0xff]
        %v3364 = vld [vmem:[%s860 + $0xf0] sm:$0xff]
        %v3365 = vld [vmem:[%s860 + $0xf8] sm:$0xff]
        %v3366 = vld [vmem:[%s860 + $0x100] sm:$0xff]
        %v3367 = vld [vmem:[%s860 + $0x108] sm:$0xff]
        %v3368 = vld [vmem:[%s860 + $0x110] sm:$0xff]
        %v3369 = vld [vmem:[%s860 + $0x118] sm:$0xff]
        %v3370 = vld [vmem:[%s860 + $0x120] sm:$0xff]
        %v3371 = vld [vmem:[%s860 + $0x128] sm:$0xff]
        %v3372 = vld [vmem:[%s860 + $0x130] sm:$0xff]
        %v3373 = vld [vmem:[%s860 + $0x138] sm:$0xff]
        %v3374 = vld [vmem:[%s860 + $0x140] sm:$0xff]
        %v3375 = vld [vmem:[%s860 + $0x148] sm:$0xff]
        %v3376 = vld [vmem:[%s860 + $0x150] sm:$0xff]
        %v3377 = vld [vmem:[%s860 + $0x158] sm:$0xff]
        %v3378 = vld [vmem:[%s860 + $0x160] sm:$0xff]
        %v3379 = vld [vmem:[%s860 + $0x168] sm:$0xff]
        %v3380 = vld [vmem:[%s860 + $0x170] sm:$0xff]
        %v3381 = vld [vmem:[%s860 + $0x178] sm:$0xff]
        %v3382 = vld [vmem:[%s860 + $0x180] sm:$0xff]
        %v3383 = vld [vmem:[%s860 + $0x188] sm:$0xff]
        %v3384 = vld [vmem:[%s860 + $0x190] sm:$0xff]
        %v3385 = vld [vmem:[%s860 + $0x198] sm:$0xff]
        %v3386 = vld [vmem:[%s860 + $0x1a0] sm:$0xff]
        %v3387 = vld [vmem:[%s860 + $0x1a8] sm:$0xff]
        %v3388 = vld [vmem:[%s860 + $0x1b0] sm:$0xff]
        %v3389 = vld [vmem:[%s860 + $0x1b8] sm:$0xff]
        %v3390 = vld [vmem:[%s860 + $0x1c0] sm:$0xff]
        %v3391 = vld [vmem:[%s860 + $0x1c8] sm:$0xff]
        %v3392 = vld [vmem:[%s860 + $0x1d0] sm:$0xff]
        %v3393 = vld [vmem:[%s860 + $0x1d8] sm:$0xff]
        %v3394 = vld [vmem:[%s860 + $0x1e0] sm:$0xff]
        %v3395 = vld [vmem:[%s860 + $0x1e8] sm:$0xff]
        %v3396 = vld [vmem:[%s860 + $0x1f0] sm:$0xff]
        %v3397 = vld [vmem:[%s860 + $0x1f8] sm:$0xff]
        %v3398 = vld [vmem:[%s860 + $0x200] sm:$0xff]
        %v3399 = vld [vmem:[%s860 + $0x208] sm:$0xff]
        %v3400 = vld [vmem:[%s860 + $0x210] sm:$0xff]
        %v3401 = vld [vmem:[%s860 + $0x218] sm:$0xff]
        %v3402 = vld [vmem:[%s860 + $0x220] sm:$0xff]
        %v3403 = vld [vmem:[%s860 + $0x228] sm:$0xff]
        %v3404 = vld [vmem:[%s860 + $0x230] sm:$0xff]
        %v3405 = vld [vmem:[%s860 + $0x238] sm:$0xff]
        %v3406 = vld [vmem:[%s860 + $0x240] sm:$0xff]
        %v3407 = vld [vmem:[%s860 + $0x248] sm:$0xff]
        %v3408 = vld [vmem:[%s860 + $0x250] sm:$0xff]
        %v3409 = vld [vmem:[%s860 + $0x258] sm:$0xff]
        %v3410 = vld [vmem:[%s860 + $0x260] sm:$0xff]
        %v3411 = vld [vmem:[%s860 + $0x268] sm:$0xff]
        %v3412 = vld [vmem:[%s860 + $0x270] sm:$0xff]
        %v3413 = vld [vmem:[%s860 + $0x278] sm:$0xff]
        %v3414 = vld [vmem:[%s860 + $0x280] sm:$0xff]
        %v3415 = vld [vmem:[%s860 + $0x288] sm:$0xff]
        %v3416 = vld [vmem:[%s860 + $0x290] sm:$0xff]
        %v3417 = vld [vmem:[%s860 + $0x298] sm:$0xff]
        %v3418 = vld [vmem:[%s860 + $0x2a0] sm:$0xff]
        %v3419 = vld [vmem:[%s860 + $0x2a8] sm:$0xff]
        %v3420 = vld [vmem:[%s860 + $0x2b0] sm:$0xff]
        %v3421 = vld [vmem:[%s860 + $0x2b8] sm:$0xff]
        %v3422 = vld [vmem:[%s860 + $0x2c0] sm:$0xff]
        %v3423 = vld [vmem:[%s860 + $0x2c8] sm:$0xff]
        %v3424 = vld [vmem:[%s860 + $0x2d0] sm:$0xff]
        %v3425 = vld [vmem:[%s860 + $0x2d8] sm:$0xff]
        %v3426 = vld [vmem:[%s860 + $0x2e0] sm:$0xff]
        %v3427 = vld [vmem:[%s860 + $0x2e8] sm:$0xff]
        %v3428 = vld [vmem:[%s860 + $0x2f0] sm:$0xff]
        %v3429 = vld [vmem:[%s860 + $0x2f8] sm:$0xff]
        %v3430 = vld [vmem:[%s860 + $0x300] sm:$0xff]
        %v3431 = vld [vmem:[%s860 + $0x308] sm:$0xff]
        %v3432 = vld [vmem:[%s860 + $0x310] sm:$0xff]
        %v3433 = vld [vmem:[%s860 + $0x318] sm:$0xff]
        %v3434 = vld [vmem:[%s860 + $0x320] sm:$0xff]
        %v3435 = vld [vmem:[%s860 + $0x328] sm:$0xff]
        %v3436 = vld [vmem:[%s860 + $0x330] sm:$0xff]
        %v3437 = vld [vmem:[%s860 + $0x338] sm:$0xff]
        %v3438 = vld [vmem:[%s860 + $0x340] sm:$0xff]
        %v3439 = vld [vmem:[%s860 + $0x348] sm:$0xff]
        %v3440 = vld [vmem:[%s860 + $0x350] sm:$0xff]
        %v3441 = vld [vmem:[%s860 + $0x358] sm:$0xff]
        %v3442 = vld [vmem:[%s860 + $0x360] sm:$0xff]
        %v3443 = vld [vmem:[%s860 + $0x368] sm:$0xff]
        %v3444 = vld [vmem:[%s860 + $0x370] sm:$0xff]
        %v3445 = vld [vmem:[%s860 + $0x378] sm:$0xff]
        %v3446 = vld [vmem:[%s860 + $0x380] sm:$0xff]
        %v3447 = vld [vmem:[%s860 + $0x388] sm:$0xff]
        %v3448 = vld [vmem:[%s860 + $0x390] sm:$0xff]
        %v3449 = vld [vmem:[%s860 + $0x398] sm:$0xff]
        %v3450 = vld [vmem:[%s860 + $0x3a0] sm:$0xff]
        %v3451 = vld [vmem:[%s860 + $0x3a8] sm:$0xff]
        %v3452 = vld [vmem:[%s860 + $0x3b0] sm:$0xff]
        %v3453 = vld [vmem:[%s860 + $0x3b8] sm:$0xff]
        %v3454 = vld [vmem:[%s860 + $0x3c0] sm:$0xff]
        %v3455 = vld [vmem:[%s860 + $0x3c8] sm:$0xff]
        %v3456 = vld [vmem:[%s860 + $0x3d0] sm:$0xff]
        %v3457 = vld [vmem:[%s860 + $0x3d8] sm:$0xff]
        %v3458 = vld [vmem:[%s860 + $0x3e0] sm:$0xff]
        %v3459 = vld [vmem:[%s860 + $0x3e8] sm:$0xff]
        %v3460 = vld [vmem:[%s860 + $0x3f0] sm:$0xff]
        %v3461 = vld [vmem:[%s860 + $0x3f8] sm:$0xff]
        %v3462 = vld [vmem:[%s870] sm:$0x3]
        %v3464 = vperm.slane %v3462, 0
        %v3465 = vperm.slane %v3462, 1
        %v3596 = vunpack.c.l.b16 %v3334
        %v3597 = vunpack.c.h.b16 %v3334
        %v3598 = vunpack.c.l.b16 %v3335
        %v3599 = vunpack.c.h.b16 %v3335
        %v3600 = vunpack.c.l.b16 %v3336
        %v3601 = vunpack.c.h.b16 %v3336
        %v3602 = vunpack.c.l.b16 %v3337
        %v3603 = vunpack.c.h.b16 %v3337
        %v3604 = vunpack.c.l.b16 %v3338
        %v3605 = vunpack.c.h.b16 %v3338
        %v3606 = vunpack.c.l.b16 %v3339
        %v3607 = vunpack.c.h.b16 %v3339
        %v3608 = vunpack.c.l.b16 %v3340
        %v3609 = vunpack.c.h.b16 %v3340
        %v3610 = vunpack.c.l.b16 %v3341
        %v3611 = vunpack.c.h.b16 %v3341
        %v3612 = vunpack.c.l.b16 %v3342
        %v3613 = vunpack.c.h.b16 %v3342
        %v3614 = vunpack.c.l.b16 %v3343
        %v3615 = vunpack.c.h.b16 %v3343
        %v3616 = vunpack.c.l.b16 %v3344
        %v3617 = vunpack.c.h.b16 %v3344
        %v3618 = vunpack.c.l.b16 %v3345
        %v3619 = vunpack.c.h.b16 %v3345
        %v3620 = vunpack.c.l.b16 %v3346
        %v3621 = vunpack.c.h.b16 %v3346
        %v3622 = vunpack.c.l.b16 %v3347
        %v3623 = vunpack.c.h.b16 %v3347
        %v3624 = vunpack.c.l.b16 %v3348
        %v3625 = vunpack.c.h.b16 %v3348
        %v3626 = vunpack.c.l.b16 %v3349
        %v3627 = vunpack.c.h.b16 %v3349
        %v3628 = vunpack.c.l.b16 %v3350
        %v3629 = vunpack.c.h.b16 %v3350
        %v3630 = vunpack.c.l.b16 %v3351
        %v3631 = vunpack.c.h.b16 %v3351
        %v3632 = vunpack.c.l.b16 %v3352
        %v3633 = vunpack.c.h.b16 %v3352
        %v3634 = vunpack.c.l.b16 %v3353
        %v3635 = vunpack.c.h.b16 %v3353
        %v3636 = vunpack.c.l.b16 %v3354
        %v3637 = vunpack.c.h.b16 %v3354
        %v3638 = vunpack.c.l.b16 %v3355
        %v3639 = vunpack.c.h.b16 %v3355
        %v3640 = vunpack.c.l.b16 %v3356
        %v3641 = vunpack.c.h.b16 %v3356
        %v3642 = vunpack.c.l.b16 %v3357
        %v3643 = vunpack.c.h.b16 %v3357
        %v3644 = vunpack.c.l.b16 %v3358
        %v3645 = vunpack.c.h.b16 %v3358
        %v3646 = vunpack.c.l.b16 %v3359
        %v3647 = vunpack.c.h.b16 %v3359
        %v3648 = vunpack.c.l.b16 %v3360
        %v3649 = vunpack.c.h.b16 %v3360
        %v3650 = vunpack.c.l.b16 %v3361
        %v3651 = vunpack.c.h.b16 %v3361
        %v3652 = vunpack.c.l.b16 %v3362
        %v3653 = vunpack.c.h.b16 %v3362
        %v3654 = vunpack.c.l.b16 %v3363
        %v3655 = vunpack.c.h.b16 %v3363
        %v3656 = vunpack.c.l.b16 %v3364
        %v3657 = vunpack.c.h.b16 %v3364
        %v3658 = vunpack.c.l.b16 %v3365
        %v3659 = vunpack.c.h.b16 %v3365
        %v3660 = vunpack.c.l.b16 %v3366
        %v3661 = vunpack.c.h.b16 %v3366
        %v3662 = vunpack.c.l.b16 %v3367
        %v3663 = vunpack.c.h.b16 %v3367
        %v3664 = vunpack.c.l.b16 %v3368
        %v3665 = vunpack.c.h.b16 %v3368
        %v3666 = vunpack.c.l.b16 %v3369
        %v3667 = vunpack.c.h.b16 %v3369
        %v3668 = vunpack.c.l.b16 %v3370
        %v3669 = vunpack.c.h.b16 %v3370
        %v3670 = vunpack.c.l.b16 %v3371
        %v3671 = vunpack.c.h.b16 %v3371
        %v3672 = vunpack.c.l.b16 %v3372
        %v3673 = vunpack.c.h.b16 %v3372
        %v3674 = vunpack.c.l.b16 %v3373
        %v3675 = vunpack.c.h.b16 %v3373
        %v3676 = vunpack.c.l.b16 %v3374
        %v3677 = vunpack.c.h.b16 %v3374
        %v3678 = vunpack.c.l.b16 %v3375
        %v3679 = vunpack.c.h.b16 %v3375
        %v3680 = vunpack.c.l.b16 %v3376
        %v3681 = vunpack.c.h.b16 %v3376
        %v3682 = vunpack.c.l.b16 %v3377
        %v3683 = vunpack.c.h.b16 %v3377
        %v3684 = vunpack.c.l.b16 %v3378
        %v3685 = vunpack.c.h.b16 %v3378
        %v3686 = vunpack.c.l.b16 %v3379
        %v3687 = vunpack.c.h.b16 %v3379
        %v3688 = vunpack.c.l.b16 %v3380
        %v3689 = vunpack.c.h.b16 %v3380
        %v3690 = vunpack.c.l.b16 %v3381
        %v3691 = vunpack.c.h.b16 %v3381
        %v3692 = vunpack.c.l.b16 %v3382
        %v3693 = vunpack.c.h.b16 %v3382
        %v3694 = vunpack.c.l.b16 %v3383
        %v3695 = vunpack.c.h.b16 %v3383
        %v3696 = vunpack.c.l.b16 %v3384
        %v3697 = vunpack.c.h.b16 %v3384
        %v3698 = vunpack.c.l.b16 %v3385
        %v3699 = vunpack.c.h.b16 %v3385
        %v3700 = vunpack.c.l.b16 %v3386
        %v3701 = vunpack.c.h.b16 %v3386
        %v3702 = vunpack.c.l.b16 %v3387
        %v3703 = vunpack.c.h.b16 %v3387
        %v3704 = vunpack.c.l.b16 %v3388
        %v3705 = vunpack.c.h.b16 %v3388
        %v3706 = vunpack.c.l.b16 %v3389
        %v3707 = vunpack.c.h.b16 %v3389
        %v3708 = vunpack.c.l.b16 %v3390
        %v3709 = vunpack.c.h.b16 %v3390
        %v3710 = vunpack.c.l.b16 %v3391
        %v3711 = vunpack.c.h.b16 %v3391
        %v3712 = vunpack.c.l.b16 %v3392
        %v3713 = vunpack.c.h.b16 %v3392
        %v3714 = vunpack.c.l.b16 %v3393
        %v3715 = vunpack.c.h.b16 %v3393
        %v3716 = vunpack.c.l.b16 %v3394
        %v3717 = vunpack.c.h.b16 %v3394
        %v3718 = vunpack.c.l.b16 %v3395
        %v3719 = vunpack.c.h.b16 %v3395
        %v3720 = vunpack.c.l.b16 %v3396
        %v3721 = vunpack.c.h.b16 %v3396
        %v3722 = vunpack.c.l.b16 %v3397
        %v3723 = vunpack.c.h.b16 %v3397
        %v3724 = vunpack.c.l.b16 %v3398
        %v3725 = vunpack.c.h.b16 %v3398
        %v3726 = vunpack.c.l.b16 %v3399
        %v3727 = vunpack.c.h.b16 %v3399
        %v3728 = vunpack.c.l.b16 %v3400
        %v3729 = vunpack.c.h.b16 %v3400
        %v3730 = vunpack.c.l.b16 %v3401
        %v3731 = vunpack.c.h.b16 %v3401
        %v3732 = vunpack.c.l.b16 %v3402
        %v3733 = vunpack.c.h.b16 %v3402
        %v3734 = vunpack.c.l.b16 %v3403
        %v3735 = vunpack.c.h.b16 %v3403
        %v3736 = vunpack.c.l.b16 %v3404
        %v3737 = vunpack.c.h.b16 %v3404
        %v3738 = vunpack.c.l.b16 %v3405
        %v3739 = vunpack.c.h.b16 %v3405
        %v3740 = vunpack.c.l.b16 %v3406
        %v3741 = vunpack.c.h.b16 %v3406
        %v3742 = vunpack.c.l.b16 %v3407
        %v3743 = vunpack.c.h.b16 %v3407
        %v3744 = vunpack.c.l.b16 %v3408
        %v3745 = vunpack.c.h.b16 %v3408
        %v3746 = vunpack.c.l.b16 %v3409
        %v3747 = vunpack.c.h.b16 %v3409
        %v3748 = vunpack.c.l.b16 %v3410
        %v3749 = vunpack.c.h.b16 %v3410
        %v3750 = vunpack.c.l.b16 %v3411
        %v3751 = vunpack.c.h.b16 %v3411
        %v3752 = vunpack.c.l.b16 %v3412
        %v3753 = vunpack.c.h.b16 %v3412
        %v3754 = vunpack.c.l.b16 %v3413
        %v3755 = vunpack.c.h.b16 %v3413
        %v3756 = vunpack.c.l.b16 %v3414
        %v3757 = vunpack.c.h.b16 %v3414
        %v3758 = vunpack.c.l.b16 %v3415
        %v3759 = vunpack.c.h.b16 %v3415
        %v3760 = vunpack.c.l.b16 %v3416
        %v3761 = vunpack.c.h.b16 %v3416
        %v3762 = vunpack.c.l.b16 %v3417
        %v3763 = vunpack.c.h.b16 %v3417
        %v3764 = vunpack.c.l.b16 %v3418
        %v3765 = vunpack.c.h.b16 %v3418
        %v3766 = vunpack.c.l.b16 %v3419
        %v3767 = vunpack.c.h.b16 %v3419
        %v3768 = vunpack.c.l.b16 %v3420
        %v3769 = vunpack.c.h.b16 %v3420
        %v3770 = vunpack.c.l.b16 %v3421
        %v3771 = vunpack.c.h.b16 %v3421
        %v3772 = vunpack.c.l.b16 %v3422
        %v3773 = vunpack.c.h.b16 %v3422
        %v3774 = vunpack.c.l.b16 %v3423
        %v3775 = vunpack.c.h.b16 %v3423
        %v3776 = vunpack.c.l.b16 %v3424
        %v3777 = vunpack.c.h.b16 %v3424
        %v3778 = vunpack.c.l.b16 %v3425
        %v3779 = vunpack.c.h.b16 %v3425
        %v3780 = vunpack.c.l.b16 %v3426
        %v3781 = vunpack.c.h.b16 %v3426
        %v3782 = vunpack.c.l.b16 %v3427
        %v3783 = vunpack.c.h.b16 %v3427
        %v3784 = vunpack.c.l.b16 %v3428
        %v3785 = vunpack.c.h.b16 %v3428
        %v3786 = vunpack.c.l.b16 %v3429
        %v3787 = vunpack.c.h.b16 %v3429
        %v3788 = vunpack.c.l.b16 %v3430
        %v3789 = vunpack.c.h.b16 %v3430
        %v3790 = vunpack.c.l.b16 %v3431
        %v3791 = vunpack.c.h.b16 %v3431
        %v3792 = vunpack.c.l.b16 %v3432
        %v3793 = vunpack.c.h.b16 %v3432
        %v3794 = vunpack.c.l.b16 %v3433
        %v3795 = vunpack.c.h.b16 %v3433
        %v3796 = vunpack.c.l.b16 %v3434
        %v3797 = vunpack.c.h.b16 %v3434
        %v3798 = vunpack.c.l.b16 %v3435
        %v3799 = vunpack.c.h.b16 %v3435
        %v3800 = vunpack.c.l.b16 %v3436
        %v3801 = vunpack.c.h.b16 %v3436
        %v3802 = vunpack.c.l.b16 %v3437
        %v3803 = vunpack.c.h.b16 %v3437
        %v3804 = vunpack.c.l.b16 %v3438
        %v3805 = vunpack.c.h.b16 %v3438
        %v3806 = vunpack.c.l.b16 %v3439
        %v3807 = vunpack.c.h.b16 %v3439
        %v3808 = vunpack.c.l.b16 %v3440
        %v3809 = vunpack.c.h.b16 %v3440
        %v3810 = vunpack.c.l.b16 %v3441
        %v3811 = vunpack.c.h.b16 %v3441
        %v3812 = vunpack.c.l.b16 %v3442
        %v3813 = vunpack.c.h.b16 %v3442
        %v3814 = vunpack.c.l.b16 %v3443
        %v3815 = vunpack.c.h.b16 %v3443
        %v3816 = vunpack.c.l.b16 %v3444
        %v3817 = vunpack.c.h.b16 %v3444
        %v3818 = vunpack.c.l.b16 %v3445
        %v3819 = vunpack.c.h.b16 %v3445
        %v3820 = vunpack.c.l.b16 %v3446
        %v3821 = vunpack.c.h.b16 %v3446
        %v3822 = vunpack.c.l.b16 %v3447
        %v3823 = vunpack.c.h.b16 %v3447
        %v3824 = vunpack.c.l.b16 %v3448
        %v3825 = vunpack.c.h.b16 %v3448
        %v3826 = vunpack.c.l.b16 %v3449
        %v3827 = vunpack.c.h.b16 %v3449
        %v3828 = vunpack.c.l.b16 %v3450
        %v3829 = vunpack.c.h.b16 %v3450
        %v3830 = vunpack.c.l.b16 %v3451
        %v3831 = vunpack.c.h.b16 %v3451
        %v3832 = vunpack.c.l.b16 %v3452
        %v3833 = vunpack.c.h.b16 %v3452
        %v3834 = vunpack.c.l.b16 %v3453
        %v3835 = vunpack.c.h.b16 %v3453
        %v3836 = vunpack.c.l.b16 %v3454
        %v3837 = vunpack.c.h.b16 %v3454
        %v3838 = vunpack.c.l.b16 %v3455
        %v3839 = vunpack.c.h.b16 %v3455
        %v3840 = vunpack.c.l.b16 %v3456
        %v3841 = vunpack.c.h.b16 %v3456
        %v3842 = vunpack.c.l.b16 %v3457
        %v3843 = vunpack.c.h.b16 %v3457
        %v3844 = vunpack.c.l.b16 %v3458
        %v3845 = vunpack.c.h.b16 %v3458
        %v3846 = vunpack.c.l.b16 %v3459
        %v3847 = vunpack.c.h.b16 %v3459
        %v3848 = vunpack.c.l.b16 %v3460
        %v3849 = vunpack.c.h.b16 %v3460
        %v3850 = vunpack.c.l.b16 %v3461
        %v3851 = vunpack.c.h.b16 %v3461
        %v3852 = vpack.c.b16 %v3604, %v3596
        %v3853 = vpack.c.b16 %v3605, %v3597
        %v3854 = vpack.c.b16 %v3606, %v3598
        %v3855 = vpack.c.b16 %v3607, %v3599
        %v3856 = vpack.c.b16 %v3608, %v3600
        %v3857 = vpack.c.b16 %v3609, %v3601
        %v3858 = vpack.c.b16 %v3610, %v3602
        %v3859 = vpack.c.b16 %v3611, %v3603
        %v3860 = vpack.c.b16 %v3620, %v3612
        %v3861 = vpack.c.b16 %v3621, %v3613
        %v3862 = vpack.c.b16 %v3622, %v3614
        %v3863 = vpack.c.b16 %v3623, %v3615
        %v3864 = vpack.c.b16 %v3624, %v3616
        %v3865 = vpack.c.b16 %v3625, %v3617
        %v3866 = vpack.c.b16 %v3626, %v3618
        %v3867 = vpack.c.b16 %v3627, %v3619
        %v3868 = vpack.c.b16 %v3636, %v3628
        %v3869 = vpack.c.b16 %v3637, %v3629
        %v3870 = vpack.c.b16 %v3638, %v3630
        %v3871 = vpack.c.b16 %v3639, %v3631
        %v3872 = vpack.c.b16 %v3640, %v3632
        %v3873 = vpack.c.b16 %v3641, %v3633
        %v3874 = vpack.c.b16 %v3642, %v3634
        %v3875 = vpack.c.b16 %v3643, %v3635
        %v3876 = vpack.c.b16 %v3652, %v3644
        %v3877 = vpack.c.b16 %v3653, %v3645
        %v3878 = vpack.c.b16 %v3654, %v3646
        %v3879 = vpack.c.b16 %v3655, %v3647
        %v3880 = vpack.c.b16 %v3656, %v3648
        %v3881 = vpack.c.b16 %v3657, %v3649
        %v3882 = vpack.c.b16 %v3658, %v3650
        %v3883 = vpack.c.b16 %v3659, %v3651
        %v3884 = vpack.c.b16 %v3668, %v3660
        %v3885 = vpack.c.b16 %v3669, %v3661
        %v3886 = vpack.c.b16 %v3670, %v3662
        %v3887 = vpack.c.b16 %v3671, %v3663
        %v3888 = vpack.c.b16 %v3672, %v3664
        %v3889 = vpack.c.b16 %v3673, %v3665
        %v3890 = vpack.c.b16 %v3674, %v3666
        %v3891 = vpack.c.b16 %v3675, %v3667
        %v3892 = vpack.c.b16 %v3684, %v3676
        %v3893 = vpack.c.b16 %v3685, %v3677
        %v3894 = vpack.c.b16 %v3686, %v3678
        %v3895 = vpack.c.b16 %v3687, %v3679
        %v3896 = vpack.c.b16 %v3688, %v3680
        %v3897 = vpack.c.b16 %v3689, %v3681
        %v3898 = vpack.c.b16 %v3690, %v3682
        %v3899 = vpack.c.b16 %v3691, %v3683
        %v3900 = vpack.c.b16 %v3700, %v3692
        %v3901 = vpack.c.b16 %v3701, %v3693
        %v3902 = vpack.c.b16 %v3702, %v3694
        %v3903 = vpack.c.b16 %v3703, %v3695
        %v3904 = vpack.c.b16 %v3704, %v3696
        %v3905 = vpack.c.b16 %v3705, %v3697
        %v3906 = vpack.c.b16 %v3706, %v3698
        %v3907 = vpack.c.b16 %v3707, %v3699
        %v3908 = vpack.c.b16 %v3716, %v3708
        %v3909 = vpack.c.b16 %v3717, %v3709
        %v3910 = vpack.c.b16 %v3718, %v3710
        %v3911 = vpack.c.b16 %v3719, %v3711
        %v3912 = vpack.c.b16 %v3720, %v3712
        %v3913 = vpack.c.b16 %v3721, %v3713
        %v3914 = vpack.c.b16 %v3722, %v3714
        %v3915 = vpack.c.b16 %v3723, %v3715
        %v3916 = vpack.c.b16 %v3732, %v3724
        %v3917 = vpack.c.b16 %v3733, %v3725
        %v3918 = vpack.c.b16 %v3734, %v3726
        %v3919 = vpack.c.b16 %v3735, %v3727
        %v3920 = vpack.c.b16 %v3736, %v3728
        %v3921 = vpack.c.b16 %v3737, %v3729
        %v3922 = vpack.c.b16 %v3738, %v3730
        %v3923 = vpack.c.b16 %v3739, %v3731
        %v3924 = vpack.c.b16 %v3748, %v3740
        %v3925 = vpack.c.b16 %v3749, %v3741
        %v3926 = vpack.c.b16 %v3750, %v3742
        %v3927 = vpack.c.b16 %v3751, %v3743
        %v3928 = vpack.c.b16 %v3752, %v3744
        %v3929 = vpack.c.b16 %v3753, %v3745
        %v3930 = vpack.c.b16 %v3754, %v3746
        %v3931 = vpack.c.b16 %v3755, %v3747
        %v3932 = vpack.c.b16 %v3764, %v3756
        %v3933 = vpack.c.b16 %v3765, %v3757
        %v3934 = vpack.c.b16 %v3766, %v3758
        %v3935 = vpack.c.b16 %v3767, %v3759
        %v3936 = vpack.c.b16 %v3768, %v3760
        %v3937 = vpack.c.b16 %v3769, %v3761
        %v3938 = vpack.c.b16 %v3770, %v3762
        %v3939 = vpack.c.b16 %v3771, %v3763
        %v3940 = vpack.c.b16 %v3780, %v3772
        %v3941 = vpack.c.b16 %v3781, %v3773
        %v3942 = vpack.c.b16 %v3782, %v3774
        %v3943 = vpack.c.b16 %v3783, %v3775
        %v3944 = vpack.c.b16 %v3784, %v3776
        %v3945 = vpack.c.b16 %v3785, %v3777
        %v3946 = vpack.c.b16 %v3786, %v3778
        %v3947 = vpack.c.b16 %v3787, %v3779
        %v3948 = vpack.c.b16 %v3796, %v3788
        %v3949 = vpack.c.b16 %v3797, %v3789
        %v3950 = vpack.c.b16 %v3798, %v3790
        %v3951 = vpack.c.b16 %v3799, %v3791
        %v3952 = vpack.c.b16 %v3800, %v3792
        %v3953 = vpack.c.b16 %v3801, %v3793
        %v3954 = vpack.c.b16 %v3802, %v3794
        %v3955 = vpack.c.b16 %v3803, %v3795
        %v3956 = vpack.c.b16 %v3812, %v3804
        %v3957 = vpack.c.b16 %v3813, %v3805
        %v3958 = vpack.c.b16 %v3814, %v3806
        %v3959 = vpack.c.b16 %v3815, %v3807
        %v3960 = vpack.c.b16 %v3816, %v3808
        %v3961 = vpack.c.b16 %v3817, %v3809
        %v3962 = vpack.c.b16 %v3818, %v3810
        %v3963 = vpack.c.b16 %v3819, %v3811
        %v3964 = vpack.c.b16 %v3828, %v3820
        %v3965 = vpack.c.b16 %v3829, %v3821
        %v3966 = vpack.c.b16 %v3830, %v3822
        %v3967 = vpack.c.b16 %v3831, %v3823
        %v3968 = vpack.c.b16 %v3832, %v3824
        %v3969 = vpack.c.b16 %v3833, %v3825
        %v3970 = vpack.c.b16 %v3834, %v3826
        %v3971 = vpack.c.b16 %v3835, %v3827
        %v3972 = vpack.c.b16 %v3844, %v3836
        %v3973 = vpack.c.b16 %v3845, %v3837
        %v3974 = vpack.c.b16 %v3846, %v3838
        %v3975 = vpack.c.b16 %v3847, %v3839
        %v3976 = vpack.c.b16 %v3848, %v3840
        %v3977 = vpack.c.b16 %v3849, %v3841
        %v3978 = vpack.c.b16 %v3850, %v3842
        %v3979 = vpack.c.b16 %v3851, %v3843
        %4108 = vmatpush.bf16.xpose.msra.mxu0 %v3908
        %4109 = vmatpush.bf16.xpose.msra.mxu0 %v3900
        %4110 = vmatpush.bf16.xpose.msra.mxu0 %v3892
        %4111 = vmatpush.bf16.xpose.msra.mxu0 %v3884
        %4112 = vmatpush.bf16.xpose.msra.mxu0 %v3876
        %4113 = vmatpush.bf16.xpose.msra.mxu0 %v3868
        %4114 = vmatpush.bf16.xpose.msra.mxu0 %v3860
        %4115 = vmatpush.bf16.xpose.msra.mxu0 %v3852
        %4116 = vmatmul.bf16.gmra.mxu0 %v3326
        %v4117 = vpop.f32.mrf.mxu0
        %v4118 = vadd.f32 %v3464, %v4117
        %v4119 = vpop.f32.mrf.mxu0
        %v4120 = vadd.f32 %v3464, %v4119
        %4121 = vdwg.mxu0
        %4122 = vmatpush.bf16.xpose.msra.mxu0 %v3909
        %4123 = vmatpush.bf16.xpose.msra.mxu0 %v3901
        %4124 = vmatpush.bf16.xpose.msra.mxu0 %v3893
        %4125 = vmatpush.bf16.xpose.msra.mxu0 %v3885
        %4126 = vmatpush.bf16.xpose.msra.mxu0 %v3877
        %4127 = vmatpush.bf16.xpose.msra.mxu0 %v3869
        %4128 = vmatpush.bf16.xpose.msra.mxu0 %v3861
        %4129 = vmatpush.bf16.xpose.msra.mxu0 %v3853
        %4130 = vmatmul.bf16.gmra.mxu0 %v3327
        %v4131 = vpop.f32.mrf.mxu0
        %v4132 = vadd.f32 %v4118, %v4131
        %v4133 = vpop.f32.mrf.mxu0
        %v4134 = vadd.f32 %v4120, %v4133
        %4135 = vdwg.mxu0
        %4136 = vmatpush.bf16.xpose.msra.mxu0 %v3910
        %4137 = vmatpush.bf16.xpose.msra.mxu0 %v3902
        %4138 = vmatpush.bf16.xpose.msra.mxu0 %v3894
        %4139 = vmatpush.bf16.xpose.msra.mxu0 %v3886
        %4140 = vmatpush.bf16.xpose.msra.mxu0 %v3878
        %4141 = vmatpush.bf16.xpose.msra.mxu0 %v3870
        %4142 = vmatpush.bf16.xpose.msra.mxu0 %v3862
        %4143 = vmatpush.bf16.xpose.msra.mxu0 %v3854
        %4144 = vmatmul.bf16.gmra.mxu0 %v3328
        %v4145 = vpop.f32.mrf.mxu0
        %v4146 = vadd.f32 %v4132, %v4145
        %v4147 = vpop.f32.mrf.mxu0
        %v4148 = vadd.f32 %v4134, %v4147
        %4149 = vdwg.mxu0
        %4150 = vmatpush.bf16.xpose.msra.mxu0 %v3911
        %4151 = vmatpush.bf16.xpose.msra.mxu0 %v3903
        %4152 = vmatpush.bf16.xpose.msra.mxu0 %v3895
        %4153 = vmatpush.bf16.xpose.msra.mxu0 %v3887
        %4154 = vmatpush.bf16.xpose.msra.mxu0 %v3879
        %4155 = vmatpush.bf16.xpose.msra.mxu0 %v3871
        %4156 = vmatpush.bf16.xpose.msra.mxu0 %v3863
        %4157 = vmatpush.bf16.xpose.msra.mxu0 %v3855
        %4158 = vmatmul.bf16.gmra.mxu0 %v3329
        %v4159 = vpop.f32.mrf.mxu0
        %v4160 = vadd.f32 %v4146, %v4159
        %v4161 = vpop.f32.mrf.mxu0
        %v4162 = vadd.f32 %v4148, %v4161
        %4163 = vdwg.mxu0
        %4164 = vmatpush.bf16.xpose.msra.mxu0 %v3912
        %4165 = vmatpush.bf16.xpose.msra.mxu0 %v3904
        %4166 = vmatpush.bf16.xpose.msra.mxu0 %v3896
        %4167 = vmatpush.bf16.xpose.msra.mxu0 %v3888
        %4168 = vmatpush.bf16.xpose.msra.mxu0 %v3880
        %4169 = vmatpush.bf16.xpose.msra.mxu0 %v3872
        %4170 = vmatpush.bf16.xpose.msra.mxu0 %v3864
        %4171 = vmatpush.bf16.xpose.msra.mxu0 %v3856
        %4172 = vmatmul.bf16.gmra.mxu0 %v3330
        %v4173 = vpop.f32.mrf.mxu0
        %v4174 = vadd.f32 %v4160, %v4173
        %v4175 = vpop.f32.mrf.mxu0
        %v4176 = vadd.f32 %v4162, %v4175
        %4177 = vdwg.mxu0
        %4178 = vmatpush.bf16.xpose.msra.mxu0 %v3913
        %4179 = vmatpush.bf16.xpose.msra.mxu0 %v3905
        %4180 = vmatpush.bf16.xpose.msra.mxu0 %v3897
        %4181 = vmatpush.bf16.xpose.msra.mxu0 %v3889
        %4182 = vmatpush.bf16.xpose.msra.mxu0 %v3881
        %4183 = vmatpush.bf16.xpose.msra.mxu0 %v3873
        %4184 = vmatpush.bf16.xpose.msra.mxu0 %v3865
        %4185 = vmatpush.bf16.xpose.msra.mxu0 %v3857
        %4186 = vmatmul.bf16.gmra.mxu0 %v3331
        %v4187 = vpop.f32.mrf.mxu0
        %v4188 = vadd.f32 %v4174, %v4187
        %v4189 = vpop.f32.mrf.mxu0
        %v4190 = vadd.f32 %v4176, %v4189
        %4191 = vdwg.mxu0
        %4192 = vmatpush.bf16.xpose.msra.mxu0 %v3914
        %4193 = vmatpush.bf16.xpose.msra.mxu0 %v3906
        %4194 = vmatpush.bf16.xpose.msra.mxu0 %v3898
        %4195 = vmatpush.bf16.xpose.msra.mxu0 %v3890
        %4196 = vmatpush.bf16.xpose.msra.mxu0 %v3882
        %4197 = vmatpush.bf16.xpose.msra.mxu0 %v3874
        %4198 = vmatpush.bf16.xpose.msra.mxu0 %v3866
        %4199 = vmatpush.bf16.xpose.msra.mxu0 %v3858
        %4200 = vmatmul.bf16.gmra.mxu0 %v3332
        %v4201 = vpop.f32.mrf.mxu0
        %v4202 = vadd.f32 %v4188, %v4201
        %v4203 = vpop.f32.mrf.mxu0
        %v4204 = vadd.f32 %v4190, %v4203
        %4205 = vdwg.mxu0
        %4206 = vmatpush.bf16.xpose.msra.mxu0 %v3915
        %4207 = vmatpush.bf16.xpose.msra.mxu0 %v3907
        %4208 = vmatpush.bf16.xpose.msra.mxu0 %v3899
        %4209 = vmatpush.bf16.xpose.msra.mxu0 %v3891
        %4210 = vmatpush.bf16.xpose.msra.mxu0 %v3883
        %4211 = vmatpush.bf16.xpose.msra.mxu0 %v3875
        %4212 = vmatpush.bf16.xpose.msra.mxu0 %v3867
        %4213 = vmatpush.bf16.xpose.msra.mxu0 %v3859
        %4214 = vmatmul.bf16.gmra.mxu0 %v3333
        %v4215 = vpop.f32.mrf.mxu0
        %v4216 = vadd.f32 %v4202, %v4215
        %v4217 = vpop.f32.mrf.mxu0
        %v4218 = vadd.f32 %v4204, %v4217
        %4219 = vdwg.mxu0
        %4220 = vmatpush.bf16.xpose.msra.mxu0 %v3972
        %4221 = vmatpush.bf16.xpose.msra.mxu0 %v3964
        %4222 = vmatpush.bf16.xpose.msra.mxu0 %v3956
        %4223 = vmatpush.bf16.xpose.msra.mxu0 %v3948
        %4224 = vmatpush.bf16.xpose.msra.mxu0 %v3940
        %4225 = vmatpush.bf16.xpose.msra.mxu0 %v3932
        %4226 = vmatpush.bf16.xpose.msra.mxu0 %v3924
        %4227 = vmatpush.bf16.xpose.msra.mxu0 %v3916
        %4228 = vmatmul.bf16.gmra.mxu0 %v3326
        %v4229 = vpop.f32.mrf.mxu0
        %v4230 = vadd.f32 %v3465, %v4229
        %v4231 = vpop.f32.mrf.mxu0
        %v4232 = vadd.f32 %v3465, %v4231
        %4233 = vdwg.mxu0
        %4234 = vmatpush.bf16.xpose.msra.mxu0 %v3973
        %4235 = vmatpush.bf16.xpose.msra.mxu0 %v3965
        %4236 = vmatpush.bf16.xpose.msra.mxu0 %v3957
        %4237 = vmatpush.bf16.xpose.msra.mxu0 %v3949
        %4238 = vmatpush.bf16.xpose.msra.mxu0 %v3941
        %4239 = vmatpush.bf16.xpose.msra.mxu0 %v3933
        %4240 = vmatpush.bf16.xpose.msra.mxu0 %v3925
        %4241 = vmatpush.bf16.xpose.msra.mxu0 %v3917
        %4242 = vmatmul.bf16.gmra.mxu0 %v3327
        %v4243 = vpop.f32.mrf.mxu0
        %v4244 = vadd.f32 %v4230, %v4243
        %v4245 = vpop.f32.mrf.mxu0
        %v4246 = vadd.f32 %v4232, %v4245
        %4247 = vdwg.mxu0
        %4248 = vmatpush.bf16.xpose.msra.mxu0 %v3974
        %4249 = vmatpush.bf16.xpose.msra.mxu0 %v3966
        %4250 = vmatpush.bf16.xpose.msra.mxu0 %v3958
        %4251 = vmatpush.bf16.xpose.msra.mxu0 %v3950
        %4252 = vmatpush.bf16.xpose.msra.mxu0 %v3942
        %4253 = vmatpush.bf16.xpose.msra.mxu0 %v3934
        %4254 = vmatpush.bf16.xpose.msra.mxu0 %v3926
        %4255 = vmatpush.bf16.xpose.msra.mxu0 %v3918
        %4256 = vmatmul.bf16.gmra.mxu0 %v3328
        %v4257 = vpop.f32.mrf.mxu0
        %v4258 = vadd.f32 %v4244, %v4257
        %v4259 = vpop.f32.mrf.mxu0
        %v4260 = vadd.f32 %v4246, %v4259
        %4261 = vdwg.mxu0
        %4262 = vmatpush.bf16.xpose.msra.mxu0 %v3975
        %4263 = vmatpush.bf16.xpose.msra.mxu0 %v3967
        %4264 = vmatpush.bf16.xpose.msra.mxu0 %v3959
        %4265 = vmatpush.bf16.xpose.msra.mxu0 %v3951
        %4266 = vmatpush.bf16.xpose.msra.mxu0 %v3943
        %4267 = vmatpush.bf16.xpose.msra.mxu0 %v3935
        %4268 = vmatpush.bf16.xpose.msra.mxu0 %v3927
        %4269 = vmatpush.bf16.xpose.msra.mxu0 %v3919
        %4270 = vmatmul.bf16.gmra.mxu0 %v3329
        %v4271 = vpop.f32.mrf.mxu0
        %v4272 = vadd.f32 %v4258, %v4271
        %v4273 = vpop.f32.mrf.mxu0
        %v4274 = vadd.f32 %v4260, %v4273
        %4275 = vdwg.mxu0
        %4276 = vmatpush.bf16.xpose.msra.mxu0 %v3976
        %4277 = vmatpush.bf16.xpose.msra.mxu0 %v3968
        %4278 = vmatpush.bf16.xpose.msra.mxu0 %v3960
        %4279 = vmatpush.bf16.xpose.msra.mxu0 %v3952
        %4280 = vmatpush.bf16.xpose.msra.mxu0 %v3944
        %4281 = vmatpush.bf16.xpose.msra.mxu0 %v3936
        %4282 = vmatpush.bf16.xpose.msra.mxu0 %v3928
        %4283 = vmatpush.bf16.xpose.msra.mxu0 %v3920
        %4284 = vmatmul.bf16.gmra.mxu0 %v3330
        %v4285 = vpop.f32.mrf.mxu0
        %v4286 = vadd.f32 %v4272, %v4285
        %v4287 = vpop.f32.mrf.mxu0
        %v4288 = vadd.f32 %v4274, %v4287
        %4289 = vdwg.mxu0
        %4290 = vmatpush.bf16.xpose.msra.mxu0 %v3977
        %4291 = vmatpush.bf16.xpose.msra.mxu0 %v3969
        %4292 = vmatpush.bf16.xpose.msra.mxu0 %v3961
        %4293 = vmatpush.bf16.xpose.msra.mxu0 %v3953
        %4294 = vmatpush.bf16.xpose.msra.mxu0 %v3945
        %4295 = vmatpush.bf16.xpose.msra.mxu0 %v3937
        %4296 = vmatpush.bf16.xpose.msra.mxu0 %v3929
        %4297 = vmatpush.bf16.xpose.msra.mxu0 %v3921
        %4298 = vmatmul.bf16.gmra.mxu0 %v3331
        %v4299 = vpop.f32.mrf.mxu0
        %v4300 = vadd.f32 %v4286, %v4299
        %v4301 = vpop.f32.mrf.mxu0
        %v4302 = vadd.f32 %v4288, %v4301
        %4303 = vdwg.mxu0
        %4304 = vmatpush.bf16.xpose.msra.mxu0 %v3978
        %4305 = vmatpush.bf16.xpose.msra.mxu0 %v3970
        %4306 = vmatpush.bf16.xpose.msra.mxu0 %v3962
        %4307 = vmatpush.bf16.xpose.msra.mxu0 %v3954
        %4308 = vmatpush.bf16.xpose.msra.mxu0 %v3946
        %4309 = vmatpush.bf16.xpose.msra.mxu0 %v3938
        %4310 = vmatpush.bf16.xpose.msra.mxu0 %v3930
        %4311 = vmatpush.bf16.xpose.msra.mxu0 %v3922
        %4312 = vmatmul.bf16.gmra.mxu0 %v3332
        %v4313 = vpop.f32.mrf.mxu0
        %v4314 = vadd.f32 %v4300, %v4313
        %v4315 = vpop.f32.mrf.mxu0
        %v4316 = vadd.f32 %v4302, %v4315
        %4317 = vdwg.mxu0
        %4318 = vmatpush.bf16.xpose.msra.mxu0 %v3979
        %4319 = vmatpush.bf16.xpose.msra.mxu0 %v3971
        %4320 = vmatpush.bf16.xpose.msra.mxu0 %v3963
        %4321 = vmatpush.bf16.xpose.msra.mxu0 %v3955
        %4322 = vmatpush.bf16.xpose.msra.mxu0 %v3947
        %4323 = vmatpush.bf16.xpose.msra.mxu0 %v3939
        %4324 = vmatpush.bf16.xpose.msra.mxu0 %v3931
        %4325 = vmatpush.bf16.xpose.msra.mxu0 %v3923
        %4326 = vmatmul.bf16.gmra.mxu0 %v3333
        %v4327 = vpop.f32.mrf.mxu0
        %v4328 = vadd.f32 %v4314, %v4327
        %v4329 = vpop.f32.mrf.mxu0
        %v4330 = vadd.f32 %v4316, %v4329
        %4331 = vdwg.mxu0
        %v4332 = vadd.f32 %v2294, %v4216
        %v4333 = vadd.f32 %v2295, %v4328
        %v4334 = vadd.f32 %v2296, %v4218
        %v4335 = vadd.f32 %v2297, %v4330
        %v4336 = vld [vmem:[%s880] sm:$0x3]
        %v4337 = vld [vmem:[%s890] sm:$0x3]
        %v4338 = vadd.f32 %v4332, %v4333
        %4339 = vadd.xlane.f32.xlu0 %v4338
        %v4340 = vpop.xlane.xlu0 %4339
        %v4341 = vadd.f32 %v4334, %v4335
        %4342 = vadd.xlane.f32.xlu0 %v4341
        %v4343 = vpop.xlane.xlu0 %4342
        %v4344 = vmul.f32 %v4340, %v2235
        %v4345 = vmul.f32 %v4343, %v2235
        %v4346 = vsub.f32 %v4332, %v4344
        %v4347 = vsub.f32 %v4333, %v4344
        %v4348 = vsub.f32 %v4334, %v4345
        %v4349 = vsub.f32 %v4335, %v4345
        %v4350 = vmul.f32 %v4346, %v4346
        %v4351 = vmul.f32 %v4347, %v4347
        %v4352 = vmul.f32 %v4348, %v4348
        %v4353 = vmul.f32 %v4349, %v4349
        %v4354 = vadd.f32 %v4350, %v4351
        %4355 = vadd.xlane.f32.xlu0 %v4354
        %v4356 = vpop.xlane.xlu0 %4355
        %v4357 = vadd.f32 %v4352, %v4353
        %4358 = vadd.xlane.f32.xlu0 %v4357
        %v4359 = vpop.xlane.xlu0 %4358
        %v4360 = vmul.f32 %v4356, %v2235
        %v4361 = vmul.f32 %v4359, %v2235
        %v4362 = vadd.f32 %v4360, 1e-05
        %v4363 = vadd.f32 %v4361, 1e-05
        %v4364 = vrsqrt.pop %v4362
        %v4365 = vmul.f32 %v4364, %v4362
        %v4366 = vmul.f32 %v4365, %v4364
        %v4367 = vmul.f32 0.5, %v4366
        %v4368 = vsub.f32 1.5, %v4367
        %v4369 = vmul.f32 %v4364, %v4368
        %vm4370 = vweird.f32 %v4362
        %vm4371 = vweird.f32 %v4364
        %vm4372 = vmor %vm4370, %vm4371
        %v4373 = vsel %vm4372, %v4364, %v4369
        %v4374 = vrsqrt.pop %v4363
        %v4375 = vmul.f32 %v4374, %v4363
        %v4376 = vmul.f32 %v4375, %v4374
        %v4377 = vmul.f32 0.5, %v4376
        %v4378 = vsub.f32 1.5, %v4377
        %v4379 = vmul.f32 %v4374, %v4378
        %vm4380 = vweird.f32 %v4363
        %vm4381 = vweird.f32 %v4374
        %vm4382 = vmor %vm4380, %vm4381
        %v4383 = vsel %vm4382, %v4374, %v4379
        %v4384 = vmul.f32 %v4346, %v4373
        %v4385 = vmul.f32 %v4347, %v4373
        %v4386 = vmul.f32 %v4348, %v4383
        %v4387 = vmul.f32 %v4349, %v4383
        %v4389 = vperm.slane %v4336, 0
        %v4390 = vperm.slane %v4336, 1
        %v4393 = vmul.f32 %v4384, %v4389
        %v4394 = vmul.f32 %v4385, %v4390
        %v4395 = vmul.f32 %v4386, %v4389
        %v4396 = vmul.f32 %v4387, %v4390
        %v4398 = vperm.slane %v4337, 0
        %v4399 = vperm.slane %v4337, 1
        %v4402 = vadd.f32 %v4393, %v4398
        %v4403 = vadd.f32 %v4394, %v4399
        %v4404 = vadd.f32 %v4395, %v4398
        %v4405 = vadd.f32 %v4396, %v4399
        %4406 = vst [vmem:[#allocation2] sm:$0xff] %v4402
        %4407 = vst [vmem:[#allocation2 + $0x8] sm:$0xff] %v4403
        %4408 = vst [vmem:[#allocation2 + $0x10] sm:$0xff] %v4404
        %4409 = vst [vmem:[#allocation2 + $0x18] sm:$0xff] %v4405
        %p4410 = scmp.eq.s32.totalorder %s57, 2
        // Predicated region
        $region137: #{tpu_custom_call.1} parent=75 // pred_check
          %p4411 = pneg %p4410
        $region138: #{tpu_custom_call.1} parent=75 // pred_check_branch
          %4413 = sbr.rel (%p4411) target = $region140
        $region139: #{tpu_custom_call.1} parent=75 // pred_region
          %4414 = vst [vmem:[%s1000] sm:$0xff] %v4402
          %4415 = vst [vmem:[%s1000 + $0x8] sm:$0xff] %v4403
          %4416 = vst [vmem:[%s1000 + $0x10] sm:$0xff] %v4404
          %4417 = vst [vmem:[%s1000 + $0x18] sm:$0xff] %v4405
        $region140: #{tpu_custom_call.1} parent=75 // pred_fallthru
          _
        %s4418 = sand.u32 %s436, 1
        %s4419 = scalar_lea.sflag [#allocation5], %s4418
        %s4420 = sand.u32 %s436, 1
        %s4421 = smul.addr %s4420, 32
        %s4422 = scalar_lea.vmem [#allocation26], %s4421
        // Predicated region
        $region141: #{tpu_custom_call.1} parent=75 // pred_check
          %p4423 = pneg %p446
        $region142: #{tpu_custom_call.1} parent=75 // pred_check_branch
          %4425 = sbr.rel (%p4423) target = $region144
        $region143: #{tpu_custom_call.1} parent=75 // pred_region
          %4427 = vsyncadd %s4419, 0
          %s4428 = smul.addr %s56, 4
          %s4429 = smul.addr %s4428, 8
          %s4430 = scalar_lea.hbm %s14, %s4429
          %s4431 = sshll.u32 %s4422, 4
          %s4432 = int_to_ptr.vmem [resolvable:$true] %s4431
          %s4433 = sshll.u32 %s4430, 4
          %s4434 = int_to_ptr.hbm [resolvable:$true] %s4433
          %4439 = dma.vmem_to_hbm [thread:$0]  %s4432, 512, %s4434, %s4419, 256, 256, 16
        $region144: #{tpu_custom_call.1} parent=75 // pred_fallthru
          _
      $region76: #{tpu_custom_call.1} parent=5 // pred_fallthru
        _
      %p4440 = scmp.le.s32.totalorder 2, %s47
      // Predicated region
      $region145: #{tpu_custom_call.1} parent=5 // pred_check
        %p4441 = pneg %p4440
      $region146: #{tpu_custom_call.1} parent=5 // pred_check_branch
        %4443 = sbr.rel (%p4441) target = $region148
      $region147: #{tpu_custom_call.1} parent=5 // pred_region
        %s4444 = ssub.s32 %s47, 2
        // Predicated region
        $region149: #{tpu_custom_call.1} parent=147 // pred_check
          %p4445 = pneg %p452
        $region150: #{tpu_custom_call.1} parent=147 // pred_check_branch
          %4447 = sbr.rel (%p4445) target = $region152
        $region151: #{tpu_custom_call.1} parent=147 // pred_region
          %s4448 = sand.u32 %s437, 1
          %s4449 = scalar_lea.sflag [#allocation5], %s4448
          %s4450 = sand.u32 %s437, 1
          %s4451 = smul.addr %s4450, 32
          %s4452 = scalar_lea.vmem [#allocation26], %s4451
          %4454 = dma.done %s4449, 512
        $region152: #{tpu_custom_call.1} parent=147 // pred_fallthru
          _
      $region148: #{tpu_custom_call.1} parent=5 // pred_fallthru
        _
    $region6: #{tpu_custom_call.1} parent=1 // loop_footer
      %s51 = sadd.s32 1, %s47
    $region7: #{tpu_custom_call.1} parent=1 // loop_footer_branch
      %46 = sbr.rel target = $region3
    $region8: #{tpu_custom_call.1} parent=1 // loop_exit
      _
    %4455 = vsyncpa [#allocation4], 1
    %s4456 = scalar_lea.sflag [#allocation4], 1
    %4457 = vsyncpa %s4456, 1
    %4458 = vsyncpa [#allocation7], 1
    %s4459 = scalar_lea.sflag [#allocation7], 1
    %4460 = vsyncpa %s4459, 1
    %4461 = vsyncpa [#allocation10], 1
    %s4462 = scalar_lea.sflag [#allocation10], 1
    %4463 = vsyncpa %s4462, 1
    %4464 = vsyncpa [#allocation13], 1
    %s4465 = scalar_lea.sflag [#allocation13], 1
    %4466 = vsyncpa %s4465, 1
    %4467 = vsyncpa [#allocation16], 1
    %s4468 = scalar_lea.sflag [#allocation16], 1
    %4469 = vsyncpa %s4468, 1
    %4470 = vsyncpa [#allocation19], 1
    %s4471 = scalar_lea.sflag [#allocation19], 1
    %4472 = vsyncpa %s4471, 1
    %4473 = vsyncpa [#allocation22], 1
    %s4474 = scalar_lea.sflag [#allocation22], 1
    %4475 = vsyncpa %s4474, 1
    %4476 = vsyncpa [#allocation25], 1
    %s4477 = scalar_lea.sflag [#allocation25], 1
    %4478 = vsyncpa %s4477, 1
    %4479 = vsyncpa [#allocation5], 1
    %s4480 = scalar_lea.sflag [#allocation5], 1
    %4481 = vsyncpa %s4480, 1

</llo_original>
